<compile_context>
chip_gen: v7x
topology: tpu7x:2x2x1
jax: 0.10.0
libtpu: 0.0.40
codegen_flags: <defaults>
</compile_context>

<pallas_src>
import functools

import jax
import jax.numpy as jnp
from jax.experimental import pallas as pl
from jax.experimental.pallas import tpu as pltpu


# ---------------------------------------------------------------------------
# Static layout of the packed bf16 weight slab (row offsets are Python consts).
# ---------------------------------------------------------------------------
_SLAB_W = 168                         # lane width of the slab (max weight width)
_SLAB_LAYOUT = (                      # (name, rows, cols) in packing order
    ("t1",  140, 168),                # conv1 row-Toeplitz (padding=2 baked in), K=5*28
    ("pw1", 168,  84),                # pool1 width-average (0.5 factor)
    ("t2",  420, 160),                # conv2 row-Toeplitz * 0.5 (pool1 height factor)
    ("pw2", 160,  80),                # pool2 width-average (0.5 factor)
    ("wf1", 400, 128),                # fc1 (NCHW flatten folded into row perm), 120->128
    ("wf2", 128, 128),                # fc2, zero-padded 120x84 -> 128x128
    ("wf3", 128, 128),                # fc3, zero-padded 84x10  -> 128x128
)


def _slab_offsets():
    offs, r = {}, 0
    for name, rows, _ in _SLAB_LAYOUT:
        offs[name] = r
        r += rows + ((-rows) % 8)     # keep every section 8-row aligned
    return offs, r


_OFF, _SLAB_ROWS = _slab_offsets()


# ---------------------------------------------------------------------------
# Fused kernel: whole LeNet forward for a tile of `bt` images per grid step.
# Images are stacked along sublanes: tile row n*32 + h is row h of image n
# (rows 0..1 / 30..31 of each 32-block are conv1's zero padding).
# ---------------------------------------------------------------------------
def _lenet_kernel(x_ref, w_ref, b_ref, sel_ref, o_ref, *, bt):
    bf16 = jnp.bfloat16
    r1 = bt * 32 - 4      # stacked conv1 output rows (rows n*32 + 0..27 are valid)
    r2 = bt * 32 - 13     # stacked conv2 output rows (rows n*32 + 2*h2 are valid)

    def dot(a, b):
        return jnp.dot(a.astype(bf16), b.astype(bf16),
                       preferred_element_type=jnp.float32)

    def sigmoid(z):
        # exp and reciprocal both run on the EUP slot (approx recip ~1e-3 rel).
        return pl.reciprocal(1.0 + jnp.exp(-z), approx=True)

    x = x_ref[...]                                         # (bt*32, 28) f32

    # --- conv1 (5x5, padding=2) + sigmoid + pool1(width), whole tile at once --
    a1 = dot(x[0:r1, :], w_ref[_OFF["t1"]:_OFF["t1"] + 28, :])
    for i in range(1, 5):
        off = _OFF["t1"] + 28 * i
        a1 = a1 + dot(x[i:i + r1, :], w_ref[off:off + 28, :])
    s1 = sigmoid(a1 + b_ref[0:1, :])                       # (r1, 168), lane = w*6+c
    p1 = dot(s1, w_ref[_OFF["pw1"]:_OFF["pw1"] + 168, 0:84])   # (r1, 84)

    # --- pool1(height) folded into conv2 (pair-sum + 0.5 baked into t2) -------
    q = p1[0:r1 - 1, :] + p1[1:r1, :]                      # (r1-1, 84)
    a2 = dot(q[0:r2, :], w_ref[_OFF["t2"]:_OFF["t2"] + 84, 0:160])
    for i in range(1, 5):
        off = _OFF["t2"] + 84 * i
        a2 = a2 + dot(q[2 * i:2 * i + r2, :], w_ref[off:off + 84, 0:160])
    s2 = sigmoid(a2 + b_ref[1:2, 0:160])                   # (r2, 160), lane = w*16+c
    p2 = dot(s2, w_ref[_OFF["pw2"]:_OFF["pw2"] + 160, 0:80])   # (r2, 80)

    # --- pool2(height) + per-image row gather as ONE constant matmul ----------
    # g row h*bt + n == pooled conv2 row h of image n (lane = w*16 + c).
    g = dot(sel_ref[...], p2)                              # (5*bt, 80)

    # --- fc1 (flatten folded into wf1 row perm) + fc2 + fc3, batched M = bt ---
    f = dot(g[0:bt, :], w_ref[_OFF["wf1"]:_OFF["wf1"] + 80, 0:128])
    for h in range(1, 5):
        off = _OFF["wf1"] + 80 * h
        f = f + dot(g[h * bt:(h + 1) * bt, :], w_ref[off:off + 80, 0:128])
    f1 = sigmoid(f + b_ref[2:3, 0:128])                    # (bt, 128), 120 real lanes
    f2 = sigmoid(dot(f1, w_ref[_OFF["wf2"]:_OFF["wf2"] + 128, 0:128])
                 + b_ref[3:4, 0:128])                      # (bt, 128), 84 real lanes
    logits = (dot(f2, w_ref[_OFF["wf3"]:_OFF["wf3"] + 128, 0:128])
              + b_ref[4:5, 0:128])                         # (bt, 128), 10 real lanes
    o_ref[...] = logits.astype(o_ref.dtype)


# ---------------------------------------------------------------------------
# Host-side weight preprocessing (done once per parameter set, plain JAX).
# ---------------------------------------------------------------------------
def _conv_toeplitz(w, w_in, pad):
    """Conv weight (Cout,Cin,KH,KW) -> row-Toeplitz (KH*w_in*Cin, w_out*Cout).

    For a stacked activation slab A[h, w*Cin + c], kernel row i contributes
    A[h+i-shifted] @ T[i*w_in*Cin:(i+1)*w_in*Cin, :]; width padding is baked in.
    Output lanes are laid out as w_out*Cout + c_out.
    """
    cout, cin, kh, kw = w.shape
    w_out = w_in + 2 * pad - kw + 1
    shift = jnp.stack([jnp.eye(w_in, w_out, k=pad - j, dtype=jnp.float32)
                       for j in range(kw)])                       # (kw, w_in, w_out)
    t = jnp.einsum("jab,opij->iapbo", shift, w.astype(jnp.float32))
    return t.reshape(kh * w_in * cin, w_out * cout)


def _pool_width(w_in, c):
    """2-wide average pooling over width as a right matmul on (h, w*c) slabs."""
    w_out = w_in // 2
    rw = jnp.repeat(jnp.eye(w_out, dtype=jnp.float32), 2, axis=0)      # (w_in, w_out)
    return 0.5 * jnp.kron(rw, jnp.eye(c, dtype=jnp.float32))           # (w_in*c, w_out*c)


def prepare_lenet_weights(params):
    f32 = jnp.float32
    # fc1: fold PyTorch's NCHW flatten (index c*25 + h*5 + w) into a row
    # permutation; our flat lane index is h*80 + w*16 + c.
    h_i = jnp.arange(5)[:, None, None]
    w_i = jnp.arange(5)[None, :, None]
    c_i = jnp.arange(16)[None, None, :]
    perm = (c_i * 25 + h_i * 5 + w_i).reshape(400)

    mats = {
        "t1": _conv_toeplitz(params["conv1_w"], 28, 2),
        "pw1": _pool_width(28, 6),
        "t2": 0.5 * _conv_toeplitz(params["conv2_w"], 14, 0),   # pool1 height 0.5
        "pw2": _pool_width(10, 16),
        "wf1": jnp.pad(params["fc1_w"][perm, :].astype(f32), ((0, 0), (0, 8))),
        # Zero-padded ROWS below guarantee the padded lanes of f1/f2 (which hold
        # sigmoid(0)=0.5) contribute nothing downstream.
        "wf2": jnp.pad(params["fc2_w"].astype(f32), ((0, 8), (0, 44))),
        "wf3": jnp.pad(params["fc3_w"].astype(f32), ((0, 44), (0, 118))),
    }
    blocks = []
    for name, rows, cols in _SLAB_LAYOUT:
        m = mats[name]
        assert m.shape == (rows, cols), (name, m.shape)
        blocks.append(jnp.pad(m, ((0, (-rows) % 8), (0, _SLAB_W - cols))))
    wslab = jnp.concatenate(blocks, axis=0).astype(jnp.bfloat16)   # (_SLAB_ROWS, 168)

    def brow(v):
        return jnp.pad(v.astype(f32), (0, _SLAB_W - v.shape[0]))

    bslab = jnp.stack([
        brow(jnp.tile(params["conv1_b"], 28)),     # (168,) lane = w*6 + c
        brow(jnp.tile(params["conv2_b"], 10)),     # (160,) lane = w*16 + c
        brow(params["fc1_b"]),                     # padded lanes stay zero
        brow(params["fc2_b"]),
        brow(params["fc3_b"]),
    ])                                             # (5, 168) f32
    return {"w": wslab, "b": bslab}


def _make_sel(bt):
    """Selection matrix (5*bt, bt*32-13): row h*bt+n averages (0.5 each) the
    width-pooled conv2 rows 2h and 2h+1 of image n (= pool2 height average)."""
    r2 = bt * 32 - 13
    rows = jnp.arange(5 * bt)
    n = rows % bt
    h = rows // bt
    base = (n * 32 + 4 * h)[:, None]
    cols = jnp.arange(r2)[None, :]
    sel = 0.5 * ((cols == base) | (cols == base + 2)).astype(jnp.float32)
    return sel.astype(jnp.bfloat16)


# ---------------------------------------------------------------------------
# Forward pass
# ---------------------------------------------------------------------------
def lenet_forward(wts, x_nchw, *, bt=8):
    """LeNet forward. x_nchw: (B, 1, 28, 28) -> (B, 10) logits."""
    B = x_nchw.shape[0]
    bt = max(8, min(int(bt), 256))              # sublane-friendly batch tile
    b_pad = -(-B // bt) * bt
    n_steps = b_pad // bt

    x = x_nchw.reshape(B, 28, 28).astype(jnp.float32)
    if b_pad != B:
        x = jnp.pad(x, ((0, b_pad - B), (0, 0), (0, 0)))
    # Two zero rows of conv1 padding between stacked images; width padding is
    # baked into the conv1 Toeplitz weight, so no 32-wide pad is materialized.
    xs = jnp.pad(x, ((0, 0), (2, 2), (0, 0))).reshape(b_pad * 32, 28)

    wslab, bslab = wts["w"], wts["b"]
    sel = _make_sel(bt)

    kernel = functools.partial(_lenet_kernel, bt=bt)
    out = pl.pallas_call(
        kernel,
        out_shape=jax.ShapeDtypeStruct((b_pad, 128), jnp.float32),
        grid=(n_steps,),
        in_specs=[
            pl.BlockSpec((bt * 32, 28), lambda g: (g, 0)),
            pl.BlockSpec(wslab.shape, lambda g: (0, 0)),
            pl.BlockSpec(bslab.shape, lambda g: (0, 0)),
            pl.BlockSpec(sel.shape, lambda g: (0, 0)),
        ],
        out_specs=pl.BlockSpec((bt, 128), lambda g: (g, 0)),
        compiler_params=pltpu.CompilerParams(
            dimension_semantics=("parallel",)),
    )(xs, wslab, bslab, sel)

    return out[:B, :10]                          # drop batch + lane padding


# ---------------------------------------------------------------------------
# Parameters (PyTorch layouts; fc weights stored as (in, out)), demo entry.
# ---------------------------------------------------------------------------
def init_params(key):
    ks = jax.random.split(key, 10)

    def nrm(k, shape, scale=0.1):
        return scale * jax.random.normal(k, shape, dtype=jnp.float32)

    return {
        "conv1_w": nrm(ks[0], (6, 1, 5, 5)),     # Conv2d(1, 6, 5, padding=2)
        "conv1_b": nrm(ks[1], (6,)),
        "conv2_w": nrm(ks[2], (16, 6, 5, 5)),    # Conv2d(6, 16, 5)
        "conv2_b": nrm(ks[3], (16,)),
        "fc1_w": nrm(ks[4], (16 * 5 * 5, 120)),  # Linear(400, 120), stored (K, N)
        "fc1_b": nrm(ks[5], (120,)),
        "fc2_w": nrm(ks[6], (120, 84)),          # Linear(120, 84)
        "fc2_b": nrm(ks[7], (84,)),
        "fc3_w": nrm(ks[8], (84, 10)),           # Linear(84, 10)
        "fc3_b": nrm(ks[9], (10,)),
    }


if __name__ == "__main__":
    key = jax.random.PRNGKey(0)
    k_param, k_x = jax.random.split(key)
    params = init_params(k_param)
    wts = prepare_lenet_weights(params)

    # LeNet's flatten (16*5*5) implies 28x28 single-channel inputs.
    x = jax.random.normal(k_x, (2, 1, 28, 28), dtype=jnp.float32)

    out = jax.jit(lenet_forward)(wts, x)
    out = jax.block_until_ready(out)
    assert out.shape == (2, 10), out.shape
    assert bool(jnp.all(jnp.isfinite(out)))
    print("KERNEL_OK")
</pallas_src>

<mosaic_0001>
module attributes {stable_mosaic.version = 11 : i64} {
  func.func @_lenet_kernel(%arg0: i32, %arg1: memref<256x28xf32, #tpu.memory_space<vmem>>, %arg2: memref<1552x168xbf16, #tpu.memory_space<vmem>>, %arg3: memref<5x168xf32, #tpu.memory_space<vmem>>, %arg4: memref<40x243xbf16, #tpu.memory_space<vmem>>, %arg5: memref<8x128xf32, #tpu.memory_space<vmem>>) attributes {dimension_semantics = [#tpu.dimension_semantics<parallel>], iteration_bounds = array<i64: 1>, scalar_prefetch = 0 : i64, scratch_operands = 0 : i64, tpu.core_type = #tpu.core_type<tc>, window_params = [{transform_indices = @transform_0, window_bounds = array<i64: 256, 28>}, {pipeline_mode = #tpu.pipeline_mode<synchronous>, transform_indices = @transform_1, window_bounds = array<i64: 1552, 168>}, {pipeline_mode = #tpu.pipeline_mode<synchronous>, transform_indices = @transform_2, window_bounds = array<i64: 5, 168>}, {pipeline_mode = #tpu.pipeline_mode<synchronous>, transform_indices = @transform_3, window_bounds = array<i64: 40, 243>}, {transform_indices = @transform_4, window_bounds = array<i64: 8, 128>}]} {
    %c0 = arith.constant 0 : index
    %c0_0 = arith.constant 0 : index
    %0 = vector.load %arg1[%c0, %c0_0] : memref<256x28xf32, #tpu.memory_space<vmem>>, vector<256x28xf32>
    %1 = vector.extract_strided_slice %0 {offsets = [0, 0], sizes = [252, 28], strides = [1, 1]} : vector<256x28xf32> to vector<252x28xf32>
    %c0_1 = arith.constant 0 : index
    %c0_2 = arith.constant 0 : index
    %2 = vector.load %arg2[%c0_1, %c0_2] : memref<1552x168xbf16, #tpu.memory_space<vmem>>, vector<28x168xbf16>
    %3 = arith.truncf %1 : vector<252x28xf32> to vector<252x28xbf16>
    %cst = arith.constant dense<0.000000e+00> : vector<252x168xf32>
    %4 = tpu.matmul %3, %2, %cst {dimension_numbers = #tpu.dot_dimension_numbers<[1], [0], [0], [1], [0, 0, 1, 1], [], []>} : vector<252x28xbf16>, vector<28x168xbf16>, vector<252x168xf32> -> vector<252x168xf32>
    %5 = vector.extract_strided_slice %0 {offsets = [1, 0], sizes = [252, 28], strides = [1, 1]} : vector<256x28xf32> to vector<252x28xf32>
    %c28 = arith.constant 28 : index
    %c0_3 = arith.constant 0 : index
    %6 = vector.load %arg2[%c28, %c0_3] : memref<1552x168xbf16, #tpu.memory_space<vmem>>, vector<28x168xbf16>
    %7 = arith.truncf %5 : vector<252x28xf32> to vector<252x28xbf16>
    %cst_4 = arith.constant dense<0.000000e+00> : vector<252x168xf32>
    %8 = tpu.matmul %7, %6, %cst_4 {dimension_numbers = #tpu.dot_dimension_numbers<[1], [0], [0], [1], [0, 0, 1, 1], [], []>} : vector<252x28xbf16>, vector<28x168xbf16>, vector<252x168xf32> -> vector<252x168xf32>
    %9 = arith.addf %4, %8 : vector<252x168xf32>
    %10 = vector.extract_strided_slice %0 {offsets = [2, 0], sizes = [252, 28], strides = [1, 1]} : vector<256x28xf32> to vector<252x28xf32>
    %c56 = arith.constant 56 : index
    %c0_5 = arith.constant 0 : index
    %11 = vector.load %arg2[%c56, %c0_5] : memref<1552x168xbf16, #tpu.memory_space<vmem>>, vector<28x168xbf16>
    %12 = arith.truncf %10 : vector<252x28xf32> to vector<252x28xbf16>
    %cst_6 = arith.constant dense<0.000000e+00> : vector<252x168xf32>
    %13 = tpu.matmul %12, %11, %cst_6 {dimension_numbers = #tpu.dot_dimension_numbers<[1], [0], [0], [1], [0, 0, 1, 1], [], []>} : vector<252x28xbf16>, vector<28x168xbf16>, vector<252x168xf32> -> vector<252x168xf32>
    %14 = arith.addf %9, %13 : vector<252x168xf32>
    %15 = vector.extract_strided_slice %0 {offsets = [3, 0], sizes = [252, 28], strides = [1, 1]} : vector<256x28xf32> to vector<252x28xf32>
    %c84 = arith.constant 84 : index
    %c0_7 = arith.constant 0 : index
    %16 = vector.load %arg2[%c84, %c0_7] : memref<1552x168xbf16, #tpu.memory_space<vmem>>, vector<28x168xbf16>
    %17 = arith.truncf %15 : vector<252x28xf32> to vector<252x28xbf16>
    %cst_8 = arith.constant dense<0.000000e+00> : vector<252x168xf32>
    %18 = tpu.matmul %17, %16, %cst_8 {dimension_numbers = #tpu.dot_dimension_numbers<[1], [0], [0], [1], [0, 0, 1, 1], [], []>} : vector<252x28xbf16>, vector<28x168xbf16>, vector<252x168xf32> -> vector<252x168xf32>
    %19 = arith.addf %14, %18 : vector<252x168xf32>
    %20 = vector.extract_strided_slice %0 {offsets = [4, 0], sizes = [252, 28], strides = [1, 1]} : vector<256x28xf32> to vector<252x28xf32>
    %c112 = arith.constant 112 : index
    %c0_9 = arith.constant 0 : index
    %21 = vector.load %arg2[%c112, %c0_9] : memref<1552x168xbf16, #tpu.memory_space<vmem>>, vector<28x168xbf16>
    %22 = arith.truncf %20 : vector<252x28xf32> to vector<252x28xbf16>
    %cst_10 = arith.constant dense<0.000000e+00> : vector<252x168xf32>
    %23 = tpu.matmul %22, %21, %cst_10 {dimension_numbers = #tpu.dot_dimension_numbers<[1], [0], [0], [1], [0, 0, 1, 1], [], []>} : vector<252x28xbf16>, vector<28x168xbf16>, vector<252x168xf32> -> vector<252x168xf32>
    %24 = arith.addf %19, %23 : vector<252x168xf32>
    %c0_11 = arith.constant 0 : index
    %c0_12 = arith.constant 0 : index
    %25 = vector.load %arg3[%c0_11, %c0_12] : memref<5x168xf32, #tpu.memory_space<vmem>>, vector<1x168xf32>
    %26 = vector.broadcast %25 : vector<1x168xf32> to vector<252x168xf32>
    %27 = arith.addf %24, %26 : vector<252x168xf32>
    %cst_13 = arith.constant 0.000000e+00 : f32
    %28 = vector.broadcast %cst_13 : f32 to vector<252x168xf32>
    %29 = arith.subf %28, %27 : vector<252x168xf32>
    %30 = math.exp %29 : vector<252x168xf32>
    %cst_14 = arith.constant 1.000000e+00 : f32
    %31 = vector.broadcast %cst_14 : f32 to vector<252x168xf32>
    %32 = arith.addf %31, %30 : vector<252x168xf32>
    %33 = tpu.reciprocal %32 {approx = true} : vector<252x168xf32> -> vector<252x168xf32>
    %c144 = arith.constant 144 : index
    %c0_15 = arith.constant 0 : index
    %34 = vector.load %arg2[%c144, %c0_15] : memref<1552x168xbf16, #tpu.memory_space<vmem>>, vector<168x84xbf16>
    %35 = arith.truncf %33 : vector<252x168xf32> to vector<252x168xbf16>
    %cst_16 = arith.constant dense<0.000000e+00> : vector<252x84xf32>
    %36 = tpu.matmul %35, %34, %cst_16 {dimension_numbers = #tpu.dot_dimension_numbers<[1], [0], [0], [1], [0, 0, 1, 1], [], []>} : vector<252x168xbf16>, vector<168x84xbf16>, vector<252x84xf32> -> vector<252x84xf32>
    %37 = vector.extract_strided_slice %36 {offsets = [0, 0], sizes = [251, 84], strides = [1, 1]} : vector<252x84xf32> to vector<251x84xf32>
    %38 = vector.extract_strided_slice %36 {offsets = [1, 0], sizes = [251, 84], strides = [1, 1]} : vector<252x84xf32> to vector<251x84xf32>
    %39 = arith.addf %37, %38 : vector<251x84xf32>
    %40 = vector.extract_strided_slice %39 {offsets = [0, 0], sizes = [243, 84], strides = [1, 1]} : vector<251x84xf32> to vector<243x84xf32>
    %c312 = arith.constant 312 : index
    %c0_17 = arith.constant 0 : index
    %41 = vector.load %arg2[%c312, %c0_17] : memref<1552x168xbf16, #tpu.memory_space<vmem>>, vector<84x160xbf16>
    %42 = arith.truncf %40 : vector<243x84xf32> to vector<243x84xbf16>
    %cst_18 = arith.constant dense<0.000000e+00> : vector<243x160xf32>
    %43 = tpu.matmul %42, %41, %cst_18 {dimension_numbers = #tpu.dot_dimension_numbers<[1], [0], [0], [1], [0, 0, 1, 1], [], []>} : vector<243x84xbf16>, vector<84x160xbf16>, vector<243x160xf32> -> vector<243x160xf32>
    %44 = vector.extract_strided_slice %39 {offsets = [2, 0], sizes = [243, 84], strides = [1, 1]} : vector<251x84xf32> to vector<243x84xf32>
    %c396 = arith.constant 396 : index
    %c0_19 = arith.constant 0 : index
    %45 = vector.load %arg2[%c396, %c0_19] : memref<1552x168xbf16, #tpu.memory_space<vmem>>, vector<84x160xbf16>
    %46 = arith.truncf %44 : vector<243x84xf32> to vector<243x84xbf16>
    %cst_20 = arith.constant dense<0.000000e+00> : vector<243x160xf32>
    %47 = tpu.matmul %46, %45, %cst_20 {dimension_numbers = #tpu.dot_dimension_numbers<[1], [0], [0], [1], [0, 0, 1, 1], [], []>} : vector<243x84xbf16>, vector<84x160xbf16>, vector<243x160xf32> -> vector<243x160xf32>
    %48 = arith.addf %43, %47 : vector<243x160xf32>
    %49 = vector.extract_strided_slice %39 {offsets = [4, 0], sizes = [243, 84], strides = [1, 1]} : vector<251x84xf32> to vector<243x84xf32>
    %c480 = arith.constant 480 : index
    %c0_21 = arith.constant 0 : index
    %50 = vector.load %arg2[%c480, %c0_21] : memref<1552x168xbf16, #tpu.memory_space<vmem>>, vector<84x160xbf16>
    %51 = arith.truncf %49 : vector<243x84xf32> to vector<243x84xbf16>
    %cst_22 = arith.constant dense<0.000000e+00> : vector<243x160xf32>
    %52 = tpu.matmul %51, %50, %cst_22 {dimension_numbers = #tpu.dot_dimension_numbers<[1], [0], [0], [1], [0, 0, 1, 1], [], []>} : vector<243x84xbf16>, vector<84x160xbf16>, vector<243x160xf32> -> vector<243x160xf32>
    %53 = arith.addf %48, %52 : vector<243x160xf32>
    %54 = vector.extract_strided_slice %39 {offsets = [6, 0], sizes = [243, 84], strides = [1, 1]} : vector<251x84xf32> to vector<243x84xf32>
    %c564 = arith.constant 564 : index
    %c0_23 = arith.constant 0 : index
    %55 = vector.load %arg2[%c564, %c0_23] : memref<1552x168xbf16, #tpu.memory_space<vmem>>, vector<84x160xbf16>
    %56 = arith.truncf %54 : vector<243x84xf32> to vector<243x84xbf16>
    %cst_24 = arith.constant dense<0.000000e+00> : vector<243x160xf32>
    %57 = tpu.matmul %56, %55, %cst_24 {dimension_numbers = #tpu.dot_dimension_numbers<[1], [0], [0], [1], [0, 0, 1, 1], [], []>} : vector<243x84xbf16>, vector<84x160xbf16>, vector<243x160xf32> -> vector<243x160xf32>
    %58 = arith.addf %53, %57 : vector<243x160xf32>
    %59 = vector.extract_strided_slice %39 {offsets = [8, 0], sizes = [243, 84], strides = [1, 1]} : vector<251x84xf32> to vector<243x84xf32>
    %c648 = arith.constant 648 : index
    %c0_25 = arith.constant 0 : index
    %60 = vector.load %arg2[%c648, %c0_25] : memref<1552x168xbf16, #tpu.memory_space<vmem>>, vector<84x160xbf16>
    %61 = arith.truncf %59 : vector<243x84xf32> to vector<243x84xbf16>
    %cst_26 = arith.constant dense<0.000000e+00> : vector<243x160xf32>
    %62 = tpu.matmul %61, %60, %cst_26 {dimension_numbers = #tpu.dot_dimension_numbers<[1], [0], [0], [1], [0, 0, 1, 1], [], []>} : vector<243x84xbf16>, vector<84x160xbf16>, vector<243x160xf32> -> vector<243x160xf32>
    %63 = arith.addf %58, %62 : vector<243x160xf32>
    %c1 = arith.constant 1 : index
    %c0_27 = arith.constant 0 : index
    %64 = vector.load %arg3[%c1, %c0_27] : memref<5x168xf32, #tpu.memory_space<vmem>>, vector<1x160xf32>
    %65 = vector.broadcast %64 : vector<1x160xf32> to vector<243x160xf32>
    %66 = arith.addf %63, %65 : vector<243x160xf32>
    %cst_28 = arith.constant 0.000000e+00 : f32
    %67 = vector.broadcast %cst_28 : f32 to vector<243x160xf32>
    %68 = arith.subf %67, %66 : vector<243x160xf32>
    %69 = math.exp %68 : vector<243x160xf32>
    %cst_29 = arith.constant 1.000000e+00 : f32
    %70 = vector.broadcast %cst_29 : f32 to vector<243x160xf32>
    %71 = arith.addf %70, %69 : vector<243x160xf32>
    %72 = tpu.reciprocal %71 {approx = true} : vector<243x160xf32> -> vector<243x160xf32>
    %c736 = arith.constant 736 : index
    %c0_30 = arith.constant 0 : index
    %73 = vector.load %arg2[%c736, %c0_30] : memref<1552x168xbf16, #tpu.memory_space<vmem>>, vector<160x80xbf16>
    %74 = arith.truncf %72 : vector<243x160xf32> to vector<243x160xbf16>
    %cst_31 = arith.constant dense<0.000000e+00> : vector<243x80xf32>
    %75 = tpu.matmul %74, %73, %cst_31 {dimension_numbers = #tpu.dot_dimension_numbers<[1], [0], [0], [1], [0, 0, 1, 1], [], []>} : vector<243x160xbf16>, vector<160x80xbf16>, vector<243x80xf32> -> vector<243x80xf32>
    %c0_32 = arith.constant 0 : index
    %c0_33 = arith.constant 0 : index
    %76 = vector.load %arg4[%c0_32, %c0_33] : memref<40x243xbf16, #tpu.memory_space<vmem>>, vector<40x243xbf16>
    %77 = arith.truncf %75 : vector<243x80xf32> to vector<243x80xbf16>
    %cst_34 = arith.constant dense<0.000000e+00> : vector<40x80xf32>
    %78 = tpu.matmul %76, %77, %cst_34 {dimension_numbers = #tpu.dot_dimension_numbers<[1], [0], [0], [1], [0, 0, 1, 1], [], []>} : vector<40x243xbf16>, vector<243x80xbf16>, vector<40x80xf32> -> vector<40x80xf32>
    %79 = vector.extract_strided_slice %78 {offsets = [0, 0], sizes = [8, 80], strides = [1, 1]} : vector<40x80xf32> to vector<8x80xf32>
    %c896 = arith.constant 896 : index
    %c0_35 = arith.constant 0 : index
    %80 = vector.load %arg2[%c896, %c0_35] : memref<1552x168xbf16, #tpu.memory_space<vmem>>, vector<80x128xbf16>
    %81 = arith.truncf %79 : vector<8x80xf32> to vector<8x80xbf16>
    %cst_36 = arith.constant dense<0.000000e+00> : vector<8x128xf32>
    %82 = tpu.matmul %81, %80, %cst_36 {dimension_numbers = #tpu.dot_dimension_numbers<[1], [0], [0], [1], [0, 0, 1, 1], [], []>} : vector<8x80xbf16>, vector<80x128xbf16>, vector<8x128xf32> -> vector<8x128xf32>
    %83 = vector.extract_strided_slice %78 {offsets = [8, 0], sizes = [8, 80], strides = [1, 1]} : vector<40x80xf32> to vector<8x80xf32>
    %c976 = arith.constant 976 : index
    %c0_37 = arith.constant 0 : index
    %84 = vector.load %arg2[%c976, %c0_37] : memref<1552x168xbf16, #tpu.memory_space<vmem>>, vector<80x128xbf16>
    %85 = arith.truncf %83 : vector<8x80xf32> to vector<8x80xbf16>
    %cst_38 = arith.constant dense<0.000000e+00> : vector<8x128xf32>
    %86 = tpu.matmul %85, %84, %cst_38 {dimension_numbers = #tpu.dot_dimension_numbers<[1], [0], [0], [1], [0, 0, 1, 1], [], []>} : vector<8x80xbf16>, vector<80x128xbf16>, vector<8x128xf32> -> vector<8x128xf32>
    %87 = arith.addf %82, %86 : vector<8x128xf32>
    %88 = vector.extract_strided_slice %78 {offsets = [16, 0], sizes = [8, 80], strides = [1, 1]} : vector<40x80xf32> to vector<8x80xf32>
    %c1056 = arith.constant 1056 : index
    %c0_39 = arith.constant 0 : index
    %89 = vector.load %arg2[%c1056, %c0_39] : memref<1552x168xbf16, #tpu.memory_space<vmem>>, vector<80x128xbf16>
    %90 = arith.truncf %88 : vector<8x80xf32> to vector<8x80xbf16>
    %cst_40 = arith.constant dense<0.000000e+00> : vector<8x128xf32>
    %91 = tpu.matmul %90, %89, %cst_40 {dimension_numbers = #tpu.dot_dimension_numbers<[1], [0], [0], [1], [0, 0, 1, 1], [], []>} : vector<8x80xbf16>, vector<80x128xbf16>, vector<8x128xf32> -> vector<8x128xf32>
    %92 = arith.addf %87, %91 : vector<8x128xf32>
    %93 = vector.extract_strided_slice %78 {offsets = [24, 0], sizes = [8, 80], strides = [1, 1]} : vector<40x80xf32> to vector<8x80xf32>
    %c1136 = arith.constant 1136 : index
    %c0_41 = arith.constant 0 : index
    %94 = vector.load %arg2[%c1136, %c0_41] : memref<1552x168xbf16, #tpu.memory_space<vmem>>, vector<80x128xbf16>
    %95 = arith.truncf %93 : vector<8x80xf32> to vector<8x80xbf16>
    %cst_42 = arith.constant dense<0.000000e+00> : vector<8x128xf32>
    %96 = tpu.matmul %95, %94, %cst_42 {dimension_numbers = #tpu.dot_dimension_numbers<[1], [0], [0], [1], [0, 0, 1, 1], [], []>} : vector<8x80xbf16>, vector<80x128xbf16>, vector<8x128xf32> -> vector<8x128xf32>
    %97 = arith.addf %92, %96 : vector<8x128xf32>
    %98 = vector.extract_strided_slice %78 {offsets = [32, 0], sizes = [8, 80], strides = [1, 1]} : vector<40x80xf32> to vector<8x80xf32>
    %c1216 = arith.constant 1216 : index
    %c0_43 = arith.constant 0 : index
    %99 = vector.load %arg2[%c1216, %c0_43] : memref<1552x168xbf16, #tpu.memory_space<vmem>>, vector<80x128xbf16>
    %100 = arith.truncf %98 : vector<8x80xf32> to vector<8x80xbf16>
    %cst_44 = arith.constant dense<0.000000e+00> : vector<8x128xf32>
    %101 = tpu.matmul %100, %99, %cst_44 {dimension_numbers = #tpu.dot_dimension_numbers<[1], [0], [0], [1], [0, 0, 1, 1], [], []>} : vector<8x80xbf16>, vector<80x128xbf16>, vector<8x128xf32> -> vector<8x128xf32>
    %102 = arith.addf %97, %101 : vector<8x128xf32>
    %c2 = arith.constant 2 : index
    %c0_45 = arith.constant 0 : index
    %103 = vector.load %arg3[%c2, %c0_45] : memref<5x168xf32, #tpu.memory_space<vmem>>, vector<1x128xf32>
    %104 = vector.broadcast %103 : vector<1x128xf32> to vector<8x128xf32>
    %105 = arith.addf %102, %104 : vector<8x128xf32>
    %cst_46 = arith.constant 0.000000e+00 : f32
    %106 = vector.broadcast %cst_46 : f32 to vector<8x128xf32>
    %107 = arith.subf %106, %105 : vector<8x128xf32>
    %108 = math.exp %107 : vector<8x128xf32>
    %cst_47 = arith.constant 1.000000e+00 : f32
    %109 = vector.broadcast %cst_47 : f32 to vector<8x128xf32>
    %110 = arith.addf %109, %108 : vector<8x128xf32>
    %111 = tpu.reciprocal %110 {approx = true} : vector<8x128xf32> -> vector<8x128xf32>
    %c1296 = arith.constant 1296 : index
    %c0_48 = arith.constant 0 : index
    %112 = vector.load %arg2[%c1296, %c0_48] : memref<1552x168xbf16, #tpu.memory_space<vmem>>, vector<128x128xbf16>
    %113 = arith.truncf %111 : vector<8x128xf32> to vector<8x128xbf16>
    %cst_49 = arith.constant dense<0.000000e+00> : vector<8x128xf32>
    %114 = tpu.matmul %113, %112, %cst_49 {dimension_numbers = #tpu.dot_dimension_numbers<[1], [0], [0], [1], [0, 0, 1, 1], [], []>} : vector<8x128xbf16>, vector<128x128xbf16>, vector<8x128xf32> -> vector<8x128xf32>
    %c3 = arith.constant 3 : index
    %c0_50 = arith.constant 0 : index
    %115 = vector.load %arg3[%c3, %c0_50] : memref<5x168xf32, #tpu.memory_space<vmem>>, vector<1x128xf32>
    %116 = vector.broadcast %115 : vector<1x128xf32> to vector<8x128xf32>
    %117 = arith.addf %114, %116 : vector<8x128xf32>
    %cst_51 = arith.constant 0.000000e+00 : f32
    %118 = vector.broadcast %cst_51 : f32 to vector<8x128xf32>
    %119 = arith.subf %118, %117 : vector<8x128xf32>
    %120 = math.exp %119 : vector<8x128xf32>
    %cst_52 = arith.constant 1.000000e+00 : f32
    %121 = vector.broadcast %cst_52 : f32 to vector<8x128xf32>
    %122 = arith.addf %121, %120 : vector<8x128xf32>
    %123 = tpu.reciprocal %122 {approx = true} : vector<8x128xf32> -> vector<8x128xf32>
    %c1424 = arith.constant 1424 : index
    %c0_53 = arith.constant 0 : index
    %124 = vector.load %arg2[%c1424, %c0_53] : memref<1552x168xbf16, #tpu.memory_space<vmem>>, vector<128x128xbf16>
    %125 = arith.truncf %123 : vector<8x128xf32> to vector<8x128xbf16>
    %cst_54 = arith.constant dense<0.000000e+00> : vector<8x128xf32>
    %126 = tpu.matmul %125, %124, %cst_54 {dimension_numbers = #tpu.dot_dimension_numbers<[1], [0], [0], [1], [0, 0, 1, 1], [], []>} : vector<8x128xbf16>, vector<128x128xbf16>, vector<8x128xf32> -> vector<8x128xf32>
    %c4 = arith.constant 4 : index
    %c0_55 = arith.constant 0 : index
    %127 = vector.load %arg3[%c4, %c0_55] : memref<5x168xf32, #tpu.memory_space<vmem>>, vector<1x128xf32>
    %128 = vector.broadcast %127 : vector<1x128xf32> to vector<8x128xf32>
    %129 = arith.addf %126, %128 : vector<8x128xf32>
    %c0_56 = arith.constant 0 : index
    %c0_57 = arith.constant 0 : index
    %130 = vector.load %arg5[%c0_56, %c0_57] : memref<8x128xf32, #tpu.memory_space<vmem>>, vector<8x128xf32>
    tpu.vector_store %arg5[%c0_56, %c0_57], %129 {strides = array<i32>} : memref<8x128xf32, #tpu.memory_space<vmem>>, vector<8x128xf32>,
    return
  }
  func.func @transform_0(%arg0: i32) -> (i32, i32) {
    %c0_i32 = arith.constant 0 : i32
    %c0_i32_0 = arith.constant 0 : i32
    return %arg0, %c0_i32 : i32, i32
  }
  func.func @transform_1(%arg0: i32) -> (i32, i32) {
    %c0_i32 = arith.constant 0 : i32
    %c0_i32_0 = arith.constant 0 : i32
    %c0_i32_1 = arith.constant 0 : i32
    return %c0_i32, %c0_i32_0 : i32, i32
  }
  func.func @transform_2(%arg0: i32) -> (i32, i32) {
    %c0_i32 = arith.constant 0 : i32
    %c0_i32_0 = arith.constant 0 : i32
    %c0_i32_1 = arith.constant 0 : i32
    return %c0_i32, %c0_i32_0 : i32, i32
  }
  func.func @transform_3(%arg0: i32) -> (i32, i32) {
    %c0_i32 = arith.constant 0 : i32
    %c0_i32_0 = arith.constant 0 : i32
    %c0_i32_1 = arith.constant 0 : i32
    return %c0_i32, %c0_i32_0 : i32, i32
  }
  func.func @transform_4(%arg0: i32) -> (i32, i32) {
    %c0_i32 = arith.constant 0 : i32
    %c0_i32_0 = arith.constant 0 : i32
    return %arg0, %c0_i32 : i32, i32
  }
}

</mosaic_0001>

<llo_original>
// kernel: lenet_forward.1
$region0: #{lenet_forward.1}
  #allocation0 [shape = 'u32[]', space=smem, size = 0x4, offset = 0x4, fixed_abs, tag = 'smem constant byte address 0x4 - core index']
  #allocation1 [shape = 'u32[144,128]{1,0:T(1,128)}', space=vmem, size = 0x12000, scoped, tag = 'internal scratch']
  %s0 = inlined_call_operand.vmem [shape: f32[256,28], index: 0, kind: input, shape index: {}]
  %s1 = inlined_call_operand.vmem [shape: bf16[1552,168], index: 1, kind: input, shape index: {}]
  %s2 = inlined_call_operand.vmem [shape: f32[5,168], index: 2, kind: input, shape index: {}]
  %s3 = inlined_call_operand.vmem [shape: bf16[40,243], index: 3, kind: input, shape index: {}]
  %s4 = inlined_call_operand.vmem [shape: f32[8,128], index: 4, kind: output, shape index: {}]
  %s5 = sld [smem:[#allocation0]]
  $region26: #{lenet_forward.1} parent=0
    _
  %s7 = ssub.s32 1, %s5
  %s8 = scalar_select 0, %s7, %s5
  // Predicated region
  $region2: #{lenet_forward.1} parent=0 // pred_check
    _
  $region3: #{lenet_forward.1} parent=0 // pred_check_branch
    %10 = sbr.rel (0) target = $region5
  $region4: #{lenet_forward.1} parent=0 // pred_region
    _
  $region5: #{lenet_forward.1} parent=0 // pred_fallthru
    _
  // Predicated region
  $region6: #{lenet_forward.1} parent=0 // pred_check
    _
  $region7: #{lenet_forward.1} parent=0 // pred_check_branch
    %12 = sbr.rel (0) target = $region9
  $region8: #{lenet_forward.1} parent=0 // pred_region
    _
  $region9: #{lenet_forward.1} parent=0 // pred_fallthru
    _
  // Predicated region
  $region10: #{lenet_forward.1} parent=0 // pred_check
    _
  $region11: #{lenet_forward.1} parent=0 // pred_check_branch
    %14 = sbr.rel (0) target = $region13
  $region12: #{lenet_forward.1} parent=0 // pred_region
    _
  $region13: #{lenet_forward.1} parent=0 // pred_fallthru
    _
  // Predicated region
  $region14: #{lenet_forward.1} parent=0 // pred_check
    _
  $region15: #{lenet_forward.1} parent=0 // pred_check_branch
    %16 = sbr.rel (0) target = $region17
  $region16: #{lenet_forward.1} parent=0 // pred_region
    _
  $region17: #{lenet_forward.1} parent=0 // pred_fallthru
    _
  %v18 = vld [vmem:[%s0] sm:$0xff]
  %v19 = vld [vmem:[%s0 + $0x8] sm:$0xff]
  %v20 = vld [vmem:[%s0 + $0x10] sm:$0xff]
  %v21 = vld [vmem:[%s0 + $0x18] sm:$0xff]
  %v22 = vld [vmem:[%s0 + $0x20] sm:$0xff]
  %v23 = vld [vmem:[%s0 + $0x28] sm:$0xff]
  %v24 = vld [vmem:[%s0 + $0x30] sm:$0xff]
  %v25 = vld [vmem:[%s0 + $0x38] sm:$0xff]
  %v26 = vld [vmem:[%s0 + $0x40] sm:$0xff]
  %v27 = vld [vmem:[%s0 + $0x48] sm:$0xff]
  %v28 = vld [vmem:[%s0 + $0x50] sm:$0xff]
  %v29 = vld [vmem:[%s0 + $0x58] sm:$0xff]
  %v30 = vld [vmem:[%s0 + $0x60] sm:$0xff]
  %v31 = vld [vmem:[%s0 + $0x68] sm:$0xff]
  %v32 = vld [vmem:[%s0 + $0x70] sm:$0xff]
  %v33 = vld [vmem:[%s0 + $0x78] sm:$0xff]
  %v34 = vld [vmem:[%s0 + $0x80] sm:$0xff]
  %v35 = vld [vmem:[%s0 + $0x88] sm:$0xff]
  %v36 = vld [vmem:[%s0 + $0x90] sm:$0xff]
  %v37 = vld [vmem:[%s0 + $0x98] sm:$0xff]
  %v38 = vld [vmem:[%s0 + $0xa0] sm:$0xff]
  %v39 = vld [vmem:[%s0 + $0xa8] sm:$0xff]
  %v40 = vld [vmem:[%s0 + $0xb0] sm:$0xff]
  %v41 = vld [vmem:[%s0 + $0xb8] sm:$0xff]
  %v42 = vld [vmem:[%s0 + $0xc0] sm:$0xff]
  %v43 = vld [vmem:[%s0 + $0xc8] sm:$0xff]
  %v44 = vld [vmem:[%s0 + $0xd0] sm:$0xff]
  %v45 = vld [vmem:[%s0 + $0xd8] sm:$0xff]
  %v46 = vld [vmem:[%s0 + $0xe0] sm:$0xff]
  %v47 = vld [vmem:[%s0 + $0xe8] sm:$0xff]
  %v48 = vld [vmem:[%s0 + $0xf0] sm:$0xff]
  %v49 = vld [vmem:[%s0 + $0xf8] sm:$0xff]
  %v50 = vld [vmem:[%s1] sm:$0xff]
  %v51 = vld [vmem:[%s1 + $0x8] sm:$0xff]
  %v52 = vld [vmem:[%s1 + $0x10] sm:$0xff]
  %v53 = vld [vmem:[%s1 + $0x18] sm:$0x33]
  %v54 = vpack.c.bf16 %v19, %v18
  %v55 = vpack.c.bf16 %v21, %v20
  %v56 = vpack.c.bf16 %v23, %v22
  %v57 = vpack.c.bf16 %v25, %v24
  %v58 = vpack.c.bf16 %v27, %v26
  %v59 = vpack.c.bf16 %v29, %v28
  %v60 = vpack.c.bf16 %v31, %v30
  %v61 = vpack.c.bf16 %v33, %v32
  %v62 = vpack.c.bf16 %v35, %v34
  %v63 = vpack.c.bf16 %v37, %v36
  %v64 = vpack.c.bf16 %v39, %v38
  %v65 = vpack.c.bf16 %v41, %v40
  %v66 = vpack.c.bf16 %v43, %v42
  %v67 = vpack.c.bf16 %v45, %v44
  %v68 = vpack.c.bf16 %v47, %v46
  %v69 = vpack.c.bf16 %v49, %v48
  %v70 = vld [vmem:[%s1 + $0x18] sm:$0xcc]
  %v71 = vld [vmem:[%s1 + $0x20] sm:$0xff]
  %v72 = vld [vmem:[%s1 + $0x28] sm:$0xff]
  %v73 = vld [vmem:[%s1 + $0x30] sm:$0xff]
  %vm74 = vsmask.f32 7424
  %v76 = vshrl.u32 %v54, 16
  %v78 = vshll.u32 %v54, 16
  %v80 = vrot.slane %v78, 1
  %v81 = vor.u32 %v76, %v80
  %v83 = vshll.u32 %v55, 16
  %v85 = vrot.slane %v83, 1
  %v86 = vsel %vm74, %v81, %v85
  %v87 = vshrl.u32 %v55, 16
  %v89 = vor.u32 %v87, %v85
  %v91 = vshll.u32 %v56, 16
  %v93 = vrot.slane %v91, 1
  %v94 = vsel %vm74, %v89, %v93
  %v95 = vshrl.u32 %v56, 16
  %v97 = vor.u32 %v95, %v93
  %v99 = vshll.u32 %v57, 16
  %v101 = vrot.slane %v99, 1
  %v102 = vsel %vm74, %v97, %v101
  %v103 = vshrl.u32 %v57, 16
  %v105 = vor.u32 %v103, %v101
  %v107 = vshll.u32 %v58, 16
  %v109 = vrot.slane %v107, 1
  %v110 = vsel %vm74, %v105, %v109
  %v111 = vshrl.u32 %v58, 16
  %v113 = vor.u32 %v111, %v109
  %v115 = vshll.u32 %v59, 16
  %v117 = vrot.slane %v115, 1
  %v118 = vsel %vm74, %v113, %v117
  %v119 = vshrl.u32 %v59, 16
  %v121 = vor.u32 %v119, %v117
  %v123 = vshll.u32 %v60, 16
  %v125 = vrot.slane %v123, 1
  %v126 = vsel %vm74, %v121, %v125
  %v127 = vshrl.u32 %v60, 16
  %v129 = vor.u32 %v127, %v125
  %v131 = vshll.u32 %v61, 16
  %v133 = vrot.slane %v131, 1
  %v134 = vsel %vm74, %v129, %v133
  %v135 = vshrl.u32 %v61, 16
  %v137 = vor.u32 %v135, %v133
  %v139 = vshll.u32 %v62, 16
  %v141 = vrot.slane %v139, 1
  %v142 = vsel %vm74, %v137, %v141
  %v143 = vshrl.u32 %v62, 16
  %v145 = vor.u32 %v143, %v141
  %v147 = vshll.u32 %v63, 16
  %v149 = vrot.slane %v147, 1
  %v150 = vsel %vm74, %v145, %v149
  %v151 = vshrl.u32 %v63, 16
  %v153 = vor.u32 %v151, %v149
  %v155 = vshll.u32 %v64, 16
  %v157 = vrot.slane %v155, 1
  %v158 = vsel %vm74, %v153, %v157
  %v159 = vshrl.u32 %v64, 16
  %v161 = vor.u32 %v159, %v157
  %v163 = vshll.u32 %v65, 16
  %v165 = vrot.slane %v163, 1
  %v166 = vsel %vm74, %v161, %v165
  %v167 = vshrl.u32 %v65, 16
  %v169 = vor.u32 %v167, %v165
  %v171 = vshll.u32 %v66, 16
  %v173 = vrot.slane %v171, 1
  %v174 = vsel %vm74, %v169, %v173
  %v175 = vshrl.u32 %v66, 16
  %v177 = vor.u32 %v175, %v173
  %v179 = vshll.u32 %v67, 16
  %v181 = vrot.slane %v179, 1
  %v182 = vsel %vm74, %v177, %v181
  %v183 = vshrl.u32 %v67, 16
  %v185 = vor.u32 %v183, %v181
  %v187 = vshll.u32 %v68, 16
  %v189 = vrot.slane %v187, 1
  %v190 = vsel %vm74, %v185, %v189
  %v191 = vshrl.u32 %v68, 16
  %v193 = vor.u32 %v191, %v189
  %v195 = vshll.u32 %v69, 16
  %v197 = vrot.slane %v195, 1
  %v198 = vsel %vm74, %v193, %v197
  %v199 = vshrl.u32 %v69, 16
  %v201 = vor.u32 %v199, %v197
  %v206 = vunpack.c.l.b16 %v70
  %v207 = vunpack.c.h.b16 %v70
  %v208 = vunpack.c.l.b16 %v71
  %v209 = vunpack.c.h.b16 %v71
  %v210 = vunpack.c.l.b16 %v72
  %v211 = vunpack.c.h.b16 %v72
  %v212 = vunpack.c.l.b16 %v73
  %v213 = vunpack.c.h.b16 %v73
  %v214 = vpack.c.b16 %v208, %v206
  %v215 = vpack.c.b16 %v209, %v207
  %v216 = vpack.c.b16 %v212, %v210
  %v217 = vpack.c.b16 %v213, %v211
  %vm218 = vcmask 1045504
  %v219 = vrot.slane %v214, 2
  %v220 = vrot.slane %v216, 2
  %v221 = vsel %vm218, %v219, %v220
  %v222 = vrot.slane %v215, 2
  %v223 = vrot.slane %v217, 2
  %v224 = vsel %vm218, %v222, %v223
  %vm227 = vcmask 228352
  %v229 = vsel %vm227, %v86, 0
  %v232 = vsel %vm227, %v94, 0
  %v235 = vsel %vm227, %v102, 0
  %v238 = vsel %vm227, %v110, 0
  %v241 = vsel %vm227, %v118, 0
  %v244 = vsel %vm227, %v126, 0
  %v247 = vsel %vm227, %v134, 0
  %v250 = vsel %vm227, %v142, 0
  %v253 = vsel %vm227, %v150, 0
  %v256 = vsel %vm227, %v158, 0
  %v259 = vsel %vm227, %v166, 0
  %v262 = vsel %vm227, %v174, 0
  %v265 = vsel %vm227, %v182, 0
  %v268 = vsel %vm227, %v190, 0
  %v271 = vsel %vm227, %v198, 0
  %v274 = vsel %vm227, %v201, 0
  %vm276 = vcmask 1045504
  %v278 = vsel %vm276, %v220, 0
  %v281 = vsel %vm276, %v223, 0
  %283 = vmatprep.subr.bf16.mxu0 %v224
  %284 = vmatpush1.bf16.msra.mxu0 %v221
  %285 = vmatprep.subr.bf16.mxu0 %v281
  %286 = vmatpush1.bf16.msra.mxu0 %v278
  %287 = vmatprep.subr.bf16.mxu0 0
  %288 = vmatpush1.bf16.msra.mxu0 0
  %289 = vmatprep.subr.bf16.mxu0 0
  %290 = vmatpush1.bf16.msra.mxu0 0
  %291 = vmatprep.subr.bf16.mxu0 0
  %292 = vmatpush1.bf16.msra.mxu0 0
  %293 = vmatprep.subr.bf16.mxu0 0
  %294 = vmatpush1.bf16.msra.mxu0 0
  %295 = vmatprep.subr.bf16.mxu0 0
  %296 = vmatpush1.bf16.msra.mxu0 0
  %297 = vmatprep.subr.bf16.mxu0 0
  %298 = vmatpush1.bf16.msra.mxu0 0
  %299 = vmatprep.subr.bf16.mxu0 0
  %300 = vmatpush1.bf16.msra.mxu0 0
  %301 = vmatprep.subr.bf16.mxu0 0
  %302 = vmatpush1.bf16.msra.mxu0 0
  %303 = vmatprep.subr.bf16.mxu0 0
  %304 = vmatpush1.bf16.msra.mxu0 0
  %305 = vmatprep.subr.bf16.mxu0 0
  %306 = vmatpush1.bf16.msra.mxu0 0
  %307 = vmatprep.subr.bf16.mxu0 0
  %308 = vmatpush1.bf16.msra.mxu0 0
  %309 = vmatprep.subr.bf16.mxu0 0
  %310 = vmatpush1.bf16.msra.mxu0 0
  %311 = vmatprep.subr.bf16.mxu0 0
  %312 = vmatpush1.bf16.msra.mxu0 0
  %313 = vmatprep.subr.bf16.mxu0 0
  %314 = vmatpush1.bf16.msra.mxu0 0
  %315 = vmatprep.mubr.bf16.mxu0 0
  %316 = vmatmul.mubr.bf16.gmra.mrb[0].mxu0 %v229
  %v317 = vpop.f32.mrb[0].mxu0
  %v318 = vadd.f32 0.0, %v317
  %v319 = vpop.f32.mrb[0].mxu0
  %v320 = vadd.f32 0.0, %v319
  %v321 = vpop.f32.mrb[0].mxu0
  %v322 = vadd.f32 0.0, %v321
  %v323 = vpop.f32.mrb[0].mxu0
  %v324 = vadd.f32 0.0, %v323
  %325 = vmatprep.mubr.bf16.mxu0 0
  %326 = vmatmul.mubr.bf16.gmra.mrb[0].mxu0 %v232
  %v327 = vpop.f32.mrb[0].mxu0
  %v328 = vadd.f32 0.0, %v327
  %v329 = vpop.f32.mrb[0].mxu0
  %v330 = vadd.f32 0.0, %v329
  %v331 = vpop.f32.mrb[0].mxu0
  %v332 = vadd.f32 0.0, %v331
  %v333 = vpop.f32.mrb[0].mxu0
  %v334 = vadd.f32 0.0, %v333
  %335 = vmatprep.mubr.bf16.mxu0 0
  %336 = vmatmul.mubr.bf16.gmra.mrb[0].mxu0 %v235
  %v337 = vpop.f32.mrb[0].mxu0
  %v338 = vadd.f32 0.0, %v337
  %v339 = vpop.f32.mrb[0].mxu0
  %v340 = vadd.f32 0.0, %v339
  %v341 = vpop.f32.mrb[0].mxu0
  %v342 = vadd.f32 0.0, %v341
  %v343 = vpop.f32.mrb[0].mxu0
  %v344 = vadd.f32 0.0, %v343
  %345 = vmatprep.mubr.bf16.mxu0 0
  %346 = vmatmul.mubr.bf16.gmra.mrb[0].mxu0 %v238
  %v347 = vpop.f32.mrb[0].mxu0
  %v348 = vadd.f32 0.0, %v347
  %v349 = vpop.f32.mrb[0].mxu0
  %v350 = vadd.f32 0.0, %v349
  %v351 = vpop.f32.mrb[0].mxu0
  %v352 = vadd.f32 0.0, %v351
  %v353 = vpop.f32.mrb[0].mxu0
  %v354 = vadd.f32 0.0, %v353
  %355 = vmatprep.mubr.bf16.mxu0 0
  %356 = vmatmul.mubr.bf16.gmra.mrb[0].mxu0 %v241
  %v357 = vpop.f32.mrb[0].mxu0
  %v358 = vadd.f32 0.0, %v357
  %v359 = vpop.f32.mrb[0].mxu0
  %v360 = vadd.f32 0.0, %v359
  %v361 = vpop.f32.mrb[0].mxu0
  %v362 = vadd.f32 0.0, %v361
  %v363 = vpop.f32.mrb[0].mxu0
  %v364 = vadd.f32 0.0, %v363
  %365 = vmatprep.mubr.bf16.mxu0 0
  %366 = vmatmul.mubr.bf16.gmra.mrb[0].mxu0 %v244
  %v367 = vpop.f32.mrb[0].mxu0
  %v368 = vadd.f32 0.0, %v367
  %v369 = vpop.f32.mrb[0].mxu0
  %v370 = vadd.f32 0.0, %v369
  %v371 = vpop.f32.mrb[0].mxu0
  %v372 = vadd.f32 0.0, %v371
  %v373 = vpop.f32.mrb[0].mxu0
  %v374 = vadd.f32 0.0, %v373
  %375 = vmatprep.mubr.bf16.mxu0 0
  %376 = vmatmul.mubr.bf16.gmra.mrb[0].mxu0 %v247
  %v377 = vpop.f32.mrb[0].mxu0
  %v378 = vadd.f32 0.0, %v377
  %v379 = vpop.f32.mrb[0].mxu0
  %v380 = vadd.f32 0.0, %v379
  %v381 = vpop.f32.mrb[0].mxu0
  %v382 = vadd.f32 0.0, %v381
  %v383 = vpop.f32.mrb[0].mxu0
  %v384 = vadd.f32 0.0, %v383
  %385 = vmatprep.mubr.bf16.mxu0 0
  %386 = vmatmul.mubr.bf16.gmra.mrb[0].mxu0 %v250
  %v387 = vpop.f32.mrb[0].mxu0
  %v388 = vadd.f32 0.0, %v387
  %v389 = vpop.f32.mrb[0].mxu0
  %v390 = vadd.f32 0.0, %v389
  %v391 = vpop.f32.mrb[0].mxu0
  %v392 = vadd.f32 0.0, %v391
  %v393 = vpop.f32.mrb[0].mxu0
  %v394 = vadd.f32 0.0, %v393
  %395 = vmatprep.mubr.bf16.mxu0 0
  %396 = vmatmul.mubr.bf16.gmra.mrb[0].mxu0 %v253
  %v397 = vpop.f32.mrb[0].mxu0
  %v398 = vadd.f32 0.0, %v397
  %v399 = vpop.f32.mrb[0].mxu0
  %v400 = vadd.f32 0.0, %v399
  %v401 = vpop.f32.mrb[0].mxu0
  %v402 = vadd.f32 0.0, %v401
  %v403 = vpop.f32.mrb[0].mxu0
  %v404 = vadd.f32 0.0, %v403
  %405 = vmatprep.mubr.bf16.mxu0 0
  %406 = vmatmul.mubr.bf16.gmra.mrb[0].mxu0 %v256
  %v407 = vpop.f32.mrb[0].mxu0
  %v408 = vadd.f32 0.0, %v407
  %v409 = vpop.f32.mrb[0].mxu0
  %v410 = vadd.f32 0.0, %v409
  %v411 = vpop.f32.mrb[0].mxu0
  %v412 = vadd.f32 0.0, %v411
  %v413 = vpop.f32.mrb[0].mxu0
  %v414 = vadd.f32 0.0, %v413
  %415 = vmatprep.mubr.bf16.mxu0 0
  %416 = vmatmul.mubr.bf16.gmra.mrb[0].mxu0 %v259
  %v417 = vpop.f32.mrb[0].mxu0
  %v418 = vadd.f32 0.0, %v417
  %v419 = vpop.f32.mrb[0].mxu0
  %v420 = vadd.f32 0.0, %v419
  %v421 = vpop.f32.mrb[0].mxu0
  %v422 = vadd.f32 0.0, %v421
  %v423 = vpop.f32.mrb[0].mxu0
  %v424 = vadd.f32 0.0, %v423
  %425 = vmatprep.mubr.bf16.mxu0 0
  %426 = vmatmul.mubr.bf16.gmra.mrb[0].mxu0 %v262
  %v427 = vpop.f32.mrb[0].mxu0
  %v428 = vadd.f32 0.0, %v427
  %v429 = vpop.f32.mrb[0].mxu0
  %v430 = vadd.f32 0.0, %v429
  %v431 = vpop.f32.mrb[0].mxu0
  %v432 = vadd.f32 0.0, %v431
  %v433 = vpop.f32.mrb[0].mxu0
  %v434 = vadd.f32 0.0, %v433
  %435 = vmatprep.mubr.bf16.mxu0 0
  %436 = vmatmul.mubr.bf16.gmra.mrb[0].mxu0 %v265
  %v437 = vpop.f32.mrb[0].mxu0
  %v438 = vadd.f32 0.0, %v437
  %v439 = vpop.f32.mrb[0].mxu0
  %v440 = vadd.f32 0.0, %v439
  %v441 = vpop.f32.mrb[0].mxu0
  %v442 = vadd.f32 0.0, %v441
  %v443 = vpop.f32.mrb[0].mxu0
  %v444 = vadd.f32 0.0, %v443
  %445 = vmatprep.mubr.bf16.mxu0 0
  %446 = vmatmul.mubr.bf16.gmra.mrb[0].mxu0 %v268
  %v447 = vpop.f32.mrb[0].mxu0
  %v448 = vadd.f32 0.0, %v447
  %v449 = vpop.f32.mrb[0].mxu0
  %v450 = vadd.f32 0.0, %v449
  %v451 = vpop.f32.mrb[0].mxu0
  %v452 = vadd.f32 0.0, %v451
  %v453 = vpop.f32.mrb[0].mxu0
  %v454 = vadd.f32 0.0, %v453
  %455 = vmatprep.mubr.bf16.mxu0 0
  %456 = vmatmul.mubr.bf16.gmra.mrb[0].mxu0 %v271
  %v457 = vpop.f32.mrb[0].mxu0
  %v458 = vadd.f32 0.0, %v457
  %v459 = vpop.f32.mrb[0].mxu0
  %v460 = vadd.f32 0.0, %v459
  %v461 = vpop.f32.mrb[0].mxu0
  %v462 = vadd.f32 0.0, %v461
  %v463 = vpop.f32.mrb[0].mxu0
  %v464 = vadd.f32 0.0, %v463
  %465 = vmatprep.mubr.bf16.mxu0 0
  %466 = vmatmul.mubr.bf16.gmra.mrb[0].mxu0 %v274
  %v467 = vpop.f32.mrb[0].mxu0
  %v468 = vadd.f32 0.0, %v467
  %v469 = vpop.f32.mrb[0].mxu0
  %v470 = vadd.f32 0.0, %v469
  %v471 = vpop.f32.mrb[0].mxu0
  %v472 = vadd.f32 0.0, %v471
  %v473 = vpop.f32.mrb[0].mxu0
  %v474 = vadd.f32 0.0, %v473
  %475 = vdwg.mxu0
  %v480 = vunpack.c.l.b16 %v50
  %v481 = vunpack.c.h.b16 %v50
  %v482 = vunpack.c.l.b16 %v51
  %v483 = vunpack.c.h.b16 %v51
  %v484 = vunpack.c.l.b16 %v52
  %v485 = vunpack.c.h.b16 %v52
  %v486 = vunpack.c.l.b16 %v53
  %v487 = vunpack.c.h.b16 %v53
  %v488 = vpack.c.b16 %v482, %v480
  %v489 = vpack.c.b16 %v483, %v481
  %v490 = vpack.c.b16 %v486, %v484
  %v491 = vpack.c.b16 %v487, %v485
  %v494 = vsel %vm227, %v54, 0
  %v496 = vsel %vm227, %v55, 0
  %v498 = vsel %vm227, %v56, 0
  %v500 = vsel %vm227, %v57, 0
  %v502 = vsel %vm227, %v58, 0
  %v504 = vsel %vm227, %v59, 0
  %v506 = vsel %vm227, %v60, 0
  %v508 = vsel %vm227, %v61, 0
  %v510 = vsel %vm227, %v62, 0
  %v512 = vsel %vm227, %v63, 0
  %v514 = vsel %vm227, %v64, 0
  %v516 = vsel %vm227, %v65, 0
  %v518 = vsel %vm227, %v66, 0
  %v520 = vsel %vm227, %v67, 0
  %v522 = vsel %vm227, %v68, 0
  %v524 = vsel %vm227, %v69, 0
  %v527 = vsel %vm276, %v490, 0
  %v530 = vsel %vm276, %v491, 0
  %532 = vmatprep.subr.bf16.mxu0 %v489
  %533 = vmatpush1.bf16.msra.mxu0 %v488
  %534 = vmatprep.subr.bf16.mxu0 %v530
  %535 = vmatpush1.bf16.msra.mxu0 %v527
  %536 = vmatprep.subr.bf16.mxu0 0
  %537 = vmatpush1.bf16.msra.mxu0 0
  %538 = vmatprep.subr.bf16.mxu0 0
  %539 = vmatpush1.bf16.msra.mxu0 0
  %540 = vmatprep.subr.bf16.mxu0 0
  %541 = vmatpush1.bf16.msra.mxu0 0
  %542 = vmatprep.subr.bf16.mxu0 0
  %543 = vmatpush1.bf16.msra.mxu0 0
  %544 = vmatprep.subr.bf16.mxu0 0
  %545 = vmatpush1.bf16.msra.mxu0 0
  %546 = vmatprep.subr.bf16.mxu0 0
  %547 = vmatpush1.bf16.msra.mxu0 0
  %548 = vmatprep.subr.bf16.mxu0 0
  %549 = vmatpush1.bf16.msra.mxu0 0
  %550 = vmatprep.subr.bf16.mxu0 0
  %551 = vmatpush1.bf16.msra.mxu0 0
  %552 = vmatprep.subr.bf16.mxu0 0
  %553 = vmatpush1.bf16.msra.mxu0 0
  %554 = vmatprep.subr.bf16.mxu0 0
  %555 = vmatpush1.bf16.msra.mxu0 0
  %556 = vmatprep.subr.bf16.mxu0 0
  %557 = vmatpush1.bf16.msra.mxu0 0
  %558 = vmatprep.subr.bf16.mxu0 0
  %559 = vmatpush1.bf16.msra.mxu0 0
  %560 = vmatprep.subr.bf16.mxu0 0
  %561 = vmatpush1.bf16.msra.mxu0 0
  %562 = vmatprep.subr.bf16.mxu0 0
  %563 = vmatpush1.bf16.msra.mxu0 0
  %564 = vmatprep.mubr.bf16.mxu0 0
  %565 = vmatmul.mubr.bf16.gmra.mrb[0].mxu0 %v494
  %v566 = vpop.f32.mrb[0].mxu0
  %v567 = vadd.f32 %v318, %v566
  %v568 = vpop.f32.mrb[0].mxu0
  %v569 = vadd.f32 %v320, %v568
  %v570 = vpop.f32.mrb[0].mxu0
  %v571 = vadd.f32 %v322, %v570
  %v572 = vpop.f32.mrb[0].mxu0
  %v573 = vadd.f32 %v324, %v572
  %574 = vmatprep.mubr.bf16.mxu0 0
  %575 = vmatmul.mubr.bf16.gmra.mrb[0].mxu0 %v496
  %v576 = vpop.f32.mrb[0].mxu0
  %v577 = vadd.f32 %v328, %v576
  %v578 = vpop.f32.mrb[0].mxu0
  %v579 = vadd.f32 %v330, %v578
  %v580 = vpop.f32.mrb[0].mxu0
  %v581 = vadd.f32 %v332, %v580
  %v582 = vpop.f32.mrb[0].mxu0
  %v583 = vadd.f32 %v334, %v582
  %584 = vmatprep.mubr.bf16.mxu0 0
  %585 = vmatmul.mubr.bf16.gmra.mrb[0].mxu0 %v498
  %v586 = vpop.f32.mrb[0].mxu0
  %v587 = vadd.f32 %v338, %v586
  %v588 = vpop.f32.mrb[0].mxu0
  %v589 = vadd.f32 %v340, %v588
  %v590 = vpop.f32.mrb[0].mxu0
  %v591 = vadd.f32 %v342, %v590
  %v592 = vpop.f32.mrb[0].mxu0
  %v593 = vadd.f32 %v344, %v592
  %594 = vmatprep.mubr.bf16.mxu0 0
  %595 = vmatmul.mubr.bf16.gmra.mrb[0].mxu0 %v500
  %v596 = vpop.f32.mrb[0].mxu0
  %v597 = vadd.f32 %v348, %v596
  %v598 = vpop.f32.mrb[0].mxu0
  %v599 = vadd.f32 %v350, %v598
  %v600 = vpop.f32.mrb[0].mxu0
  %v601 = vadd.f32 %v352, %v600
  %v602 = vpop.f32.mrb[0].mxu0
  %v603 = vadd.f32 %v354, %v602
  %604 = vmatprep.mubr.bf16.mxu0 0
  %605 = vmatmul.mubr.bf16.gmra.mrb[0].mxu0 %v502
  %v606 = vpop.f32.mrb[0].mxu0
  %v607 = vadd.f32 %v358, %v606
  %v608 = vpop.f32.mrb[0].mxu0
  %v609 = vadd.f32 %v360, %v608
  %v610 = vpop.f32.mrb[0].mxu0
  %v611 = vadd.f32 %v362, %v610
  %v612 = vpop.f32.mrb[0].mxu0
  %v613 = vadd.f32 %v364, %v612
  %614 = vmatprep.mubr.bf16.mxu0 0
  %615 = vmatmul.mubr.bf16.gmra.mrb[0].mxu0 %v504
  %v616 = vpop.f32.mrb[0].mxu0
  %v617 = vadd.f32 %v368, %v616
  %v618 = vpop.f32.mrb[0].mxu0
  %v619 = vadd.f32 %v370, %v618
  %v620 = vpop.f32.mrb[0].mxu0
  %v621 = vadd.f32 %v372, %v620
  %v622 = vpop.f32.mrb[0].mxu0
  %v623 = vadd.f32 %v374, %v622
  %624 = vmatprep.mubr.bf16.mxu0 0
  %625 = vmatmul.mubr.bf16.gmra.mrb[0].mxu0 %v506
  %v626 = vpop.f32.mrb[0].mxu0
  %v627 = vadd.f32 %v378, %v626
  %v628 = vpop.f32.mrb[0].mxu0
  %v629 = vadd.f32 %v380, %v628
  %v630 = vpop.f32.mrb[0].mxu0
  %v631 = vadd.f32 %v382, %v630
  %v632 = vpop.f32.mrb[0].mxu0
  %v633 = vadd.f32 %v384, %v632
  %634 = vmatprep.mubr.bf16.mxu0 0
  %635 = vmatmul.mubr.bf16.gmra.mrb[0].mxu0 %v508
  %v636 = vpop.f32.mrb[0].mxu0
  %v637 = vadd.f32 %v388, %v636
  %v638 = vpop.f32.mrb[0].mxu0
  %v639 = vadd.f32 %v390, %v638
  %v640 = vpop.f32.mrb[0].mxu0
  %v641 = vadd.f32 %v392, %v640
  %v642 = vpop.f32.mrb[0].mxu0
  %v643 = vadd.f32 %v394, %v642
  %644 = vmatprep.mubr.bf16.mxu0 0
  %645 = vmatmul.mubr.bf16.gmra.mrb[0].mxu0 %v510
  %v646 = vpop.f32.mrb[0].mxu0
  %v647 = vadd.f32 %v398, %v646
  %v648 = vpop.f32.mrb[0].mxu0
  %v649 = vadd.f32 %v400, %v648
  %v650 = vpop.f32.mrb[0].mxu0
  %v651 = vadd.f32 %v402, %v650
  %v652 = vpop.f32.mrb[0].mxu0
  %v653 = vadd.f32 %v404, %v652
  %654 = vmatprep.mubr.bf16.mxu0 0
  %655 = vmatmul.mubr.bf16.gmra.mrb[0].mxu0 %v512
  %v656 = vpop.f32.mrb[0].mxu0
  %v657 = vadd.f32 %v408, %v656
  %v658 = vpop.f32.mrb[0].mxu0
  %v659 = vadd.f32 %v410, %v658
  %v660 = vpop.f32.mrb[0].mxu0
  %v661 = vadd.f32 %v412, %v660
  %v662 = vpop.f32.mrb[0].mxu0
  %v663 = vadd.f32 %v414, %v662
  %664 = vmatprep.mubr.bf16.mxu0 0
  %665 = vmatmul.mubr.bf16.gmra.mrb[0].mxu0 %v514
  %v666 = vpop.f32.mrb[0].mxu0
  %v667 = vadd.f32 %v418, %v666
  %v668 = vpop.f32.mrb[0].mxu0
  %v669 = vadd.f32 %v420, %v668
  %v670 = vpop.f32.mrb[0].mxu0
  %v671 = vadd.f32 %v422, %v670
  %v672 = vpop.f32.mrb[0].mxu0
  %v673 = vadd.f32 %v424, %v672
  %674 = vmatprep.mubr.bf16.mxu0 0
  %675 = vmatmul.mubr.bf16.gmra.mrb[0].mxu0 %v516
  %v676 = vpop.f32.mrb[0].mxu0
  %v677 = vadd.f32 %v428, %v676
  %v678 = vpop.f32.mrb[0].mxu0
  %v679 = vadd.f32 %v430, %v678
  %v680 = vpop.f32.mrb[0].mxu0
  %v681 = vadd.f32 %v432, %v680
  %v682 = vpop.f32.mrb[0].mxu0
  %v683 = vadd.f32 %v434, %v682
  %684 = vmatprep.mubr.bf16.mxu0 0
  %685 = vmatmul.mubr.bf16.gmra.mrb[0].mxu0 %v518
  %v686 = vpop.f32.mrb[0].mxu0
  %v687 = vadd.f32 %v438, %v686
  %v688 = vpop.f32.mrb[0].mxu0
  %v689 = vadd.f32 %v440, %v688
  %v690 = vpop.f32.mrb[0].mxu0
  %v691 = vadd.f32 %v442, %v690
  %v692 = vpop.f32.mrb[0].mxu0
  %v693 = vadd.f32 %v444, %v692
  %694 = vmatprep.mubr.bf16.mxu0 0
  %695 = vmatmul.mubr.bf16.gmra.mrb[0].mxu0 %v520
  %v696 = vpop.f32.mrb[0].mxu0
  %v697 = vadd.f32 %v448, %v696
  %v698 = vpop.f32.mrb[0].mxu0
  %v699 = vadd.f32 %v450, %v698
  %v700 = vpop.f32.mrb[0].mxu0
  %v701 = vadd.f32 %v452, %v700
  %v702 = vpop.f32.mrb[0].mxu0
  %v703 = vadd.f32 %v454, %v702
  %704 = vmatprep.mubr.bf16.mxu0 0
  %705 = vmatmul.mubr.bf16.gmra.mrb[0].mxu0 %v522
  %v706 = vpop.f32.mrb[0].mxu0
  %v707 = vadd.f32 %v458, %v706
  %v708 = vpop.f32.mrb[0].mxu0
  %v709 = vadd.f32 %v460, %v708
  %v710 = vpop.f32.mrb[0].mxu0
  %v711 = vadd.f32 %v462, %v710
  %v712 = vpop.f32.mrb[0].mxu0
  %v713 = vadd.f32 %v464, %v712
  %714 = vmatprep.mubr.bf16.mxu0 0
  %715 = vmatmul.mubr.bf16.gmra.mrb[0].mxu0 %v524
  %v716 = vpop.f32.mrb[0].mxu0
  %v717 = vadd.f32 %v468, %v716
  %v718 = vpop.f32.mrb[0].mxu0
  %v719 = vadd.f32 %v470, %v718
  %v720 = vpop.f32.mrb[0].mxu0
  %v721 = vadd.f32 %v472, %v720
  %v722 = vpop.f32.mrb[0].mxu0
  %v723 = vadd.f32 %v474, %v722
  %724 = vdwg.mxu0
  %v725 = vld [vmem:[%s1 + $0x38] sm:$0xff]
  %v726 = vld [vmem:[%s1 + $0x40] sm:$0xff]
  %v727 = vld [vmem:[%s1 + $0x48] sm:$0xff]
  %v728 = vld [vmem:[%s1 + $0x50] sm:$0x33]
  %vm745 = vcmask 1046528
  %v746 = vrot.slane %v54, 1
  %v747 = vrot.slane %v55, 1
  %v748 = vsel %vm745, %v746, %v747
  %v749 = vrot.slane %v56, 1
  %v750 = vsel %vm745, %v747, %v749
  %v751 = vrot.slane %v57, 1
  %v752 = vsel %vm745, %v749, %v751
  %v753 = vrot.slane %v58, 1
  %v754 = vsel %vm745, %v751, %v753
  %v755 = vrot.slane %v59, 1
  %v756 = vsel %vm745, %v753, %v755
  %v757 = vrot.slane %v60, 1
  %v758 = vsel %vm745, %v755, %v757
  %v759 = vrot.slane %v61, 1
  %v760 = vsel %vm745, %v757, %v759
  %v761 = vrot.slane %v62, 1
  %v762 = vsel %vm745, %v759, %v761
  %v763 = vrot.slane %v63, 1
  %v764 = vsel %vm745, %v761, %v763
  %v765 = vrot.slane %v64, 1
  %v766 = vsel %vm745, %v763, %v765
  %v767 = vrot.slane %v65, 1
  %v768 = vsel %vm745, %v765, %v767
  %v769 = vrot.slane %v66, 1
  %v770 = vsel %vm745, %v767, %v769
  %v771 = vrot.slane %v67, 1
  %v772 = vsel %vm745, %v769, %v771
  %v773 = vrot.slane %v68, 1
  %v774 = vsel %vm745, %v771, %v773
  %v775 = vrot.slane %v69, 1
  %v776 = vsel %vm745, %v773, %v775
  %v781 = vunpack.c.l.b16 %v725
  %v782 = vunpack.c.h.b16 %v725
  %v783 = vunpack.c.l.b16 %v726
  %v784 = vunpack.c.h.b16 %v726
  %v785 = vunpack.c.l.b16 %v727
  %v786 = vunpack.c.h.b16 %v727
  %v787 = vunpack.c.l.b16 %v728
  %v788 = vunpack.c.h.b16 %v728
  %v789 = vpack.c.b16 %v783, %v781
  %v790 = vpack.c.b16 %v784, %v782
  %v791 = vpack.c.b16 %v787, %v785
  %v792 = vpack.c.b16 %v788, %v786
  %v796 = vsel %vm227, %v748, 0
  %v799 = vsel %vm227, %v750, 0
  %v802 = vsel %vm227, %v752, 0
  %v805 = vsel %vm227, %v754, 0
  %v808 = vsel %vm227, %v756, 0
  %v811 = vsel %vm227, %v758, 0
  %v814 = vsel %vm227, %v760, 0
  %v817 = vsel %vm227, %v762, 0
  %v820 = vsel %vm227, %v764, 0
  %v823 = vsel %vm227, %v766, 0
  %v826 = vsel %vm227, %v768, 0
  %v829 = vsel %vm227, %v770, 0
  %v832 = vsel %vm227, %v772, 0
  %v835 = vsel %vm227, %v774, 0
  %v838 = vsel %vm227, %v776, 0
  %v841 = vsel %vm227, %v775, 0
  %v844 = vsel %vm276, %v791, 0
  %v847 = vsel %vm276, %v792, 0
  %849 = vmatprep.subr.bf16.mxu0 %v790
  %850 = vmatpush1.bf16.msra.mxu0 %v789
  %851 = vmatprep.subr.bf16.mxu0 %v847
  %852 = vmatpush1.bf16.msra.mxu0 %v844
  %853 = vmatprep.subr.bf16.mxu0 0
  %854 = vmatpush1.bf16.msra.mxu0 0
  %855 = vmatprep.subr.bf16.mxu0 0
  %856 = vmatpush1.bf16.msra.mxu0 0
  %857 = vmatprep.subr.bf16.mxu0 0
  %858 = vmatpush1.bf16.msra.mxu0 0
  %859 = vmatprep.subr.bf16.mxu0 0
  %860 = vmatpush1.bf16.msra.mxu0 0
  %861 = vmatprep.subr.bf16.mxu0 0
  %862 = vmatpush1.bf16.msra.mxu0 0
  %863 = vmatprep.subr.bf16.mxu0 0
  %864 = vmatpush1.bf16.msra.mxu0 0
  %865 = vmatprep.subr.bf16.mxu0 0
  %866 = vmatpush1.bf16.msra.mxu0 0
  %867 = vmatprep.subr.bf16.mxu0 0
  %868 = vmatpush1.bf16.msra.mxu0 0
  %869 = vmatprep.subr.bf16.mxu0 0
  %870 = vmatpush1.bf16.msra.mxu0 0
  %871 = vmatprep.subr.bf16.mxu0 0
  %872 = vmatpush1.bf16.msra.mxu0 0
  %873 = vmatprep.subr.bf16.mxu0 0
  %874 = vmatpush1.bf16.msra.mxu0 0
  %875 = vmatprep.subr.bf16.mxu0 0
  %876 = vmatpush1.bf16.msra.mxu0 0
  %877 = vmatprep.subr.bf16.mxu0 0
  %878 = vmatpush1.bf16.msra.mxu0 0
  %879 = vmatprep.subr.bf16.mxu0 0
  %880 = vmatpush1.bf16.msra.mxu0 0
  %881 = vmatprep.mubr.bf16.mxu0 0
  %882 = vmatmul.mubr.bf16.gmra.mrb[0].mxu0 %v796
  %v883 = vpop.f32.mrb[0].mxu0
  %v884 = vadd.f32 0.0, %v883
  %v885 = vpop.f32.mrb[0].mxu0
  %v886 = vadd.f32 0.0, %v885
  %v887 = vpop.f32.mrb[0].mxu0
  %v888 = vadd.f32 0.0, %v887
  %v889 = vpop.f32.mrb[0].mxu0
  %v890 = vadd.f32 0.0, %v889
  %891 = vmatprep.mubr.bf16.mxu0 0
  %892 = vmatmul.mubr.bf16.gmra.mrb[0].mxu0 %v799
  %v893 = vpop.f32.mrb[0].mxu0
  %v894 = vadd.f32 0.0, %v893
  %v895 = vpop.f32.mrb[0].mxu0
  %v896 = vadd.f32 0.0, %v895
  %v897 = vpop.f32.mrb[0].mxu0
  %v898 = vadd.f32 0.0, %v897
  %v899 = vpop.f32.mrb[0].mxu0
  %v900 = vadd.f32 0.0, %v899
  %901 = vmatprep.mubr.bf16.mxu0 0
  %902 = vmatmul.mubr.bf16.gmra.mrb[0].mxu0 %v802
  %v903 = vpop.f32.mrb[0].mxu0
  %v904 = vadd.f32 0.0, %v903
  %v905 = vpop.f32.mrb[0].mxu0
  %v906 = vadd.f32 0.0, %v905
  %v907 = vpop.f32.mrb[0].mxu0
  %v908 = vadd.f32 0.0, %v907
  %v909 = vpop.f32.mrb[0].mxu0
  %v910 = vadd.f32 0.0, %v909
  %911 = vmatprep.mubr.bf16.mxu0 0
  %912 = vmatmul.mubr.bf16.gmra.mrb[0].mxu0 %v805
  %v913 = vpop.f32.mrb[0].mxu0
  %v914 = vadd.f32 0.0, %v913
  %v915 = vpop.f32.mrb[0].mxu0
  %v916 = vadd.f32 0.0, %v915
  %v917 = vpop.f32.mrb[0].mxu0
  %v918 = vadd.f32 0.0, %v917
  %v919 = vpop.f32.mrb[0].mxu0
  %v920 = vadd.f32 0.0, %v919
  %921 = vmatprep.mubr.bf16.mxu0 0
  %922 = vmatmul.mubr.bf16.gmra.mrb[0].mxu0 %v808
  %v923 = vpop.f32.mrb[0].mxu0
  %v924 = vadd.f32 0.0, %v923
  %v925 = vpop.f32.mrb[0].mxu0
  %v926 = vadd.f32 0.0, %v925
  %v927 = vpop.f32.mrb[0].mxu0
  %v928 = vadd.f32 0.0, %v927
  %v929 = vpop.f32.mrb[0].mxu0
  %v930 = vadd.f32 0.0, %v929
  %931 = vmatprep.mubr.bf16.mxu0 0
  %932 = vmatmul.mubr.bf16.gmra.mrb[0].mxu0 %v811
  %v933 = vpop.f32.mrb[0].mxu0
  %v934 = vadd.f32 0.0, %v933
  %v935 = vpop.f32.mrb[0].mxu0
  %v936 = vadd.f32 0.0, %v935
  %v937 = vpop.f32.mrb[0].mxu0
  %v938 = vadd.f32 0.0, %v937
  %v939 = vpop.f32.mrb[0].mxu0
  %v940 = vadd.f32 0.0, %v939
  %941 = vmatprep.mubr.bf16.mxu0 0
  %942 = vmatmul.mubr.bf16.gmra.mrb[0].mxu0 %v814
  %v943 = vpop.f32.mrb[0].mxu0
  %v944 = vadd.f32 0.0, %v943
  %v945 = vpop.f32.mrb[0].mxu0
  %v946 = vadd.f32 0.0, %v945
  %v947 = vpop.f32.mrb[0].mxu0
  %v948 = vadd.f32 0.0, %v947
  %v949 = vpop.f32.mrb[0].mxu0
  %v950 = vadd.f32 0.0, %v949
  %951 = vmatprep.mubr.bf16.mxu0 0
  %952 = vmatmul.mubr.bf16.gmra.mrb[0].mxu0 %v817
  %v953 = vpop.f32.mrb[0].mxu0
  %v954 = vadd.f32 0.0, %v953
  %v955 = vpop.f32.mrb[0].mxu0
  %v956 = vadd.f32 0.0, %v955
  %v957 = vpop.f32.mrb[0].mxu0
  %v958 = vadd.f32 0.0, %v957
  %v959 = vpop.f32.mrb[0].mxu0
  %v960 = vadd.f32 0.0, %v959
  %961 = vmatprep.mubr.bf16.mxu0 0
  %962 = vmatmul.mubr.bf16.gmra.mrb[0].mxu0 %v820
  %v963 = vpop.f32.mrb[0].mxu0
  %v964 = vadd.f32 0.0, %v963
  %v965 = vpop.f32.mrb[0].mxu0
  %v966 = vadd.f32 0.0, %v965
  %v967 = vpop.f32.mrb[0].mxu0
  %v968 = vadd.f32 0.0, %v967
  %v969 = vpop.f32.mrb[0].mxu0
  %v970 = vadd.f32 0.0, %v969
  %971 = vmatprep.mubr.bf16.mxu0 0
  %972 = vmatmul.mubr.bf16.gmra.mrb[0].mxu0 %v823
  %v973 = vpop.f32.mrb[0].mxu0
  %v974 = vadd.f32 0.0, %v973
  %v975 = vpop.f32.mrb[0].mxu0
  %v976 = vadd.f32 0.0, %v975
  %v977 = vpop.f32.mrb[0].mxu0
  %v978 = vadd.f32 0.0, %v977
  %v979 = vpop.f32.mrb[0].mxu0
  %v980 = vadd.f32 0.0, %v979
  %981 = vmatprep.mubr.bf16.mxu0 0
  %982 = vmatmul.mubr.bf16.gmra.mrb[0].mxu0 %v826
  %v983 = vpop.f32.mrb[0].mxu0
  %v984 = vadd.f32 0.0, %v983
  %v985 = vpop.f32.mrb[0].mxu0
  %v986 = vadd.f32 0.0, %v985
  %v987 = vpop.f32.mrb[0].mxu0
  %v988 = vadd.f32 0.0, %v987
  %v989 = vpop.f32.mrb[0].mxu0
  %v990 = vadd.f32 0.0, %v989
  %991 = vmatprep.mubr.bf16.mxu0 0
  %992 = vmatmul.mubr.bf16.gmra.mrb[0].mxu0 %v829
  %v993 = vpop.f32.mrb[0].mxu0
  %v994 = vadd.f32 0.0, %v993
  %v995 = vpop.f32.mrb[0].mxu0
  %v996 = vadd.f32 0.0, %v995
  %v997 = vpop.f32.mrb[0].mxu0
  %v998 = vadd.f32 0.0, %v997
  %v999 = vpop.f32.mrb[0].mxu0
  %v1000 = vadd.f32 0.0, %v999
  %1001 = vmatprep.mubr.bf16.mxu0 0
  %1002 = vmatmul.mubr.bf16.gmra.mrb[0].mxu0 %v832
  %v1003 = vpop.f32.mrb[0].mxu0
  %v1004 = vadd.f32 0.0, %v1003
  %v1005 = vpop.f32.mrb[0].mxu0
  %v1006 = vadd.f32 0.0, %v1005
  %v1007 = vpop.f32.mrb[0].mxu0
  %v1008 = vadd.f32 0.0, %v1007
  %v1009 = vpop.f32.mrb[0].mxu0
  %v1010 = vadd.f32 0.0, %v1009
  %1011 = vmatprep.mubr.bf16.mxu0 0
  %1012 = vmatmul.mubr.bf16.gmra.mrb[0].mxu0 %v835
  %v1013 = vpop.f32.mrb[0].mxu0
  %v1014 = vadd.f32 0.0, %v1013
  %v1015 = vpop.f32.mrb[0].mxu0
  %v1016 = vadd.f32 0.0, %v1015
  %v1017 = vpop.f32.mrb[0].mxu0
  %v1018 = vadd.f32 0.0, %v1017
  %v1019 = vpop.f32.mrb[0].mxu0
  %v1020 = vadd.f32 0.0, %v1019
  %1021 = vmatprep.mubr.bf16.mxu0 0
  %1022 = vmatmul.mubr.bf16.gmra.mrb[0].mxu0 %v838
  %v1023 = vpop.f32.mrb[0].mxu0
  %v1024 = vadd.f32 0.0, %v1023
  %v1025 = vpop.f32.mrb[0].mxu0
  %v1026 = vadd.f32 0.0, %v1025
  %v1027 = vpop.f32.mrb[0].mxu0
  %v1028 = vadd.f32 0.0, %v1027
  %v1029 = vpop.f32.mrb[0].mxu0
  %v1030 = vadd.f32 0.0, %v1029
  %1031 = vmatprep.mubr.bf16.mxu0 0
  %1032 = vmatmul.mubr.bf16.gmra.mrb[0].mxu0 %v841
  %v1033 = vpop.f32.mrb[0].mxu0
  %v1034 = vadd.f32 0.0, %v1033
  %v1035 = vpop.f32.mrb[0].mxu0
  %v1036 = vadd.f32 0.0, %v1035
  %v1037 = vpop.f32.mrb[0].mxu0
  %v1038 = vadd.f32 0.0, %v1037
  %v1039 = vpop.f32.mrb[0].mxu0
  %v1040 = vadd.f32 0.0, %v1039
  %1041 = vdwg.mxu0
  %v1042 = vadd.f32 %v567, %v884
  %v1043 = vadd.f32 %v569, %v886
  %v1044 = vadd.f32 %v571, %v888
  %v1045 = vadd.f32 %v573, %v890
  %v1046 = vadd.f32 %v577, %v894
  %v1047 = vadd.f32 %v579, %v896
  %v1048 = vadd.f32 %v581, %v898
  %v1049 = vadd.f32 %v583, %v900
  %v1050 = vadd.f32 %v587, %v904
  %v1051 = vadd.f32 %v589, %v906
  %v1052 = vadd.f32 %v591, %v908
  %v1053 = vadd.f32 %v593, %v910
  %v1054 = vadd.f32 %v597, %v914
  %v1055 = vadd.f32 %v599, %v916
  %v1056 = vadd.f32 %v601, %v918
  %v1057 = vadd.f32 %v603, %v920
  %v1058 = vadd.f32 %v607, %v924
  %v1059 = vadd.f32 %v609, %v926
  %v1060 = vadd.f32 %v611, %v928
  %v1061 = vadd.f32 %v613, %v930
  %v1062 = vadd.f32 %v617, %v934
  %v1063 = vadd.f32 %v619, %v936
  %v1064 = vadd.f32 %v621, %v938
  %v1065 = vadd.f32 %v623, %v940
  %v1066 = vadd.f32 %v627, %v944
  %v1067 = vadd.f32 %v629, %v946
  %v1068 = vadd.f32 %v631, %v948
  %v1069 = vadd.f32 %v633, %v950
  %v1070 = vadd.f32 %v637, %v954
  %v1071 = vadd.f32 %v639, %v956
  %v1072 = vadd.f32 %v641, %v958
  %v1073 = vadd.f32 %v643, %v960
  %v1074 = vadd.f32 %v647, %v964
  %v1075 = vadd.f32 %v649, %v966
  %v1076 = vadd.f32 %v651, %v968
  %v1077 = vadd.f32 %v653, %v970
  %v1078 = vadd.f32 %v657, %v974
  %v1079 = vadd.f32 %v659, %v976
  %v1080 = vadd.f32 %v661, %v978
  %v1081 = vadd.f32 %v663, %v980
  %v1082 = vadd.f32 %v667, %v984
  %v1083 = vadd.f32 %v669, %v986
  %v1084 = vadd.f32 %v671, %v988
  %v1085 = vadd.f32 %v673, %v990
  %v1086 = vadd.f32 %v677, %v994
  %v1087 = vadd.f32 %v679, %v996
  %v1088 = vadd.f32 %v681, %v998
  %v1089 = vadd.f32 %v683, %v1000
  %v1090 = vadd.f32 %v687, %v1004
  %v1091 = vadd.f32 %v689, %v1006
  %v1092 = vadd.f32 %v691, %v1008
  %v1093 = vadd.f32 %v693, %v1010
  %v1094 = vadd.f32 %v697, %v1014
  %v1095 = vadd.f32 %v699, %v1016
  %v1096 = vadd.f32 %v701, %v1018
  %v1097 = vadd.f32 %v703, %v1020
  %v1098 = vadd.f32 %v707, %v1024
  %v1099 = vadd.f32 %v709, %v1026
  %v1100 = vadd.f32 %v711, %v1028
  %v1101 = vadd.f32 %v713, %v1030
  %v1102 = vadd.f32 %v717, %v1034
  %v1103 = vadd.f32 %v719, %v1036
  %v1104 = vadd.f32 %v721, %v1038
  %v1105 = vadd.f32 %v723, %v1040
  %v1106 = vld [vmem:[%s1 + $0x50] sm:$0xcc]
  %v1107 = vld [vmem:[%s1 + $0x58] sm:$0xff]
  %v1108 = vld [vmem:[%s1 + $0x60] sm:$0xff]
  %v1109 = vld [vmem:[%s1 + $0x68] sm:$0xff]
  %vm1110 = vsmask.f32 6400
  %v1111 = vrot.slane %v76, 1
  %v1112 = vrot.slane %v78, 2
  %v1113 = vor.u32 %v1111, %v1112
  %v1114 = vrot.slane %v87, 1
  %v1115 = vrot.slane %v83, 2
  %v1116 = vor.u32 %v1114, %v1115
  %v1117 = vsel %vm1110, %v1113, %v1116
  %v1118 = vrot.slane %v95, 1
  %v1119 = vrot.slane %v91, 2
  %v1120 = vor.u32 %v1118, %v1119
  %v1121 = vsel %vm1110, %v1116, %v1120
  %v1122 = vrot.slane %v103, 1
  %v1123 = vrot.slane %v99, 2
  %v1124 = vor.u32 %v1122, %v1123
  %v1125 = vsel %vm1110, %v1120, %v1124
  %v1126 = vrot.slane %v111, 1
  %v1127 = vrot.slane %v107, 2
  %v1128 = vor.u32 %v1126, %v1127
  %v1129 = vsel %vm1110, %v1124, %v1128
  %v1130 = vrot.slane %v119, 1
  %v1131 = vrot.slane %v115, 2
  %v1132 = vor.u32 %v1130, %v1131
  %v1133 = vsel %vm1110, %v1128, %v1132
  %v1134 = vrot.slane %v127, 1
  %v1135 = vrot.slane %v123, 2
  %v1136 = vor.u32 %v1134, %v1135
  %v1137 = vsel %vm1110, %v1132, %v1136
  %v1138 = vrot.slane %v135, 1
  %v1139 = vrot.slane %v131, 2
  %v1140 = vor.u32 %v1138, %v1139
  %v1141 = vsel %vm1110, %v1136, %v1140
  %v1142 = vrot.slane %v143, 1
  %v1143 = vrot.slane %v139, 2
  %v1144 = vor.u32 %v1142, %v1143
  %v1145 = vsel %vm1110, %v1140, %v1144
  %v1146 = vrot.slane %v151, 1
  %v1147 = vrot.slane %v147, 2
  %v1148 = vor.u32 %v1146, %v1147
  %v1149 = vsel %vm1110, %v1144, %v1148
  %v1150 = vrot.slane %v159, 1
  %v1151 = vrot.slane %v155, 2
  %v1152 = vor.u32 %v1150, %v1151
  %v1153 = vsel %vm1110, %v1148, %v1152
  %v1154 = vrot.slane %v167, 1
  %v1155 = vrot.slane %v163, 2
  %v1156 = vor.u32 %v1154, %v1155
  %v1157 = vsel %vm1110, %v1152, %v1156
  %v1158 = vrot.slane %v175, 1
  %v1159 = vrot.slane %v171, 2
  %v1160 = vor.u32 %v1158, %v1159
  %v1161 = vsel %vm1110, %v1156, %v1160
  %v1162 = vrot.slane %v183, 1
  %v1163 = vrot.slane %v179, 2
  %v1164 = vor.u32 %v1162, %v1163
  %v1165 = vsel %vm1110, %v1160, %v1164
  %v1166 = vrot.slane %v191, 1
  %v1167 = vrot.slane %v187, 2
  %v1168 = vor.u32 %v1166, %v1167
  %v1169 = vsel %vm1110, %v1164, %v1168
  %v1170 = vrot.slane %v199, 1
  %v1171 = vrot.slane %v195, 2
  %v1172 = vor.u32 %v1170, %v1171
  %v1173 = vsel %vm1110, %v1168, %v1172
  %v1178 = vunpack.c.l.b16 %v1106
  %v1179 = vunpack.c.h.b16 %v1106
  %v1180 = vunpack.c.l.b16 %v1107
  %v1181 = vunpack.c.h.b16 %v1107
  %v1182 = vunpack.c.l.b16 %v1108
  %v1183 = vunpack.c.h.b16 %v1108
  %v1184 = vunpack.c.l.b16 %v1109
  %v1185 = vunpack.c.h.b16 %v1109
  %v1186 = vpack.c.b16 %v1180, %v1178
  %v1187 = vpack.c.b16 %v1181, %v1179
  %v1188 = vpack.c.b16 %v1184, %v1182
  %v1189 = vpack.c.b16 %v1185, %v1183
  %v1190 = vrot.slane %v1186, 2
  %v1191 = vrot.slane %v1188, 2
  %v1192 = vsel %vm218, %v1190, %v1191
  %v1193 = vrot.slane %v1187, 2
  %v1194 = vrot.slane %v1189, 2
  %v1195 = vsel %vm218, %v1193, %v1194
  %v1199 = vsel %vm227, %v1117, 0
  %v1202 = vsel %vm227, %v1121, 0
  %v1205 = vsel %vm227, %v1125, 0
  %v1208 = vsel %vm227, %v1129, 0
  %v1211 = vsel %vm227, %v1133, 0
  %v1214 = vsel %vm227, %v1137, 0
  %v1217 = vsel %vm227, %v1141, 0
  %v1220 = vsel %vm227, %v1145, 0
  %v1223 = vsel %vm227, %v1149, 0
  %v1226 = vsel %vm227, %v1153, 0
  %v1229 = vsel %vm227, %v1157, 0
  %v1232 = vsel %vm227, %v1161, 0
  %v1235 = vsel %vm227, %v1165, 0
  %v1238 = vsel %vm227, %v1169, 0
  %v1241 = vsel %vm227, %v1173, 0
  %v1244 = vsel %vm227, %v1172, 0
  %v1247 = vsel %vm276, %v1191, 0
  %v1250 = vsel %vm276, %v1194, 0
  %1252 = vmatprep.subr.bf16.mxu0 %v1195
  %1253 = vmatpush1.bf16.msra.mxu0 %v1192
  %1254 = vmatprep.subr.bf16.mxu0 %v1250
  %1255 = vmatpush1.bf16.msra.mxu0 %v1247
  %1256 = vmatprep.subr.bf16.mxu0 0
  %1257 = vmatpush1.bf16.msra.mxu0 0
  %1258 = vmatprep.subr.bf16.mxu0 0
  %1259 = vmatpush1.bf16.msra.mxu0 0
  %1260 = vmatprep.subr.bf16.mxu0 0
  %1261 = vmatpush1.bf16.msra.mxu0 0
  %1262 = vmatprep.subr.bf16.mxu0 0
  %1263 = vmatpush1.bf16.msra.mxu0 0
  %1264 = vmatprep.subr.bf16.mxu0 0
  %1265 = vmatpush1.bf16.msra.mxu0 0
  %1266 = vmatprep.subr.bf16.mxu0 0
  %1267 = vmatpush1.bf16.msra.mxu0 0
  %1268 = vmatprep.subr.bf16.mxu0 0
  %1269 = vmatpush1.bf16.msra.mxu0 0
  %1270 = vmatprep.subr.bf16.mxu0 0
  %1271 = vmatpush1.bf16.msra.mxu0 0
  %1272 = vmatprep.subr.bf16.mxu0 0
  %1273 = vmatpush1.bf16.msra.mxu0 0
  %1274 = vmatprep.subr.bf16.mxu0 0
  %1275 = vmatpush1.bf16.msra.mxu0 0
  %1276 = vmatprep.subr.bf16.mxu0 0
  %1277 = vmatpush1.bf16.msra.mxu0 0
  %1278 = vmatprep.subr.bf16.mxu0 0
  %1279 = vmatpush1.bf16.msra.mxu0 0
  %1280 = vmatprep.subr.bf16.mxu0 0
  %1281 = vmatpush1.bf16.msra.mxu0 0
  %1282 = vmatprep.subr.bf16.mxu0 0
  %1283 = vmatpush1.bf16.msra.mxu0 0
  %1284 = vmatprep.mubr.bf16.mxu0 0
  %1285 = vmatmul.mubr.bf16.gmra.mrb[0].mxu0 %v1199
  %v1286 = vpop.f32.mrb[0].mxu0
  %v1287 = vadd.f32 0.0, %v1286
  %v1288 = vpop.f32.mrb[0].mxu0
  %v1289 = vadd.f32 0.0, %v1288
  %v1290 = vpop.f32.mrb[0].mxu0
  %v1291 = vadd.f32 0.0, %v1290
  %v1292 = vpop.f32.mrb[0].mxu0
  %v1293 = vadd.f32 0.0, %v1292
  %1294 = vmatprep.mubr.bf16.mxu0 0
  %1295 = vmatmul.mubr.bf16.gmra.mrb[0].mxu0 %v1202
  %v1296 = vpop.f32.mrb[0].mxu0
  %v1297 = vadd.f32 0.0, %v1296
  %v1298 = vpop.f32.mrb[0].mxu0
  %v1299 = vadd.f32 0.0, %v1298
  %v1300 = vpop.f32.mrb[0].mxu0
  %v1301 = vadd.f32 0.0, %v1300
  %v1302 = vpop.f32.mrb[0].mxu0
  %v1303 = vadd.f32 0.0, %v1302
  %1304 = vmatprep.mubr.bf16.mxu0 0
  %1305 = vmatmul.mubr.bf16.gmra.mrb[0].mxu0 %v1205
  %v1306 = vpop.f32.mrb[0].mxu0
  %v1307 = vadd.f32 0.0, %v1306
  %v1308 = vpop.f32.mrb[0].mxu0
  %v1309 = vadd.f32 0.0, %v1308
  %v1310 = vpop.f32.mrb[0].mxu0
  %v1311 = vadd.f32 0.0, %v1310
  %v1312 = vpop.f32.mrb[0].mxu0
  %v1313 = vadd.f32 0.0, %v1312
  %1314 = vmatprep.mubr.bf16.mxu0 0
  %1315 = vmatmul.mubr.bf16.gmra.mrb[0].mxu0 %v1208
  %v1316 = vpop.f32.mrb[0].mxu0
  %v1317 = vadd.f32 0.0, %v1316
  %v1318 = vpop.f32.mrb[0].mxu0
  %v1319 = vadd.f32 0.0, %v1318
  %v1320 = vpop.f32.mrb[0].mxu0
  %v1321 = vadd.f32 0.0, %v1320
  %v1322 = vpop.f32.mrb[0].mxu0
  %v1323 = vadd.f32 0.0, %v1322
  %1324 = vmatprep.mubr.bf16.mxu0 0
  %1325 = vmatmul.mubr.bf16.gmra.mrb[0].mxu0 %v1211
  %v1326 = vpop.f32.mrb[0].mxu0
  %v1327 = vadd.f32 0.0, %v1326
  %v1328 = vpop.f32.mrb[0].mxu0
  %v1329 = vadd.f32 0.0, %v1328
  %v1330 = vpop.f32.mrb[0].mxu0
  %v1331 = vadd.f32 0.0, %v1330
  %v1332 = vpop.f32.mrb[0].mxu0
  %v1333 = vadd.f32 0.0, %v1332
  %1334 = vmatprep.mubr.bf16.mxu0 0
  %1335 = vmatmul.mubr.bf16.gmra.mrb[0].mxu0 %v1214
  %v1336 = vpop.f32.mrb[0].mxu0
  %v1337 = vadd.f32 0.0, %v1336
  %v1338 = vpop.f32.mrb[0].mxu0
  %v1339 = vadd.f32 0.0, %v1338
  %v1340 = vpop.f32.mrb[0].mxu0
  %v1341 = vadd.f32 0.0, %v1340
  %v1342 = vpop.f32.mrb[0].mxu0
  %v1343 = vadd.f32 0.0, %v1342
  %1344 = vmatprep.mubr.bf16.mxu0 0
  %1345 = vmatmul.mubr.bf16.gmra.mrb[0].mxu0 %v1217
  %v1346 = vpop.f32.mrb[0].mxu0
  %v1347 = vadd.f32 0.0, %v1346
  %v1348 = vpop.f32.mrb[0].mxu0
  %v1349 = vadd.f32 0.0, %v1348
  %v1350 = vpop.f32.mrb[0].mxu0
  %v1351 = vadd.f32 0.0, %v1350
  %v1352 = vpop.f32.mrb[0].mxu0
  %v1353 = vadd.f32 0.0, %v1352
  %1354 = vmatprep.mubr.bf16.mxu0 0
  %1355 = vmatmul.mubr.bf16.gmra.mrb[0].mxu0 %v1220
  %v1356 = vpop.f32.mrb[0].mxu0
  %v1357 = vadd.f32 0.0, %v1356
  %v1358 = vpop.f32.mrb[0].mxu0
  %v1359 = vadd.f32 0.0, %v1358
  %v1360 = vpop.f32.mrb[0].mxu0
  %v1361 = vadd.f32 0.0, %v1360
  %v1362 = vpop.f32.mrb[0].mxu0
  %v1363 = vadd.f32 0.0, %v1362
  %1364 = vmatprep.mubr.bf16.mxu0 0
  %1365 = vmatmul.mubr.bf16.gmra.mrb[0].mxu0 %v1223
  %v1366 = vpop.f32.mrb[0].mxu0
  %v1367 = vadd.f32 0.0, %v1366
  %v1368 = vpop.f32.mrb[0].mxu0
  %v1369 = vadd.f32 0.0, %v1368
  %v1370 = vpop.f32.mrb[0].mxu0
  %v1371 = vadd.f32 0.0, %v1370
  %v1372 = vpop.f32.mrb[0].mxu0
  %v1373 = vadd.f32 0.0, %v1372
  %1374 = vmatprep.mubr.bf16.mxu0 0
  %1375 = vmatmul.mubr.bf16.gmra.mrb[0].mxu0 %v1226
  %v1376 = vpop.f32.mrb[0].mxu0
  %v1377 = vadd.f32 0.0, %v1376
  %v1378 = vpop.f32.mrb[0].mxu0
  %v1379 = vadd.f32 0.0, %v1378
  %v1380 = vpop.f32.mrb[0].mxu0
  %v1381 = vadd.f32 0.0, %v1380
  %v1382 = vpop.f32.mrb[0].mxu0
  %v1383 = vadd.f32 0.0, %v1382
  %1384 = vmatprep.mubr.bf16.mxu0 0
  %1385 = vmatmul.mubr.bf16.gmra.mrb[0].mxu0 %v1229
  %v1386 = vpop.f32.mrb[0].mxu0
  %v1387 = vadd.f32 0.0, %v1386
  %v1388 = vpop.f32.mrb[0].mxu0
  %v1389 = vadd.f32 0.0, %v1388
  %v1390 = vpop.f32.mrb[0].mxu0
  %v1391 = vadd.f32 0.0, %v1390
  %v1392 = vpop.f32.mrb[0].mxu0
  %v1393 = vadd.f32 0.0, %v1392
  %1394 = vmatprep.mubr.bf16.mxu0 0
  %1395 = vmatmul.mubr.bf16.gmra.mrb[0].mxu0 %v1232
  %v1396 = vpop.f32.mrb[0].mxu0
  %v1397 = vadd.f32 0.0, %v1396
  %v1398 = vpop.f32.mrb[0].mxu0
  %v1399 = vadd.f32 0.0, %v1398
  %v1400 = vpop.f32.mrb[0].mxu0
  %v1401 = vadd.f32 0.0, %v1400
  %v1402 = vpop.f32.mrb[0].mxu0
  %v1403 = vadd.f32 0.0, %v1402
  %1404 = vmatprep.mubr.bf16.mxu0 0
  %1405 = vmatmul.mubr.bf16.gmra.mrb[0].mxu0 %v1235
  %v1406 = vpop.f32.mrb[0].mxu0
  %v1407 = vadd.f32 0.0, %v1406
  %v1408 = vpop.f32.mrb[0].mxu0
  %v1409 = vadd.f32 0.0, %v1408
  %v1410 = vpop.f32.mrb[0].mxu0
  %v1411 = vadd.f32 0.0, %v1410
  %v1412 = vpop.f32.mrb[0].mxu0
  %v1413 = vadd.f32 0.0, %v1412
  %1414 = vmatprep.mubr.bf16.mxu0 0
  %1415 = vmatmul.mubr.bf16.gmra.mrb[0].mxu0 %v1238
  %v1416 = vpop.f32.mrb[0].mxu0
  %v1417 = vadd.f32 0.0, %v1416
  %v1418 = vpop.f32.mrb[0].mxu0
  %v1419 = vadd.f32 0.0, %v1418
  %v1420 = vpop.f32.mrb[0].mxu0
  %v1421 = vadd.f32 0.0, %v1420
  %v1422 = vpop.f32.mrb[0].mxu0
  %v1423 = vadd.f32 0.0, %v1422
  %1424 = vmatprep.mubr.bf16.mxu0 0
  %1425 = vmatmul.mubr.bf16.gmra.mrb[0].mxu0 %v1241
  %v1426 = vpop.f32.mrb[0].mxu0
  %v1427 = vadd.f32 0.0, %v1426
  %v1428 = vpop.f32.mrb[0].mxu0
  %v1429 = vadd.f32 0.0, %v1428
  %v1430 = vpop.f32.mrb[0].mxu0
  %v1431 = vadd.f32 0.0, %v1430
  %v1432 = vpop.f32.mrb[0].mxu0
  %v1433 = vadd.f32 0.0, %v1432
  %1434 = vmatprep.mubr.bf16.mxu0 0
  %1435 = vmatmul.mubr.bf16.gmra.mrb[0].mxu0 %v1244
  %v1436 = vpop.f32.mrb[0].mxu0
  %v1437 = vadd.f32 0.0, %v1436
  %v1438 = vpop.f32.mrb[0].mxu0
  %v1439 = vadd.f32 0.0, %v1438
  %v1440 = vpop.f32.mrb[0].mxu0
  %v1441 = vadd.f32 0.0, %v1440
  %v1442 = vpop.f32.mrb[0].mxu0
  %v1443 = vadd.f32 0.0, %v1442
  %1444 = vdwg.mxu0
  %v1445 = vadd.f32 %v1042, %v1287
  %v1446 = vadd.f32 %v1043, %v1289
  %v1447 = vadd.f32 %v1044, %v1291
  %v1448 = vadd.f32 %v1045, %v1293
  %v1449 = vadd.f32 %v1046, %v1297
  %v1450 = vadd.f32 %v1047, %v1299
  %v1451 = vadd.f32 %v1048, %v1301
  %v1452 = vadd.f32 %v1049, %v1303
  %v1453 = vadd.f32 %v1050, %v1307
  %v1454 = vadd.f32 %v1051, %v1309
  %v1455 = vadd.f32 %v1052, %v1311
  %v1456 = vadd.f32 %v1053, %v1313
  %v1457 = vadd.f32 %v1054, %v1317
  %v1458 = vadd.f32 %v1055, %v1319
  %v1459 = vadd.f32 %v1056, %v1321
  %v1460 = vadd.f32 %v1057, %v1323
  %v1461 = vadd.f32 %v1058, %v1327
  %v1462 = vadd.f32 %v1059, %v1329
  %v1463 = vadd.f32 %v1060, %v1331
  %v1464 = vadd.f32 %v1061, %v1333
  %v1465 = vadd.f32 %v1062, %v1337
  %v1466 = vadd.f32 %v1063, %v1339
  %v1467 = vadd.f32 %v1064, %v1341
  %v1468 = vadd.f32 %v1065, %v1343
  %v1469 = vadd.f32 %v1066, %v1347
  %v1470 = vadd.f32 %v1067, %v1349
  %v1471 = vadd.f32 %v1068, %v1351
  %v1472 = vadd.f32 %v1069, %v1353
  %v1473 = vadd.f32 %v1070, %v1357
  %v1474 = vadd.f32 %v1071, %v1359
  %v1475 = vadd.f32 %v1072, %v1361
  %v1476 = vadd.f32 %v1073, %v1363
  %v1477 = vadd.f32 %v1074, %v1367
  %v1478 = vadd.f32 %v1075, %v1369
  %v1479 = vadd.f32 %v1076, %v1371
  %v1480 = vadd.f32 %v1077, %v1373
  %v1481 = vadd.f32 %v1078, %v1377
  %v1482 = vadd.f32 %v1079, %v1379
  %v1483 = vadd.f32 %v1080, %v1381
  %v1484 = vadd.f32 %v1081, %v1383
  %v1485 = vadd.f32 %v1082, %v1387
  %v1486 = vadd.f32 %v1083, %v1389
  %v1487 = vadd.f32 %v1084, %v1391
  %v1488 = vadd.f32 %v1085, %v1393
  %v1489 = vadd.f32 %v1086, %v1397
  %v1490 = vadd.f32 %v1087, %v1399
  %v1491 = vadd.f32 %v1088, %v1401
  %v1492 = vadd.f32 %v1089, %v1403
  %v1493 = vadd.f32 %v1090, %v1407
  %v1494 = vadd.f32 %v1091, %v1409
  %v1495 = vadd.f32 %v1092, %v1411
  %v1496 = vadd.f32 %v1093, %v1413
  %v1497 = vadd.f32 %v1094, %v1417
  %v1498 = vadd.f32 %v1095, %v1419
  %v1499 = vadd.f32 %v1096, %v1421
  %v1500 = vadd.f32 %v1097, %v1423
  %v1501 = vadd.f32 %v1098, %v1427
  %v1502 = vadd.f32 %v1099, %v1429
  %v1503 = vadd.f32 %v1100, %v1431
  %v1504 = vadd.f32 %v1101, %v1433
  %v1505 = vadd.f32 %v1102, %v1437
  %v1506 = vadd.f32 %v1103, %v1439
  %v1507 = vadd.f32 %v1104, %v1441
  %v1508 = vadd.f32 %v1105, %v1443
  %v1509 = vld [vmem:[%s1 + $0x70] sm:$0xff]
  %v1510 = vld [vmem:[%s1 + $0x78] sm:$0xff]
  %v1511 = vld [vmem:[%s1 + $0x80] sm:$0xff]
  %v1512 = vld [vmem:[%s1 + $0x88] sm:$0x33]
  %v1513 = vrot.slane %v54, 2
  %v1514 = vrot.slane %v55, 2
  %v1515 = vsel %vm218, %v1513, %v1514
  %v1516 = vrot.slane %v56, 2
  %v1517 = vsel %vm218, %v1514, %v1516
  %v1518 = vrot.slane %v57, 2
  %v1519 = vsel %vm218, %v1516, %v1518
  %v1520 = vrot.slane %v58, 2
  %v1521 = vsel %vm218, %v1518, %v1520
  %v1522 = vrot.slane %v59, 2
  %v1523 = vsel %vm218, %v1520, %v1522
  %v1524 = vrot.slane %v60, 2
  %v1525 = vsel %vm218, %v1522, %v1524
  %v1526 = vrot.slane %v61, 2
  %v1527 = vsel %vm218, %v1524, %v1526
  %v1528 = vrot.slane %v62, 2
  %v1529 = vsel %vm218, %v1526, %v1528
  %v1530 = vrot.slane %v63, 2
  %v1531 = vsel %vm218, %v1528, %v1530
  %v1532 = vrot.slane %v64, 2
  %v1533 = vsel %vm218, %v1530, %v1532
  %v1534 = vrot.slane %v65, 2
  %v1535 = vsel %vm218, %v1532, %v1534
  %v1536 = vrot.slane %v66, 2
  %v1537 = vsel %vm218, %v1534, %v1536
  %v1538 = vrot.slane %v67, 2
  %v1539 = vsel %vm218, %v1536, %v1538
  %v1540 = vrot.slane %v68, 2
  %v1541 = vsel %vm218, %v1538, %v1540
  %v1542 = vrot.slane %v69, 2
  %v1543 = vsel %vm218, %v1540, %v1542
  %v1548 = vunpack.c.l.b16 %v1509
  %v1549 = vunpack.c.h.b16 %v1509
  %v1550 = vunpack.c.l.b16 %v1510
  %v1551 = vunpack.c.h.b16 %v1510
  %v1552 = vunpack.c.l.b16 %v1511
  %v1553 = vunpack.c.h.b16 %v1511
  %v1554 = vunpack.c.l.b16 %v1512
  %v1555 = vunpack.c.h.b16 %v1512
  %v1556 = vpack.c.b16 %v1550, %v1548
  %v1557 = vpack.c.b16 %v1551, %v1549
  %v1558 = vpack.c.b16 %v1554, %v1552
  %v1559 = vpack.c.b16 %v1555, %v1553
  %v1563 = vsel %vm227, %v1515, 0
  %v1566 = vsel %vm227, %v1517, 0
  %v1569 = vsel %vm227, %v1519, 0
  %v1572 = vsel %vm227, %v1521, 0
  %v1575 = vsel %vm227, %v1523, 0
  %v1578 = vsel %vm227, %v1525, 0
  %v1581 = vsel %vm227, %v1527, 0
  %v1584 = vsel %vm227, %v1529, 0
  %v1587 = vsel %vm227, %v1531, 0
  %v1590 = vsel %vm227, %v1533, 0
  %v1593 = vsel %vm227, %v1535, 0
  %v1596 = vsel %vm227, %v1537, 0
  %v1599 = vsel %vm227, %v1539, 0
  %v1602 = vsel %vm227, %v1541, 0
  %v1605 = vsel %vm227, %v1543, 0
  %v1608 = vsel %vm227, %v1542, 0
  %v1611 = vsel %vm276, %v1558, 0
  %v1614 = vsel %vm276, %v1559, 0
  %1616 = vmatprep.subr.bf16.mxu0 %v1557
  %1617 = vmatpush1.bf16.msra.mxu0 %v1556
  %1618 = vmatprep.subr.bf16.mxu0 %v1614
  %1619 = vmatpush1.bf16.msra.mxu0 %v1611
  %1620 = vmatprep.subr.bf16.mxu0 0
  %1621 = vmatpush1.bf16.msra.mxu0 0
  %1622 = vmatprep.subr.bf16.mxu0 0
  %1623 = vmatpush1.bf16.msra.mxu0 0
  %1624 = vmatprep.subr.bf16.mxu0 0
  %1625 = vmatpush1.bf16.msra.mxu0 0
  %1626 = vmatprep.subr.bf16.mxu0 0
  %1627 = vmatpush1.bf16.msra.mxu0 0
  %1628 = vmatprep.subr.bf16.mxu0 0
  %1629 = vmatpush1.bf16.msra.mxu0 0
  %1630 = vmatprep.subr.bf16.mxu0 0
  %1631 = vmatpush1.bf16.msra.mxu0 0
  %1632 = vmatprep.subr.bf16.mxu0 0
  %1633 = vmatpush1.bf16.msra.mxu0 0
  %1634 = vmatprep.subr.bf16.mxu0 0
  %1635 = vmatpush1.bf16.msra.mxu0 0
  %1636 = vmatprep.subr.bf16.mxu0 0
  %1637 = vmatpush1.bf16.msra.mxu0 0
  %1638 = vmatprep.subr.bf16.mxu0 0
  %1639 = vmatpush1.bf16.msra.mxu0 0
  %1640 = vmatprep.subr.bf16.mxu0 0
  %1641 = vmatpush1.bf16.msra.mxu0 0
  %1642 = vmatprep.subr.bf16.mxu0 0
  %1643 = vmatpush1.bf16.msra.mxu0 0
  %1644 = vmatprep.subr.bf16.mxu0 0
  %1645 = vmatpush1.bf16.msra.mxu0 0
  %1646 = vmatprep.subr.bf16.mxu0 0
  %1647 = vmatpush1.bf16.msra.mxu0 0
  %1648 = vmatprep.mubr.bf16.mxu0 0
  %1649 = vmatmul.mubr.bf16.gmra.mrb[0].mxu0 %v1563
  %v1650 = vpop.f32.mrb[0].mxu0
  %v1651 = vadd.f32 0.0, %v1650
  %v1652 = vpop.f32.mrb[0].mxu0
  %v1653 = vadd.f32 0.0, %v1652
  %v1654 = vpop.f32.mrb[0].mxu0
  %v1655 = vadd.f32 0.0, %v1654
  %v1656 = vpop.f32.mrb[0].mxu0
  %v1657 = vadd.f32 0.0, %v1656
  %1658 = vmatprep.mubr.bf16.mxu0 0
  %1659 = vmatmul.mubr.bf16.gmra.mrb[0].mxu0 %v1566
  %v1660 = vpop.f32.mrb[0].mxu0
  %v1661 = vadd.f32 0.0, %v1660
  %v1662 = vpop.f32.mrb[0].mxu0
  %v1663 = vadd.f32 0.0, %v1662
  %v1664 = vpop.f32.mrb[0].mxu0
  %v1665 = vadd.f32 0.0, %v1664
  %v1666 = vpop.f32.mrb[0].mxu0
  %v1667 = vadd.f32 0.0, %v1666
  %1668 = vmatprep.mubr.bf16.mxu0 0
  %1669 = vmatmul.mubr.bf16.gmra.mrb[0].mxu0 %v1569
  %v1670 = vpop.f32.mrb[0].mxu0
  %v1671 = vadd.f32 0.0, %v1670
  %v1672 = vpop.f32.mrb[0].mxu0
  %v1673 = vadd.f32 0.0, %v1672
  %v1674 = vpop.f32.mrb[0].mxu0
  %v1675 = vadd.f32 0.0, %v1674
  %v1676 = vpop.f32.mrb[0].mxu0
  %v1677 = vadd.f32 0.0, %v1676
  %1678 = vmatprep.mubr.bf16.mxu0 0
  %1679 = vmatmul.mubr.bf16.gmra.mrb[0].mxu0 %v1572
  %v1680 = vpop.f32.mrb[0].mxu0
  %v1681 = vadd.f32 0.0, %v1680
  %v1682 = vpop.f32.mrb[0].mxu0
  %v1683 = vadd.f32 0.0, %v1682
  %v1684 = vpop.f32.mrb[0].mxu0
  %v1685 = vadd.f32 0.0, %v1684
  %v1686 = vpop.f32.mrb[0].mxu0
  %v1687 = vadd.f32 0.0, %v1686
  %1688 = vmatprep.mubr.bf16.mxu0 0
  %1689 = vmatmul.mubr.bf16.gmra.mrb[0].mxu0 %v1575
  %v1690 = vpop.f32.mrb[0].mxu0
  %v1691 = vadd.f32 0.0, %v1690
  %v1692 = vpop.f32.mrb[0].mxu0
  %v1693 = vadd.f32 0.0, %v1692
  %v1694 = vpop.f32.mrb[0].mxu0
  %v1695 = vadd.f32 0.0, %v1694
  %v1696 = vpop.f32.mrb[0].mxu0
  %v1697 = vadd.f32 0.0, %v1696
  %1698 = vmatprep.mubr.bf16.mxu0 0
  %1699 = vmatmul.mubr.bf16.gmra.mrb[0].mxu0 %v1578
  %v1700 = vpop.f32.mrb[0].mxu0
  %v1701 = vadd.f32 0.0, %v1700
  %v1702 = vpop.f32.mrb[0].mxu0
  %v1703 = vadd.f32 0.0, %v1702
  %v1704 = vpop.f32.mrb[0].mxu0
  %v1705 = vadd.f32 0.0, %v1704
  %v1706 = vpop.f32.mrb[0].mxu0
  %v1707 = vadd.f32 0.0, %v1706
  %1708 = vmatprep.mubr.bf16.mxu0 0
  %1709 = vmatmul.mubr.bf16.gmra.mrb[0].mxu0 %v1581
  %v1710 = vpop.f32.mrb[0].mxu0
  %v1711 = vadd.f32 0.0, %v1710
  %v1712 = vpop.f32.mrb[0].mxu0
  %v1713 = vadd.f32 0.0, %v1712
  %v1714 = vpop.f32.mrb[0].mxu0
  %v1715 = vadd.f32 0.0, %v1714
  %v1716 = vpop.f32.mrb[0].mxu0
  %v1717 = vadd.f32 0.0, %v1716
  %1718 = vmatprep.mubr.bf16.mxu0 0
  %1719 = vmatmul.mubr.bf16.gmra.mrb[0].mxu0 %v1584
  %v1720 = vpop.f32.mrb[0].mxu0
  %v1721 = vadd.f32 0.0, %v1720
  %v1722 = vpop.f32.mrb[0].mxu0
  %v1723 = vadd.f32 0.0, %v1722
  %v1724 = vpop.f32.mrb[0].mxu0
  %v1725 = vadd.f32 0.0, %v1724
  %v1726 = vpop.f32.mrb[0].mxu0
  %v1727 = vadd.f32 0.0, %v1726
  %1728 = vmatprep.mubr.bf16.mxu0 0
  %1729 = vmatmul.mubr.bf16.gmra.mrb[0].mxu0 %v1587
  %v1730 = vpop.f32.mrb[0].mxu0
  %v1731 = vadd.f32 0.0, %v1730
  %v1732 = vpop.f32.mrb[0].mxu0
  %v1733 = vadd.f32 0.0, %v1732
  %v1734 = vpop.f32.mrb[0].mxu0
  %v1735 = vadd.f32 0.0, %v1734
  %v1736 = vpop.f32.mrb[0].mxu0
  %v1737 = vadd.f32 0.0, %v1736
  %1738 = vmatprep.mubr.bf16.mxu0 0
  %1739 = vmatmul.mubr.bf16.gmra.mrb[0].mxu0 %v1590
  %v1740 = vpop.f32.mrb[0].mxu0
  %v1741 = vadd.f32 0.0, %v1740
  %v1742 = vpop.f32.mrb[0].mxu0
  %v1743 = vadd.f32 0.0, %v1742
  %v1744 = vpop.f32.mrb[0].mxu0
  %v1745 = vadd.f32 0.0, %v1744
  %v1746 = vpop.f32.mrb[0].mxu0
  %v1747 = vadd.f32 0.0, %v1746
  %1748 = vmatprep.mubr.bf16.mxu0 0
  %1749 = vmatmul.mubr.bf16.gmra.mrb[0].mxu0 %v1593
  %v1750 = vpop.f32.mrb[0].mxu0
  %v1751 = vadd.f32 0.0, %v1750
  %v1752 = vpop.f32.mrb[0].mxu0
  %v1753 = vadd.f32 0.0, %v1752
  %v1754 = vpop.f32.mrb[0].mxu0
  %v1755 = vadd.f32 0.0, %v1754
  %v1756 = vpop.f32.mrb[0].mxu0
  %v1757 = vadd.f32 0.0, %v1756
  %1758 = vmatprep.mubr.bf16.mxu0 0
  %1759 = vmatmul.mubr.bf16.gmra.mrb[0].mxu0 %v1596
  %v1760 = vpop.f32.mrb[0].mxu0
  %v1761 = vadd.f32 0.0, %v1760
  %v1762 = vpop.f32.mrb[0].mxu0
  %v1763 = vadd.f32 0.0, %v1762
  %v1764 = vpop.f32.mrb[0].mxu0
  %v1765 = vadd.f32 0.0, %v1764
  %v1766 = vpop.f32.mrb[0].mxu0
  %v1767 = vadd.f32 0.0, %v1766
  %1768 = vmatprep.mubr.bf16.mxu0 0
  %1769 = vmatmul.mubr.bf16.gmra.mrb[0].mxu0 %v1599
  %v1770 = vpop.f32.mrb[0].mxu0
  %v1771 = vadd.f32 0.0, %v1770
  %v1772 = vpop.f32.mrb[0].mxu0
  %v1773 = vadd.f32 0.0, %v1772
  %v1774 = vpop.f32.mrb[0].mxu0
  %v1775 = vadd.f32 0.0, %v1774
  %v1776 = vpop.f32.mrb[0].mxu0
  %v1777 = vadd.f32 0.0, %v1776
  %1778 = vmatprep.mubr.bf16.mxu0 0
  %1779 = vmatmul.mubr.bf16.gmra.mrb[0].mxu0 %v1602
  %v1780 = vpop.f32.mrb[0].mxu0
  %v1781 = vadd.f32 0.0, %v1780
  %v1782 = vpop.f32.mrb[0].mxu0
  %v1783 = vadd.f32 0.0, %v1782
  %v1784 = vpop.f32.mrb[0].mxu0
  %v1785 = vadd.f32 0.0, %v1784
  %v1786 = vpop.f32.mrb[0].mxu0
  %v1787 = vadd.f32 0.0, %v1786
  %1788 = vmatprep.mubr.bf16.mxu0 0
  %1789 = vmatmul.mubr.bf16.gmra.mrb[0].mxu0 %v1605
  %v1790 = vpop.f32.mrb[0].mxu0
  %v1791 = vadd.f32 0.0, %v1790
  %v1792 = vpop.f32.mrb[0].mxu0
  %v1793 = vadd.f32 0.0, %v1792
  %v1794 = vpop.f32.mrb[0].mxu0
  %v1795 = vadd.f32 0.0, %v1794
  %v1796 = vpop.f32.mrb[0].mxu0
  %v1797 = vadd.f32 0.0, %v1796
  %1798 = vmatprep.mubr.bf16.mxu0 0
  %1799 = vmatmul.mubr.bf16.gmra.mrb[0].mxu0 %v1608
  %v1800 = vpop.f32.mrb[0].mxu0
  %v1801 = vadd.f32 0.0, %v1800
  %v1802 = vpop.f32.mrb[0].mxu0
  %v1803 = vadd.f32 0.0, %v1802
  %v1804 = vpop.f32.mrb[0].mxu0
  %v1805 = vadd.f32 0.0, %v1804
  %v1806 = vpop.f32.mrb[0].mxu0
  %v1807 = vadd.f32 0.0, %v1806
  %1808 = vdwg.mxu0
  %v1809 = vadd.f32 %v1445, %v1651
  %v1810 = vadd.f32 %v1446, %v1653
  %v1811 = vadd.f32 %v1447, %v1655
  %v1812 = vadd.f32 %v1448, %v1657
  %v1813 = vadd.f32 %v1449, %v1661
  %v1814 = vadd.f32 %v1450, %v1663
  %v1815 = vadd.f32 %v1451, %v1665
  %v1816 = vadd.f32 %v1452, %v1667
  %v1817 = vadd.f32 %v1453, %v1671
  %v1818 = vadd.f32 %v1454, %v1673
  %v1819 = vadd.f32 %v1455, %v1675
  %v1820 = vadd.f32 %v1456, %v1677
  %v1821 = vadd.f32 %v1457, %v1681
  %v1822 = vadd.f32 %v1458, %v1683
  %v1823 = vadd.f32 %v1459, %v1685
  %v1824 = vadd.f32 %v1460, %v1687
  %v1825 = vadd.f32 %v1461, %v1691
  %v1826 = vadd.f32 %v1462, %v1693
  %v1827 = vadd.f32 %v1463, %v1695
  %v1828 = vadd.f32 %v1464, %v1697
  %v1829 = vadd.f32 %v1465, %v1701
  %v1830 = vadd.f32 %v1466, %v1703
  %v1831 = vadd.f32 %v1467, %v1705
  %v1832 = vadd.f32 %v1468, %v1707
  %v1833 = vadd.f32 %v1469, %v1711
  %v1834 = vadd.f32 %v1470, %v1713
  %v1835 = vadd.f32 %v1471, %v1715
  %v1836 = vadd.f32 %v1472, %v1717
  %v1837 = vadd.f32 %v1473, %v1721
  %v1838 = vadd.f32 %v1474, %v1723
  %v1839 = vadd.f32 %v1475, %v1725
  %v1840 = vadd.f32 %v1476, %v1727
  %v1841 = vadd.f32 %v1477, %v1731
  %v1842 = vadd.f32 %v1478, %v1733
  %v1843 = vadd.f32 %v1479, %v1735
  %v1844 = vadd.f32 %v1480, %v1737
  %v1845 = vadd.f32 %v1481, %v1741
  %v1846 = vadd.f32 %v1482, %v1743
  %v1847 = vadd.f32 %v1483, %v1745
  %v1848 = vadd.f32 %v1484, %v1747
  %v1849 = vadd.f32 %v1485, %v1751
  %v1850 = vadd.f32 %v1486, %v1753
  %v1851 = vadd.f32 %v1487, %v1755
  %v1852 = vadd.f32 %v1488, %v1757
  %v1853 = vadd.f32 %v1489, %v1761
  %v1854 = vadd.f32 %v1490, %v1763
  %v1855 = vadd.f32 %v1491, %v1765
  %v1856 = vadd.f32 %v1492, %v1767
  %v1857 = vadd.f32 %v1493, %v1771
  %v1858 = vadd.f32 %v1494, %v1773
  %v1859 = vadd.f32 %v1495, %v1775
  %v1860 = vadd.f32 %v1496, %v1777
  %v1861 = vadd.f32 %v1497, %v1781
  %v1862 = vadd.f32 %v1498, %v1783
  %v1863 = vadd.f32 %v1499, %v1785
  %v1864 = vadd.f32 %v1500, %v1787
  %v1865 = vadd.f32 %v1501, %v1791
  %v1866 = vadd.f32 %v1502, %v1793
  %v1867 = vadd.f32 %v1503, %v1795
  %v1868 = vadd.f32 %v1504, %v1797
  %v1869 = vadd.f32 %v1505, %v1801
  %v1870 = vadd.f32 %v1506, %v1803
  %v1871 = vadd.f32 %v1507, %v1805
  %v1872 = vadd.f32 %v1508, %v1807
  %v1873 = vld [vmem:[%s2] ss:$8 sm:$0x3]
  %v1875 = vlaneseq
  %v1876 = vshrl.u32 %v1875, 7
  %v1877 = vsub.s32 0, %v1876
  %v1878 = vrot.slane %v1873, %v1877
  %v1879 = vlaneseq
  %v1880 = vshrl.u32 %v1879, 7
  %v1881 = vsub.s32 1, %v1880
  %v1882 = vrot.slane %v1873, %v1881
  %v1885 = vadd.f32 %v1809, %v1878
  %v1886 = vadd.f32 %v1810, %v1882
  %v1887 = vadd.f32 %v1811, %v1878
  %v1888 = vadd.f32 %v1812, %v1882
  %v1889 = vadd.f32 %v1813, %v1878
  %v1890 = vadd.f32 %v1814, %v1882
  %v1891 = vadd.f32 %v1815, %v1878
  %v1892 = vadd.f32 %v1816, %v1882
  %v1893 = vadd.f32 %v1817, %v1878
  %v1894 = vadd.f32 %v1818, %v1882
  %v1895 = vadd.f32 %v1819, %v1878
  %v1896 = vadd.f32 %v1820, %v1882
  %v1897 = vadd.f32 %v1821, %v1878
  %v1898 = vadd.f32 %v1822, %v1882
  %v1899 = vadd.f32 %v1823, %v1878
  %v1900 = vadd.f32 %v1824, %v1882
  %v1901 = vadd.f32 %v1825, %v1878
  %v1902 = vadd.f32 %v1826, %v1882
  %v1903 = vadd.f32 %v1827, %v1878
  %v1904 = vadd.f32 %v1828, %v1882
  %v1905 = vadd.f32 %v1829, %v1878
  %v1906 = vadd.f32 %v1830, %v1882
  %v1907 = vadd.f32 %v1831, %v1878
  %v1908 = vadd.f32 %v1832, %v1882
  %v1909 = vadd.f32 %v1833, %v1878
  %v1910 = vadd.f32 %v1834, %v1882
  %v1911 = vadd.f32 %v1835, %v1878
  %v1912 = vadd.f32 %v1836, %v1882
  %v1913 = vadd.f32 %v1837, %v1878
  %v1914 = vadd.f32 %v1838, %v1882
  %v1915 = vadd.f32 %v1839, %v1878
  %v1916 = vadd.f32 %v1840, %v1882
  %v1917 = vadd.f32 %v1841, %v1878
  %v1918 = vadd.f32 %v1842, %v1882
  %v1919 = vadd.f32 %v1843, %v1878
  %v1920 = vadd.f32 %v1844, %v1882
  %v1921 = vadd.f32 %v1845, %v1878
  %v1922 = vadd.f32 %v1846, %v1882
  %v1923 = vadd.f32 %v1847, %v1878
  %v1924 = vadd.f32 %v1848, %v1882
  %v1925 = vadd.f32 %v1849, %v1878
  %v1926 = vadd.f32 %v1850, %v1882
  %v1927 = vadd.f32 %v1851, %v1878
  %v1928 = vadd.f32 %v1852, %v1882
  %v1929 = vadd.f32 %v1853, %v1878
  %v1930 = vadd.f32 %v1854, %v1882
  %v1931 = vadd.f32 %v1855, %v1878
  %v1932 = vadd.f32 %v1856, %v1882
  %v1933 = vadd.f32 %v1857, %v1878
  %v1934 = vadd.f32 %v1858, %v1882
  %v1935 = vadd.f32 %v1859, %v1878
  %v1936 = vadd.f32 %v1860, %v1882
  %v1937 = vadd.f32 %v1861, %v1878
  %v1938 = vadd.f32 %v1862, %v1882
  %v1939 = vadd.f32 %v1863, %v1878
  %v1940 = vadd.f32 %v1864, %v1882
  %v1941 = vadd.f32 %v1865, %v1878
  %v1942 = vadd.f32 %v1866, %v1882
  %v1943 = vadd.f32 %v1867, %v1878
  %v1944 = vadd.f32 %v1868, %v1882
  %v1945 = vadd.f32 %v1869, %v1878
  %v1946 = vadd.f32 %v1870, %v1882
  %v1947 = vadd.f32 %v1871, %v1878
  %v1948 = vadd.f32 %v1872, %v1882
  %v1949 = vsub.f32 0.0, %v1885
  %v1950 = vsub.f32 0.0, %v1886
  %v1951 = vsub.f32 0.0, %v1887
  %v1952 = vsub.f32 0.0, %v1888
  %v1953 = vsub.f32 0.0, %v1889
  %v1954 = vsub.f32 0.0, %v1890
  %v1955 = vsub.f32 0.0, %v1891
  %v1956 = vsub.f32 0.0, %v1892
  %v1957 = vsub.f32 0.0, %v1893
  %v1958 = vsub.f32 0.0, %v1894
  %v1959 = vsub.f32 0.0, %v1895
  %v1960 = vsub.f32 0.0, %v1896
  %v1961 = vsub.f32 0.0, %v1897
  %v1962 = vsub.f32 0.0, %v1898
  %v1963 = vsub.f32 0.0, %v1899
  %v1964 = vsub.f32 0.0, %v1900
  %v1965 = vsub.f32 0.0, %v1901
  %v1966 = vsub.f32 0.0, %v1902
  %v1967 = vsub.f32 0.0, %v1903
  %v1968 = vsub.f32 0.0, %v1904
  %v1969 = vsub.f32 0.0, %v1905
  %v1970 = vsub.f32 0.0, %v1906
  %v1971 = vsub.f32 0.0, %v1907
  %v1972 = vsub.f32 0.0, %v1908
  %v1973 = vsub.f32 0.0, %v1909
  %v1974 = vsub.f32 0.0, %v1910
  %v1975 = vsub.f32 0.0, %v1911
  %v1976 = vsub.f32 0.0, %v1912
  %v1977 = vsub.f32 0.0, %v1913
  %v1978 = vsub.f32 0.0, %v1914
  %v1979 = vsub.f32 0.0, %v1915
  %v1980 = vsub.f32 0.0, %v1916
  %v1981 = vsub.f32 0.0, %v1917
  %v1982 = vsub.f32 0.0, %v1918
  %v1983 = vsub.f32 0.0, %v1919
  %v1984 = vsub.f32 0.0, %v1920
  %v1985 = vsub.f32 0.0, %v1921
  %v1986 = vsub.f32 0.0, %v1922
  %v1987 = vsub.f32 0.0, %v1923
  %v1988 = vsub.f32 0.0, %v1924
  %v1989 = vsub.f32 0.0, %v1925
  %v1990 = vsub.f32 0.0, %v1926
  %v1991 = vsub.f32 0.0, %v1927
  %v1992 = vsub.f32 0.0, %v1928
  %v1993 = vsub.f32 0.0, %v1929
  %v1994 = vsub.f32 0.0, %v1930
  %v1995 = vsub.f32 0.0, %v1931
  %v1996 = vsub.f32 0.0, %v1932
  %v1997 = vsub.f32 0.0, %v1933
  %v1998 = vsub.f32 0.0, %v1934
  %v1999 = vsub.f32 0.0, %v1935
  %v2000 = vsub.f32 0.0, %v1936
  %v2001 = vsub.f32 0.0, %v1937
  %v2002 = vsub.f32 0.0, %v1938
  %v2003 = vsub.f32 0.0, %v1939
  %v2004 = vsub.f32 0.0, %v1940
  %v2005 = vsub.f32 0.0, %v1941
  %v2006 = vsub.f32 0.0, %v1942
  %v2007 = vsub.f32 0.0, %v1943
  %v2008 = vsub.f32 0.0, %v1944
  %v2009 = vsub.f32 0.0, %v1945
  %v2010 = vsub.f32 0.0, %v1946
  %v2011 = vsub.f32 0.0, %v1947
  %v2012 = vsub.f32 0.0, %v1948
  %v2013 = vmul.f32 %v1949, 1.442695
  %v2014 = vpow.pop %v2013
  %v2015 = vmul.f32 %v1950, 1.442695
  %v2016 = vpow.pop %v2015
  %v2017 = vmul.f32 %v1951, 1.442695
  %v2018 = vpow.pop %v2017
  %v2019 = vmul.f32 %v1952, 1.442695
  %v2020 = vpow.pop %v2019
  %v2021 = vmul.f32 %v1953, 1.442695
  %v2022 = vpow.pop %v2021
  %v2023 = vmul.f32 %v1954, 1.442695
  %v2024 = vpow.pop %v2023
  %v2025 = vmul.f32 %v1955, 1.442695
  %v2026 = vpow.pop %v2025
  %v2027 = vmul.f32 %v1956, 1.442695
  %v2028 = vpow.pop %v2027
  %v2029 = vmul.f32 %v1957, 1.442695
  %v2030 = vpow.pop %v2029
  %v2031 = vmul.f32 %v1958, 1.442695
  %v2032 = vpow.pop %v2031
  %v2033 = vmul.f32 %v1959, 1.442695
  %v2034 = vpow.pop %v2033
  %v2035 = vmul.f32 %v1960, 1.442695
  %v2036 = vpow.pop %v2035
  %v2037 = vmul.f32 %v1961, 1.442695
  %v2038 = vpow.pop %v2037
  %v2039 = vmul.f32 %v1962, 1.442695
  %v2040 = vpow.pop %v2039
  %v2041 = vmul.f32 %v1963, 1.442695
  %v2042 = vpow.pop %v2041
  %v2043 = vmul.f32 %v1964, 1.442695
  %v2044 = vpow.pop %v2043
  %v2045 = vmul.f32 %v1965, 1.442695
  %v2046 = vpow.pop %v2045
  %v2047 = vmul.f32 %v1966, 1.442695
  %v2048 = vpow.pop %v2047
  %v2049 = vmul.f32 %v1967, 1.442695
  %v2050 = vpow.pop %v2049
  %v2051 = vmul.f32 %v1968, 1.442695
  %v2052 = vpow.pop %v2051
  %v2053 = vmul.f32 %v1969, 1.442695
  %v2054 = vpow.pop %v2053
  %v2055 = vmul.f32 %v1970, 1.442695
  %v2056 = vpow.pop %v2055
  %v2057 = vmul.f32 %v1971, 1.442695
  %v2058 = vpow.pop %v2057
  %v2059 = vmul.f32 %v1972, 1.442695
  %v2060 = vpow.pop %v2059
  %v2061 = vmul.f32 %v1973, 1.442695
  %v2062 = vpow.pop %v2061
  %v2063 = vmul.f32 %v1974, 1.442695
  %v2064 = vpow.pop %v2063
  %v2065 = vmul.f32 %v1975, 1.442695
  %v2066 = vpow.pop %v2065
  %v2067 = vmul.f32 %v1976, 1.442695
  %v2068 = vpow.pop %v2067
  %v2069 = vmul.f32 %v1977, 1.442695
  %v2070 = vpow.pop %v2069
  %v2071 = vmul.f32 %v1978, 1.442695
  %v2072 = vpow.pop %v2071
  %v2073 = vmul.f32 %v1979, 1.442695
  %v2074 = vpow.pop %v2073
  %v2075 = vmul.f32 %v1980, 1.442695
  %v2076 = vpow.pop %v2075
  %v2077 = vmul.f32 %v1981, 1.442695
  %v2078 = vpow.pop %v2077
  %v2079 = vmul.f32 %v1982, 1.442695
  %v2080 = vpow.pop %v2079
  %v2081 = vmul.f32 %v1983, 1.442695
  %v2082 = vpow.pop %v2081
  %v2083 = vmul.f32 %v1984, 1.442695
  %v2084 = vpow.pop %v2083
  %v2085 = vmul.f32 %v1985, 1.442695
  %v2086 = vpow.pop %v2085
  %v2087 = vmul.f32 %v1986, 1.442695
  %v2088 = vpow.pop %v2087
  %v2089 = vmul.f32 %v1987, 1.442695
  %v2090 = vpow.pop %v2089
  %v2091 = vmul.f32 %v1988, 1.442695
  %v2092 = vpow.pop %v2091
  %v2093 = vmul.f32 %v1989, 1.442695
  %v2094 = vpow.pop %v2093
  %v2095 = vmul.f32 %v1990, 1.442695
  %v2096 = vpow.pop %v2095
  %v2097 = vmul.f32 %v1991, 1.442695
  %v2098 = vpow.pop %v2097
  %v2099 = vmul.f32 %v1992, 1.442695
  %v2100 = vpow.pop %v2099
  %v2101 = vmul.f32 %v1993, 1.442695
  %v2102 = vpow.pop %v2101
  %v2103 = vmul.f32 %v1994, 1.442695
  %v2104 = vpow.pop %v2103
  %v2105 = vmul.f32 %v1995, 1.442695
  %v2106 = vpow.pop %v2105
  %v2107 = vmul.f32 %v1996, 1.442695
  %v2108 = vpow.pop %v2107
  %v2109 = vmul.f32 %v1997, 1.442695
  %v2110 = vpow.pop %v2109
  %v2111 = vmul.f32 %v1998, 1.442695
  %v2112 = vpow.pop %v2111
  %v2113 = vmul.f32 %v1999, 1.442695
  %v2114 = vpow.pop %v2113
  %v2115 = vmul.f32 %v2000, 1.442695
  %v2116 = vpow.pop %v2115
  %v2117 = vmul.f32 %v2001, 1.442695
  %v2118 = vpow.pop %v2117
  %v2119 = vmul.f32 %v2002, 1.442695
  %v2120 = vpow.pop %v2119
  %v2121 = vmul.f32 %v2003, 1.442695
  %v2122 = vpow.pop %v2121
  %v2123 = vmul.f32 %v2004, 1.442695
  %v2124 = vpow.pop %v2123
  %v2125 = vmul.f32 %v2005, 1.442695
  %v2126 = vpow.pop %v2125
  %v2127 = vmul.f32 %v2006, 1.442695
  %v2128 = vpow.pop %v2127
  %v2129 = vmul.f32 %v2007, 1.442695
  %v2130 = vpow.pop %v2129
  %v2131 = vmul.f32 %v2008, 1.442695
  %v2132 = vpow.pop %v2131
  %v2133 = vmul.f32 %v2009, 1.442695
  %v2134 = vpow.pop %v2133
  %v2135 = vmul.f32 %v2010, 1.442695
  %v2136 = vpow.pop %v2135
  %v2137 = vmul.f32 %v2011, 1.442695
  %v2138 = vpow.pop %v2137
  %v2139 = vmul.f32 %v2012, 1.442695
  %v2140 = vpow.pop %v2139
  %v2141 = vadd.f32 %v2014, 1.0
  %v2142 = vadd.f32 %v2016, 1.0
  %v2143 = vadd.f32 %v2018, 1.0
  %v2144 = vadd.f32 %v2020, 1.0
  %v2145 = vadd.f32 %v2022, 1.0
  %v2146 = vadd.f32 %v2024, 1.0
  %v2147 = vadd.f32 %v2026, 1.0
  %v2148 = vadd.f32 %v2028, 1.0
  %v2149 = vadd.f32 %v2030, 1.0
  %v2150 = vadd.f32 %v2032, 1.0
  %v2151 = vadd.f32 %v2034, 1.0
  %v2152 = vadd.f32 %v2036, 1.0
  %v2153 = vadd.f32 %v2038, 1.0
  %v2154 = vadd.f32 %v2040, 1.0
  %v2155 = vadd.f32 %v2042, 1.0
  %v2156 = vadd.f32 %v2044, 1.0
  %v2157 = vadd.f32 %v2046, 1.0
  %v2158 = vadd.f32 %v2048, 1.0
  %v2159 = vadd.f32 %v2050, 1.0
  %v2160 = vadd.f32 %v2052, 1.0
  %v2161 = vadd.f32 %v2054, 1.0
  %v2162 = vadd.f32 %v2056, 1.0
  %v2163 = vadd.f32 %v2058, 1.0
  %v2164 = vadd.f32 %v2060, 1.0
  %v2165 = vadd.f32 %v2062, 1.0
  %v2166 = vadd.f32 %v2064, 1.0
  %v2167 = vadd.f32 %v2066, 1.0
  %v2168 = vadd.f32 %v2068, 1.0
  %v2169 = vadd.f32 %v2070, 1.0
  %v2170 = vadd.f32 %v2072, 1.0
  %v2171 = vadd.f32 %v2074, 1.0
  %v2172 = vadd.f32 %v2076, 1.0
  %v2173 = vadd.f32 %v2078, 1.0
  %v2174 = vadd.f32 %v2080, 1.0
  %v2175 = vadd.f32 %v2082, 1.0
  %v2176 = vadd.f32 %v2084, 1.0
  %v2177 = vadd.f32 %v2086, 1.0
  %v2178 = vadd.f32 %v2088, 1.0
  %v2179 = vadd.f32 %v2090, 1.0
  %v2180 = vadd.f32 %v2092, 1.0
  %v2181 = vadd.f32 %v2094, 1.0
  %v2182 = vadd.f32 %v2096, 1.0
  %v2183 = vadd.f32 %v2098, 1.0
  %v2184 = vadd.f32 %v2100, 1.0
  %v2185 = vadd.f32 %v2102, 1.0
  %v2186 = vadd.f32 %v2104, 1.0
  %v2187 = vadd.f32 %v2106, 1.0
  %v2188 = vadd.f32 %v2108, 1.0
  %v2189 = vadd.f32 %v2110, 1.0
  %v2190 = vadd.f32 %v2112, 1.0
  %v2191 = vadd.f32 %v2114, 1.0
  %v2192 = vadd.f32 %v2116, 1.0
  %v2193 = vadd.f32 %v2118, 1.0
  %v2194 = vadd.f32 %v2120, 1.0
  %v2195 = vadd.f32 %v2122, 1.0
  %v2196 = vadd.f32 %v2124, 1.0
  %v2197 = vadd.f32 %v2126, 1.0
  %v2198 = vadd.f32 %v2128, 1.0
  %v2199 = vadd.f32 %v2130, 1.0
  %v2200 = vadd.f32 %v2132, 1.0
  %v2201 = vadd.f32 %v2134, 1.0
  %v2202 = vadd.f32 %v2136, 1.0
  %v2203 = vadd.f32 %v2138, 1.0
  %v2204 = vadd.f32 %v2140, 1.0
  %v2205 = vrcp.pop %v2141
  %v2206 = vrcp.pop %v2142
  %v2207 = vrcp.pop %v2143
  %v2208 = vrcp.pop %v2144
  %v2209 = vrcp.pop %v2145
  %v2210 = vrcp.pop %v2146
  %v2211 = vrcp.pop %v2147
  %v2212 = vrcp.pop %v2148
  %v2213 = vrcp.pop %v2149
  %v2214 = vrcp.pop %v2150
  %v2215 = vrcp.pop %v2151
  %v2216 = vrcp.pop %v2152
  %v2217 = vrcp.pop %v2153
  %v2218 = vrcp.pop %v2154
  %v2219 = vrcp.pop %v2155
  %v2220 = vrcp.pop %v2156
  %v2221 = vrcp.pop %v2157
  %v2222 = vrcp.pop %v2158
  %v2223 = vrcp.pop %v2159
  %v2224 = vrcp.pop %v2160
  %v2225 = vrcp.pop %v2161
  %v2226 = vrcp.pop %v2162
  %v2227 = vrcp.pop %v2163
  %v2228 = vrcp.pop %v2164
  %v2229 = vrcp.pop %v2165
  %v2230 = vrcp.pop %v2166
  %v2231 = vrcp.pop %v2167
  %v2232 = vrcp.pop %v2168
  %v2233 = vrcp.pop %v2169
  %v2234 = vrcp.pop %v2170
  %v2235 = vrcp.pop %v2171
  %v2236 = vrcp.pop %v2172
  %v2237 = vrcp.pop %v2173
  %v2238 = vrcp.pop %v2174
  %v2239 = vrcp.pop %v2175
  %v2240 = vrcp.pop %v2176
  %v2241 = vrcp.pop %v2177
  %v2242 = vrcp.pop %v2178
  %v2243 = vrcp.pop %v2179
  %v2244 = vrcp.pop %v2180
  %v2245 = vrcp.pop %v2181
  %v2246 = vrcp.pop %v2182
  %v2247 = vrcp.pop %v2183
  %v2248 = vrcp.pop %v2184
  %v2249 = vrcp.pop %v2185
  %v2250 = vrcp.pop %v2186
  %v2251 = vrcp.pop %v2187
  %v2252 = vrcp.pop %v2188
  %v2253 = vrcp.pop %v2189
  %v2254 = vrcp.pop %v2190
  %v2255 = vrcp.pop %v2191
  %v2256 = vrcp.pop %v2192
  %v2257 = vrcp.pop %v2193
  %v2258 = vrcp.pop %v2194
  %v2259 = vrcp.pop %v2195
  %v2260 = vrcp.pop %v2196
  %v2261 = vrcp.pop %v2197
  %v2262 = vrcp.pop %v2198
  %v2263 = vrcp.pop %v2199
  %v2264 = vrcp.pop %v2200
  %v2265 = vrcp.pop %v2201
  %v2266 = vrcp.pop %v2202
  %v2267 = vrcp.pop %v2203
  %v2268 = vrcp.pop %v2204
  %v2269 = vld [vmem:[%s1 + $0x90] sm:$0xf]
  %v2270 = vld [vmem:[%s1 + $0x98] sm:$0xf]
  %v2271 = vld [vmem:[%s1 + $0xa0] sm:$0xf]
  %v2272 = vld [vmem:[%s1 + $0xa8] sm:$0xf]
  %v2273 = vld [vmem:[%s1 + $0xb0] sm:$0xf]
  %v2274 = vld [vmem:[%s1 + $0xb8] sm:$0xf]
  %v2275 = vld [vmem:[%s1 + $0xc0] sm:$0xf]
  %v2276 = vld [vmem:[%s1 + $0xc8] sm:$0xf]
  %v2277 = vld [vmem:[%s1 + $0xd0] sm:$0xf]
  %v2278 = vld [vmem:[%s1 + $0xd8] sm:$0xf]
  %v2279 = vld [vmem:[%s1 + $0xe0] sm:$0xf]
  %v2280 = vld [vmem:[%s1 + $0xe8] sm:$0xf]
  %v2281 = vld [vmem:[%s1 + $0xf0] sm:$0xf]
  %v2282 = vld [vmem:[%s1 + $0xf8] sm:$0xf]
  %v2283 = vld [vmem:[%s1 + $0x100] sm:$0xf]
  %v2284 = vld [vmem:[%s1 + $0x108] sm:$0xf]
  %v2285 = vld [vmem:[%s1 + $0x110] sm:$0xf]
  %v2286 = vld [vmem:[%s1 + $0x118] sm:$0xf]
  %v2287 = vld [vmem:[%s1 + $0x120] sm:$0xf]
  %v2288 = vld [vmem:[%s1 + $0x128] sm:$0xf]
  %v2289 = vld [vmem:[%s1 + $0x130] sm:$0xf]
  %v2290 = vpack.c.bf16 %v2207, %v2205
  %v2291 = vpack.c.bf16 %v2208, %v2206
  %v2292 = vpack.c.bf16 %v2211, %v2209
  %v2293 = vpack.c.bf16 %v2212, %v2210
  %v2294 = vpack.c.bf16 %v2215, %v2213
  %v2295 = vpack.c.bf16 %v2216, %v2214
  %v2296 = vpack.c.bf16 %v2219, %v2217
  %v2297 = vpack.c.bf16 %v2220, %v2218
  %v2298 = vpack.c.bf16 %v2223, %v2221
  %v2299 = vpack.c.bf16 %v2224, %v2222
  %v2300 = vpack.c.bf16 %v2227, %v2225
  %v2301 = vpack.c.bf16 %v2228, %v2226
  %v2302 = vpack.c.bf16 %v2231, %v2229
  %v2303 = vpack.c.bf16 %v2232, %v2230
  %v2304 = vpack.c.bf16 %v2235, %v2233
  %v2305 = vpack.c.bf16 %v2236, %v2234
  %v2306 = vpack.c.bf16 %v2239, %v2237
  %v2307 = vpack.c.bf16 %v2240, %v2238
  %v2308 = vpack.c.bf16 %v2243, %v2241
  %v2309 = vpack.c.bf16 %v2244, %v2242
  %v2310 = vpack.c.bf16 %v2247, %v2245
  %v2311 = vpack.c.bf16 %v2248, %v2246
  %v2312 = vpack.c.bf16 %v2251, %v2249
  %v2313 = vpack.c.bf16 %v2252, %v2250
  %v2314 = vpack.c.bf16 %v2255, %v2253
  %v2315 = vpack.c.bf16 %v2256, %v2254
  %v2316 = vpack.c.bf16 %v2259, %v2257
  %v2317 = vpack.c.bf16 %v2260, %v2258
  %v2318 = vpack.c.bf16 %v2263, %v2261
  %v2319 = vpack.c.bf16 %v2264, %v2262
  %v2320 = vpack.c.bf16 %v2267, %v2265
  %v2321 = vpack.c.bf16 %v2268, %v2266
  %v2343 = vunpack.c.l.b16 %v2269
  %v2344 = vunpack.c.l.b16 %v2270
  %v2345 = vunpack.c.l.b16 %v2271
  %v2346 = vunpack.c.l.b16 %v2272
  %v2347 = vunpack.c.l.b16 %v2273
  %v2348 = vunpack.c.l.b16 %v2274
  %v2349 = vunpack.c.l.b16 %v2275
  %v2350 = vunpack.c.l.b16 %v2276
  %v2351 = vunpack.c.l.b16 %v2277
  %v2352 = vunpack.c.l.b16 %v2278
  %v2353 = vunpack.c.l.b16 %v2279
  %v2354 = vunpack.c.l.b16 %v2280
  %v2355 = vunpack.c.l.b16 %v2281
  %v2356 = vunpack.c.l.b16 %v2282
  %v2357 = vunpack.c.l.b16 %v2283
  %v2358 = vunpack.c.l.b16 %v2284
  %v2359 = vunpack.c.l.b16 %v2285
  %v2360 = vunpack.c.l.b16 %v2286
  %v2361 = vunpack.c.l.b16 %v2287
  %v2362 = vunpack.c.l.b16 %v2288
  %v2363 = vunpack.c.l.b16 %v2289
  %v2364 = vpack.c.b16 %v2344, %v2343
  %v2365 = vpack.c.b16 %v2346, %v2345
  %v2366 = vpack.c.b16 %v2348, %v2347
  %v2367 = vpack.c.b16 %v2350, %v2349
  %v2368 = vpack.c.b16 %v2352, %v2351
  %v2369 = vpack.c.b16 %v2354, %v2353
  %v2370 = vpack.c.b16 %v2356, %v2355
  %v2371 = vpack.c.b16 %v2358, %v2357
  %v2372 = vpack.c.b16 %v2360, %v2359
  %v2373 = vpack.c.b16 %v2362, %v2361
  %v2374 = vpack.c.b16 %v2363, %v2363
  %vm2385 = vcmask 326656
  %v2387 = vsel %vm2385, %v2291, 0
  %v2390 = vsel %vm2385, %v2293, 0
  %v2393 = vsel %vm2385, %v2295, 0
  %v2396 = vsel %vm2385, %v2297, 0
  %v2399 = vsel %vm2385, %v2299, 0
  %v2402 = vsel %vm2385, %v2301, 0
  %v2405 = vsel %vm2385, %v2303, 0
  %v2408 = vsel %vm2385, %v2305, 0
  %v2411 = vsel %vm2385, %v2307, 0
  %v2414 = vsel %vm2385, %v2309, 0
  %v2417 = vsel %vm2385, %v2311, 0
  %v2420 = vsel %vm2385, %v2313, 0
  %v2423 = vsel %vm2385, %v2315, 0
  %v2426 = vsel %vm2385, %v2317, 0
  %v2429 = vsel %vm2385, %v2319, 0
  %v2432 = vsel %vm2385, %v2321, 0
  %vm2434 = vcmask 1043456
  %v2436 = vsel %vm2434, %v2374, 0
  %2438 = vmatprep.subr.bf16.mxu0 0
  %2439 = vmatpush1.bf16.msra.mxu0 %v2364
  %2440 = vmatprep.subr.bf16.mxu0 0
  %2441 = vmatpush1.bf16.msra.mxu0 %v2365
  %2442 = vmatprep.subr.bf16.mxu0 0
  %2443 = vmatpush1.bf16.msra.mxu0 %v2366
  %2444 = vmatprep.subr.bf16.mxu0 0
  %2445 = vmatpush1.bf16.msra.mxu0 %v2367
  %2446 = vmatprep.subr.bf16.mxu0 0
  %2447 = vmatpush1.bf16.msra.mxu0 %v2368
  %2448 = vmatprep.subr.bf16.mxu0 0
  %2449 = vmatpush1.bf16.msra.mxu0 %v2369
  %2450 = vmatprep.subr.bf16.mxu0 0
  %2451 = vmatpush1.bf16.msra.mxu0 %v2370
  %2452 = vmatprep.subr.bf16.mxu0 0
  %2453 = vmatpush1.bf16.msra.mxu0 %v2371
  %2454 = vmatprep.subr.bf16.mxu0 0
  %2455 = vmatpush1.bf16.msra.mxu0 %v2372
  %2456 = vmatprep.subr.bf16.mxu0 0
  %2457 = vmatpush1.bf16.msra.mxu0 %v2373
  %2458 = vmatprep.subr.bf16.mxu0 0
  %2459 = vmatpush1.bf16.msra.mxu0 %v2436
  %2460 = vmatprep.subr.bf16.mxu0 0
  %2461 = vmatpush1.bf16.msra.mxu0 0
  %2462 = vmatprep.subr.bf16.mxu0 0
  %2463 = vmatpush1.bf16.msra.mxu0 0
  %2464 = vmatprep.subr.bf16.mxu0 0
  %2465 = vmatpush1.bf16.msra.mxu0 0
  %2466 = vmatprep.subr.bf16.mxu0 0
  %2467 = vmatpush1.bf16.msra.mxu0 0
  %2468 = vmatprep.subr.bf16.mxu0 0
  %2469 = vmatpush1.bf16.msra.mxu0 0
  %2470 = vmatprep.mubr.bf16.mxu0 %v2387
  %2471 = vmatmul.mubr.bf16.gmra.mrb[0].mxu0 %v2290
  %v2472 = vpop.f32.mrb[0].mxu0
  %v2473 = vadd.f32 0.0, %v2472
  %v2474 = vpop.f32.mrb[0].mxu0
  %v2475 = vpop.f32.mrb[0].mxu0
  %v2476 = vadd.f32 0.0, %v2475
  %v2477 = vpop.f32.mrb[0].mxu0
  %2478 = vmatprep.mubr.bf16.mxu0 %v2390
  %2479 = vmatmul.mubr.bf16.gmra.mrb[0].mxu0 %v2292
  %v2480 = vpop.f32.mrb[0].mxu0
  %v2481 = vadd.f32 0.0, %v2480
  %v2482 = vpop.f32.mrb[0].mxu0
  %v2483 = vpop.f32.mrb[0].mxu0
  %v2484 = vadd.f32 0.0, %v2483
  %v2485 = vpop.f32.mrb[0].mxu0
  %2486 = vmatprep.mubr.bf16.mxu0 %v2393
  %2487 = vmatmul.mubr.bf16.gmra.mrb[0].mxu0 %v2294
  %v2488 = vpop.f32.mrb[0].mxu0
  %v2489 = vadd.f32 0.0, %v2488
  %v2490 = vpop.f32.mrb[0].mxu0
  %v2491 = vpop.f32.mrb[0].mxu0
  %v2492 = vadd.f32 0.0, %v2491
  %v2493 = vpop.f32.mrb[0].mxu0
  %2494 = vmatprep.mubr.bf16.mxu0 %v2396
  %2495 = vmatmul.mubr.bf16.gmra.mrb[0].mxu0 %v2296
  %v2496 = vpop.f32.mrb[0].mxu0
  %v2497 = vadd.f32 0.0, %v2496
  %v2498 = vpop.f32.mrb[0].mxu0
  %v2499 = vpop.f32.mrb[0].mxu0
  %v2500 = vadd.f32 0.0, %v2499
  %v2501 = vpop.f32.mrb[0].mxu0
  %2502 = vmatprep.mubr.bf16.mxu0 %v2399
  %2503 = vmatmul.mubr.bf16.gmra.mrb[0].mxu0 %v2298
  %v2504 = vpop.f32.mrb[0].mxu0
  %v2505 = vadd.f32 0.0, %v2504
  %v2506 = vpop.f32.mrb[0].mxu0
  %v2507 = vpop.f32.mrb[0].mxu0
  %v2508 = vadd.f32 0.0, %v2507
  %v2509 = vpop.f32.mrb[0].mxu0
  %2510 = vmatprep.mubr.bf16.mxu0 %v2402
  %2511 = vmatmul.mubr.bf16.gmra.mrb[0].mxu0 %v2300
  %v2512 = vpop.f32.mrb[0].mxu0
  %v2513 = vadd.f32 0.0, %v2512
  %v2514 = vpop.f32.mrb[0].mxu0
  %v2515 = vpop.f32.mrb[0].mxu0
  %v2516 = vadd.f32 0.0, %v2515
  %v2517 = vpop.f32.mrb[0].mxu0
  %2518 = vmatprep.mubr.bf16.mxu0 %v2405
  %2519 = vmatmul.mubr.bf16.gmra.mrb[0].mxu0 %v2302
  %v2520 = vpop.f32.mrb[0].mxu0
  %v2521 = vadd.f32 0.0, %v2520
  %v2522 = vpop.f32.mrb[0].mxu0
  %v2523 = vpop.f32.mrb[0].mxu0
  %v2524 = vadd.f32 0.0, %v2523
  %v2525 = vpop.f32.mrb[0].mxu0
  %2526 = vmatprep.mubr.bf16.mxu0 %v2408
  %2527 = vmatmul.mubr.bf16.gmra.mrb[0].mxu0 %v2304
  %v2528 = vpop.f32.mrb[0].mxu0
  %v2529 = vadd.f32 0.0, %v2528
  %v2530 = vpop.f32.mrb[0].mxu0
  %v2531 = vpop.f32.mrb[0].mxu0
  %v2532 = vadd.f32 0.0, %v2531
  %v2533 = vpop.f32.mrb[0].mxu0
  %2534 = vmatprep.mubr.bf16.mxu0 %v2411
  %2535 = vmatmul.mubr.bf16.gmra.mrb[0].mxu0 %v2306
  %v2536 = vpop.f32.mrb[0].mxu0
  %v2537 = vadd.f32 0.0, %v2536
  %v2538 = vpop.f32.mrb[0].mxu0
  %v2539 = vpop.f32.mrb[0].mxu0
  %v2540 = vadd.f32 0.0, %v2539
  %v2541 = vpop.f32.mrb[0].mxu0
  %2542 = vmatprep.mubr.bf16.mxu0 %v2414
  %2543 = vmatmul.mubr.bf16.gmra.mrb[0].mxu0 %v2308
  %v2544 = vpop.f32.mrb[0].mxu0
  %v2545 = vadd.f32 0.0, %v2544
  %v2546 = vpop.f32.mrb[0].mxu0
  %v2547 = vpop.f32.mrb[0].mxu0
  %v2548 = vadd.f32 0.0, %v2547
  %v2549 = vpop.f32.mrb[0].mxu0
  %2550 = vmatprep.mubr.bf16.mxu0 %v2417
  %2551 = vmatmul.mubr.bf16.gmra.mrb[0].mxu0 %v2310
  %v2552 = vpop.f32.mrb[0].mxu0
  %v2553 = vadd.f32 0.0, %v2552
  %v2554 = vpop.f32.mrb[0].mxu0
  %v2555 = vpop.f32.mrb[0].mxu0
  %v2556 = vadd.f32 0.0, %v2555
  %v2557 = vpop.f32.mrb[0].mxu0
  %2558 = vmatprep.mubr.bf16.mxu0 %v2420
  %2559 = vmatmul.mubr.bf16.gmra.mrb[0].mxu0 %v2312
  %v2560 = vpop.f32.mrb[0].mxu0
  %v2561 = vadd.f32 0.0, %v2560
  %v2562 = vpop.f32.mrb[0].mxu0
  %v2563 = vpop.f32.mrb[0].mxu0
  %v2564 = vadd.f32 0.0, %v2563
  %v2565 = vpop.f32.mrb[0].mxu0
  %2566 = vmatprep.mubr.bf16.mxu0 %v2423
  %2567 = vmatmul.mubr.bf16.gmra.mrb[0].mxu0 %v2314
  %v2568 = vpop.f32.mrb[0].mxu0
  %v2569 = vadd.f32 0.0, %v2568
  %v2570 = vpop.f32.mrb[0].mxu0
  %v2571 = vpop.f32.mrb[0].mxu0
  %v2572 = vadd.f32 0.0, %v2571
  %v2573 = vpop.f32.mrb[0].mxu0
  %2574 = vmatprep.mubr.bf16.mxu0 %v2426
  %2575 = vmatmul.mubr.bf16.gmra.mrb[0].mxu0 %v2316
  %v2576 = vpop.f32.mrb[0].mxu0
  %v2577 = vadd.f32 0.0, %v2576
  %v2578 = vpop.f32.mrb[0].mxu0
  %v2579 = vpop.f32.mrb[0].mxu0
  %v2580 = vadd.f32 0.0, %v2579
  %v2581 = vpop.f32.mrb[0].mxu0
  %2582 = vmatprep.mubr.bf16.mxu0 %v2429
  %2583 = vmatmul.mubr.bf16.gmra.mrb[0].mxu0 %v2318
  %v2584 = vpop.f32.mrb[0].mxu0
  %v2585 = vadd.f32 0.0, %v2584
  %v2586 = vpop.f32.mrb[0].mxu0
  %v2587 = vpop.f32.mrb[0].mxu0
  %v2588 = vadd.f32 0.0, %v2587
  %v2589 = vpop.f32.mrb[0].mxu0
  %2590 = vmatprep.mubr.bf16.mxu0 %v2432
  %2591 = vmatmul.mubr.bf16.gmra.mrb[0].mxu0 %v2320
  %v2592 = vpop.f32.mrb[0].mxu0
  %v2593 = vadd.f32 0.0, %v2592
  %v2594 = vpop.f32.mrb[0].mxu0
  %v2595 = vpop.f32.mrb[0].mxu0
  %v2596 = vadd.f32 0.0, %v2595
  %v2597 = vpop.f32.mrb[0].mxu0
  %2598 = vdwg.mxu0
  %vm2631 = vcmask 1046528
  %v2632 = vrot.slane %v2473, 1
  %v2633 = vrot.slane %v2476, 1
  %v2634 = vsel %vm2631, %v2632, %v2633
  %v2635 = vrot.slane %v2481, 1
  %v2636 = vsel %vm2631, %v2633, %v2635
  %v2637 = vrot.slane %v2484, 1
  %v2638 = vsel %vm2631, %v2635, %v2637
  %v2639 = vrot.slane %v2489, 1
  %v2640 = vsel %vm2631, %v2637, %v2639
  %v2641 = vrot.slane %v2492, 1
  %v2642 = vsel %vm2631, %v2639, %v2641
  %v2643 = vrot.slane %v2497, 1
  %v2644 = vsel %vm2631, %v2641, %v2643
  %v2645 = vrot.slane %v2500, 1
  %v2646 = vsel %vm2631, %v2643, %v2645
  %v2647 = vrot.slane %v2505, 1
  %v2648 = vsel %vm2631, %v2645, %v2647
  %v2649 = vrot.slane %v2508, 1
  %v2650 = vsel %vm2631, %v2647, %v2649
  %v2651 = vrot.slane %v2513, 1
  %v2652 = vsel %vm2631, %v2649, %v2651
  %v2653 = vrot.slane %v2516, 1
  %v2654 = vsel %vm2631, %v2651, %v2653
  %v2655 = vrot.slane %v2521, 1
  %v2656 = vsel %vm2631, %v2653, %v2655
  %v2657 = vrot.slane %v2524, 1
  %v2658 = vsel %vm2631, %v2655, %v2657
  %v2659 = vrot.slane %v2529, 1
  %v2660 = vsel %vm2631, %v2657, %v2659
  %v2661 = vrot.slane %v2532, 1
  %v2662 = vsel %vm2631, %v2659, %v2661
  %v2663 = vrot.slane %v2537, 1
  %v2664 = vsel %vm2631, %v2661, %v2663
  %v2665 = vrot.slane %v2540, 1
  %v2666 = vsel %vm2631, %v2663, %v2665
  %v2667 = vrot.slane %v2545, 1
  %v2668 = vsel %vm2631, %v2665, %v2667
  %v2669 = vrot.slane %v2548, 1
  %v2670 = vsel %vm2631, %v2667, %v2669
  %v2671 = vrot.slane %v2553, 1
  %v2672 = vsel %vm2631, %v2669, %v2671
  %v2673 = vrot.slane %v2556, 1
  %v2674 = vsel %vm2631, %v2671, %v2673
  %v2675 = vrot.slane %v2561, 1
  %v2676 = vsel %vm2631, %v2673, %v2675
  %v2677 = vrot.slane %v2564, 1
  %v2678 = vsel %vm2631, %v2675, %v2677
  %v2679 = vrot.slane %v2569, 1
  %v2680 = vsel %vm2631, %v2677, %v2679
  %v2681 = vrot.slane %v2572, 1
  %v2682 = vsel %vm2631, %v2679, %v2681
  %v2683 = vrot.slane %v2577, 1
  %v2684 = vsel %vm2631, %v2681, %v2683
  %v2685 = vrot.slane %v2580, 1
  %v2686 = vsel %vm2631, %v2683, %v2685
  %v2687 = vrot.slane %v2585, 1
  %v2688 = vsel %vm2631, %v2685, %v2687
  %v2689 = vrot.slane %v2588, 1
  %v2690 = vsel %vm2631, %v2687, %v2689
  %v2691 = vrot.slane %v2593, 1
  %v2692 = vsel %vm2631, %v2689, %v2691
  %v2693 = vrot.slane %v2596, 1
  %v2694 = vsel %vm2631, %v2691, %v2693
  %v2727 = vadd.f32 %v2473, %v2634
  %v2728 = vadd.f32 %v2476, %v2636
  %v2729 = vadd.f32 %v2481, %v2638
  %v2730 = vadd.f32 %v2484, %v2640
  %v2731 = vadd.f32 %v2489, %v2642
  %v2732 = vadd.f32 %v2492, %v2644
  %v2733 = vadd.f32 %v2497, %v2646
  %v2734 = vadd.f32 %v2500, %v2648
  %v2735 = vadd.f32 %v2505, %v2650
  %v2736 = vadd.f32 %v2508, %v2652
  %v2737 = vadd.f32 %v2513, %v2654
  %v2738 = vadd.f32 %v2516, %v2656
  %v2739 = vadd.f32 %v2521, %v2658
  %v2740 = vadd.f32 %v2524, %v2660
  %v2741 = vadd.f32 %v2529, %v2662
  %v2742 = vadd.f32 %v2532, %v2664
  %v2743 = vadd.f32 %v2537, %v2666
  %v2744 = vadd.f32 %v2540, %v2668
  %v2745 = vadd.f32 %v2545, %v2670
  %v2746 = vadd.f32 %v2548, %v2672
  %v2747 = vadd.f32 %v2553, %v2674
  %v2748 = vadd.f32 %v2556, %v2676
  %v2749 = vadd.f32 %v2561, %v2678
  %v2750 = vadd.f32 %v2564, %v2680
  %v2751 = vadd.f32 %v2569, %v2682
  %v2752 = vadd.f32 %v2572, %v2684
  %v2753 = vadd.f32 %v2577, %v2686
  %v2754 = vadd.f32 %v2580, %v2688
  %v2755 = vadd.f32 %v2585, %v2690
  %v2756 = vadd.f32 %v2588, %v2692
  %v2757 = vadd.f32 %v2593, %v2694
  %v2758 = vadd.f32 %v2596, %v2693
  %v2759 = vld [vmem:[%s1 + $0x138] sm:$0xff]
  %v2760 = vld [vmem:[%s1 + $0x140] sm:$0xff]
  %v2761 = vld [vmem:[%s1 + $0x148] sm:$0xff]
  %v2762 = vld [vmem:[%s1 + $0x150] sm:$0xff]
  %v2763 = vld [vmem:[%s1 + $0x158] sm:$0xff]
  %v2764 = vld [vmem:[%s1 + $0x160] sm:$0xff]
  %v2765 = vld [vmem:[%s1 + $0x168] sm:$0xff]
  %v2766 = vld [vmem:[%s1 + $0x170] sm:$0xff]
  %v2767 = vld [vmem:[%s1 + $0x178] sm:$0xff]
  %v2768 = vld [vmem:[%s1 + $0x180] sm:$0xff]
  %v2769 = vld [vmem:[%s1 + $0x188] sm:$0x33]
  %v2770 = vpack.c.bf16 %v2728, %v2727
  %v2771 = vpack.c.bf16 %v2730, %v2729
  %v2772 = vpack.c.bf16 %v2732, %v2731
  %v2773 = vpack.c.bf16 %v2734, %v2733
  %v2774 = vpack.c.bf16 %v2736, %v2735
  %v2775 = vpack.c.bf16 %v2738, %v2737
  %v2776 = vpack.c.bf16 %v2740, %v2739
  %v2777 = vpack.c.bf16 %v2742, %v2741
  %v2778 = vpack.c.bf16 %v2744, %v2743
  %v2779 = vpack.c.bf16 %v2746, %v2745
  %v2780 = vpack.c.bf16 %v2748, %v2747
  %v2781 = vpack.c.bf16 %v2750, %v2749
  %v2782 = vpack.c.bf16 %v2752, %v2751
  %v2783 = vpack.c.bf16 %v2754, %v2753
  %v2784 = vpack.c.bf16 %v2756, %v2755
  %v2785 = vpack.c.bf16 %v2757, %v2757
  %v2786 = vld [vmem:[%s1 + $0x188] sm:$0xcc]
  %v2787 = vld [vmem:[%s1 + $0x190] sm:$0xff]
  %v2788 = vld [vmem:[%s1 + $0x198] sm:$0xff]
  %v2789 = vld [vmem:[%s1 + $0x1a0] sm:$0xff]
  %v2790 = vld [vmem:[%s1 + $0x1a8] sm:$0xff]
  %v2791 = vld [vmem:[%s1 + $0x1b0] sm:$0xff]
  %v2792 = vld [vmem:[%s1 + $0x1b8] sm:$0xff]
  %v2793 = vld [vmem:[%s1 + $0x1c0] sm:$0xff]
  %v2794 = vld [vmem:[%s1 + $0x1c8] sm:$0xff]
  %v2795 = vld [vmem:[%s1 + $0x1d0] sm:$0xff]
  %v2796 = vld [vmem:[%s1 + $0x1d8] sm:$0xff]
  %v2813 = vrot.slane %v2770, 1
  %v2814 = vrot.slane %v2771, 1
  %v2815 = vsel %vm745, %v2813, %v2814
  %v2816 = vrot.slane %v2772, 1
  %v2817 = vsel %vm745, %v2814, %v2816
  %v2818 = vrot.slane %v2773, 1
  %v2819 = vsel %vm745, %v2816, %v2818
  %v2820 = vrot.slane %v2774, 1
  %v2821 = vsel %vm745, %v2818, %v2820
  %v2822 = vrot.slane %v2775, 1
  %v2823 = vsel %vm745, %v2820, %v2822
  %v2824 = vrot.slane %v2776, 1
  %v2825 = vsel %vm745, %v2822, %v2824
  %v2826 = vrot.slane %v2777, 1
  %v2827 = vsel %vm745, %v2824, %v2826
  %v2828 = vrot.slane %v2778, 1
  %v2829 = vsel %vm745, %v2826, %v2828
  %v2830 = vrot.slane %v2779, 1
  %v2831 = vsel %vm745, %v2828, %v2830
  %v2832 = vrot.slane %v2780, 1
  %v2833 = vsel %vm745, %v2830, %v2832
  %v2834 = vrot.slane %v2781, 1
  %v2835 = vsel %vm745, %v2832, %v2834
  %v2836 = vrot.slane %v2782, 1
  %v2837 = vsel %vm745, %v2834, %v2836
  %v2838 = vrot.slane %v2783, 1
  %v2839 = vsel %vm745, %v2836, %v2838
  %v2840 = vrot.slane %v2784, 1
  %v2841 = vsel %vm745, %v2838, %v2840
  %v2842 = vrot.slane %v2785, 1
  %v2843 = vsel %vm745, %v2840, %v2842
  %v2855 = vunpack.c.l.b16 %v2786
  %v2856 = vunpack.c.h.b16 %v2786
  %v2857 = vunpack.c.l.b16 %v2787
  %v2858 = vunpack.c.h.b16 %v2787
  %v2859 = vunpack.c.l.b16 %v2788
  %v2860 = vunpack.c.h.b16 %v2788
  %v2861 = vunpack.c.l.b16 %v2789
  %v2862 = vunpack.c.h.b16 %v2789
  %v2863 = vunpack.c.l.b16 %v2790
  %v2864 = vunpack.c.h.b16 %v2790
  %v2865 = vunpack.c.l.b16 %v2791
  %v2866 = vunpack.c.h.b16 %v2791
  %v2867 = vunpack.c.l.b16 %v2792
  %v2868 = vunpack.c.h.b16 %v2792
  %v2869 = vunpack.c.l.b16 %v2793
  %v2870 = vunpack.c.h.b16 %v2793
  %v2871 = vunpack.c.l.b16 %v2794
  %v2872 = vunpack.c.h.b16 %v2794
  %v2873 = vunpack.c.l.b16 %v2795
  %v2874 = vunpack.c.h.b16 %v2795
  %v2875 = vunpack.c.l.b16 %v2796
  %v2876 = vunpack.c.h.b16 %v2796
  %v2877 = vpack.c.b16 %v2857, %v2855
  %v2878 = vpack.c.b16 %v2858, %v2856
  %v2879 = vpack.c.b16 %v2861, %v2859
  %v2880 = vpack.c.b16 %v2862, %v2860
  %v2881 = vpack.c.b16 %v2865, %v2863
  %v2882 = vpack.c.b16 %v2866, %v2864
  %v2883 = vpack.c.b16 %v2869, %v2867
  %v2884 = vpack.c.b16 %v2870, %v2868
  %v2885 = vpack.c.b16 %v2873, %v2871
  %v2886 = vpack.c.b16 %v2874, %v2872
  %v2887 = vpack.c.b16 %v2875, %v2875
  %v2888 = vpack.c.b16 %v2876, %v2876
  %v2889 = vrot.slane %v2877, 2
  %v2890 = vrot.slane %v2879, 2
  %v2891 = vsel %vm218, %v2889, %v2890
  %v2892 = vrot.slane %v2878, 2
  %v2893 = vrot.slane %v2880, 2
  %v2894 = vsel %vm218, %v2892, %v2893
  %v2895 = vrot.slane %v2881, 2
  %v2896 = vsel %vm218, %v2890, %v2895
  %v2897 = vrot.slane %v2882, 2
  %v2898 = vsel %vm218, %v2893, %v2897
  %v2899 = vrot.slane %v2883, 2
  %v2900 = vsel %vm218, %v2895, %v2899
  %v2901 = vrot.slane %v2884, 2
  %v2902 = vsel %vm218, %v2897, %v2901
  %v2903 = vrot.slane %v2885, 2
  %v2904 = vsel %vm218, %v2899, %v2903
  %v2905 = vrot.slane %v2886, 2
  %v2906 = vsel %vm218, %v2901, %v2905
  %v2907 = vrot.slane %v2887, 2
  %v2908 = vsel %vm218, %v2903, %v2907
  %v2909 = vrot.slane %v2888, 2
  %v2910 = vsel %vm218, %v2905, %v2909
  %vm2921 = vcmask 687104
  %v2923 = vsel %vm2921, %v2815, 0
  %v2926 = vsel %vm2921, %v2817, 0
  %v2929 = vsel %vm2921, %v2819, 0
  %v2932 = vsel %vm2921, %v2821, 0
  %v2935 = vsel %vm2921, %v2823, 0
  %v2938 = vsel %vm2921, %v2825, 0
  %v2941 = vsel %vm2921, %v2827, 0
  %v2944 = vsel %vm2921, %v2829, 0
  %v2947 = vsel %vm2921, %v2831, 0
  %v2950 = vsel %vm2921, %v2833, 0
  %v2953 = vsel %vm2921, %v2835, 0
  %v2956 = vsel %vm2921, %v2837, 0
  %v2959 = vsel %vm2921, %v2839, 0
  %v2962 = vsel %vm2921, %v2841, 0
  %v2965 = vsel %vm2921, %v2843, 0
  %v2968 = vsel %vm2921, %v2842, 0
  %vm2970 = vcmask 1041408
  %v2972 = vsel %vm2970, %v2907, 0
  %v2975 = vsel %vm2970, %v2909, 0
  %2977 = vmatprep.subr.bf16.mxu0 %v2894
  %2978 = vmatpush1.bf16.msra.mxu0 %v2891
  %2979 = vmatprep.subr.bf16.mxu0 %v2898
  %2980 = vmatpush1.bf16.msra.mxu0 %v2896
  %2981 = vmatprep.subr.bf16.mxu0 %v2902
  %2982 = vmatpush1.bf16.msra.mxu0 %v2900
  %2983 = vmatprep.subr.bf16.mxu0 %v2906
  %2984 = vmatpush1.bf16.msra.mxu0 %v2904
  %2985 = vmatprep.subr.bf16.mxu0 %v2910
  %2986 = vmatpush1.bf16.msra.mxu0 %v2908
  %2987 = vmatprep.subr.bf16.mxu0 %v2975
  %2988 = vmatpush1.bf16.msra.mxu0 %v2972
  %2989 = vmatprep.subr.bf16.mxu0 0
  %2990 = vmatpush1.bf16.msra.mxu0 0
  %2991 = vmatprep.subr.bf16.mxu0 0
  %2992 = vmatpush1.bf16.msra.mxu0 0
  %2993 = vmatprep.subr.bf16.mxu0 0
  %2994 = vmatpush1.bf16.msra.mxu0 0
  %2995 = vmatprep.subr.bf16.mxu0 0
  %2996 = vmatpush1.bf16.msra.mxu0 0
  %2997 = vmatprep.subr.bf16.mxu0 0
  %2998 = vmatpush1.bf16.msra.mxu0 0
  %2999 = vmatprep.subr.bf16.mxu0 0
  %3000 = vmatpush1.bf16.msra.mxu0 0
  %3001 = vmatprep.subr.bf16.mxu0 0
  %3002 = vmatpush1.bf16.msra.mxu0 0
  %3003 = vmatprep.subr.bf16.mxu0 0
  %3004 = vmatpush1.bf16.msra.mxu0 0
  %3005 = vmatprep.subr.bf16.mxu0 0
  %3006 = vmatpush1.bf16.msra.mxu0 0
  %3007 = vmatprep.subr.bf16.mxu0 0
  %3008 = vmatpush1.bf16.msra.mxu0 0
  %3009 = vmatprep.mubr.bf16.mxu0 0
  %3010 = vmatmul.mubr.bf16.gmra.mrb[0].mxu0 %v2923
  %v3011 = vpop.f32.mrb[0].mxu0
  %v3012 = vadd.f32 0.0, %v3011
  %v3013 = vpop.f32.mrb[0].mxu0
  %v3014 = vadd.f32 0.0, %v3013
  %v3015 = vpop.f32.mrb[0].mxu0
  %v3016 = vadd.f32 0.0, %v3015
  %v3017 = vpop.f32.mrb[0].mxu0
  %v3018 = vadd.f32 0.0, %v3017
  %3019 = vmatprep.mubr.bf16.mxu0 0
  %3020 = vmatmul.mubr.bf16.gmra.mrb[0].mxu0 %v2926
  %v3021 = vpop.f32.mrb[0].mxu0
  %v3022 = vadd.f32 0.0, %v3021
  %v3023 = vpop.f32.mrb[0].mxu0
  %v3024 = vadd.f32 0.0, %v3023
  %v3025 = vpop.f32.mrb[0].mxu0
  %v3026 = vadd.f32 0.0, %v3025
  %v3027 = vpop.f32.mrb[0].mxu0
  %v3028 = vadd.f32 0.0, %v3027
  %3029 = vmatprep.mubr.bf16.mxu0 0
  %3030 = vmatmul.mubr.bf16.gmra.mrb[0].mxu0 %v2929
  %v3031 = vpop.f32.mrb[0].mxu0
  %v3032 = vadd.f32 0.0, %v3031
  %v3033 = vpop.f32.mrb[0].mxu0
  %v3034 = vadd.f32 0.0, %v3033
  %v3035 = vpop.f32.mrb[0].mxu0
  %v3036 = vadd.f32 0.0, %v3035
  %v3037 = vpop.f32.mrb[0].mxu0
  %v3038 = vadd.f32 0.0, %v3037
  %3039 = vmatprep.mubr.bf16.mxu0 0
  %3040 = vmatmul.mubr.bf16.gmra.mrb[0].mxu0 %v2932
  %v3041 = vpop.f32.mrb[0].mxu0
  %v3042 = vadd.f32 0.0, %v3041
  %v3043 = vpop.f32.mrb[0].mxu0
  %v3044 = vadd.f32 0.0, %v3043
  %v3045 = vpop.f32.mrb[0].mxu0
  %v3046 = vadd.f32 0.0, %v3045
  %v3047 = vpop.f32.mrb[0].mxu0
  %v3048 = vadd.f32 0.0, %v3047
  %3049 = vmatprep.mubr.bf16.mxu0 0
  %3050 = vmatmul.mubr.bf16.gmra.mrb[0].mxu0 %v2935
  %v3051 = vpop.f32.mrb[0].mxu0
  %v3052 = vadd.f32 0.0, %v3051
  %v3053 = vpop.f32.mrb[0].mxu0
  %v3054 = vadd.f32 0.0, %v3053
  %v3055 = vpop.f32.mrb[0].mxu0
  %v3056 = vadd.f32 0.0, %v3055
  %v3057 = vpop.f32.mrb[0].mxu0
  %v3058 = vadd.f32 0.0, %v3057
  %3059 = vmatprep.mubr.bf16.mxu0 0
  %3060 = vmatmul.mubr.bf16.gmra.mrb[0].mxu0 %v2938
  %v3061 = vpop.f32.mrb[0].mxu0
  %v3062 = vadd.f32 0.0, %v3061
  %v3063 = vpop.f32.mrb[0].mxu0
  %v3064 = vadd.f32 0.0, %v3063
  %v3065 = vpop.f32.mrb[0].mxu0
  %v3066 = vadd.f32 0.0, %v3065
  %v3067 = vpop.f32.mrb[0].mxu0
  %v3068 = vadd.f32 0.0, %v3067
  %3069 = vmatprep.mubr.bf16.mxu0 0
  %3070 = vmatmul.mubr.bf16.gmra.mrb[0].mxu0 %v2941
  %v3071 = vpop.f32.mrb[0].mxu0
  %v3072 = vadd.f32 0.0, %v3071
  %v3073 = vpop.f32.mrb[0].mxu0
  %v3074 = vadd.f32 0.0, %v3073
  %v3075 = vpop.f32.mrb[0].mxu0
  %v3076 = vadd.f32 0.0, %v3075
  %v3077 = vpop.f32.mrb[0].mxu0
  %v3078 = vadd.f32 0.0, %v3077
  %3079 = vmatprep.mubr.bf16.mxu0 0
  %3080 = vmatmul.mubr.bf16.gmra.mrb[0].mxu0 %v2944
  %v3081 = vpop.f32.mrb[0].mxu0
  %v3082 = vadd.f32 0.0, %v3081
  %v3083 = vpop.f32.mrb[0].mxu0
  %v3084 = vadd.f32 0.0, %v3083
  %v3085 = vpop.f32.mrb[0].mxu0
  %v3086 = vadd.f32 0.0, %v3085
  %v3087 = vpop.f32.mrb[0].mxu0
  %v3088 = vadd.f32 0.0, %v3087
  %3089 = vmatprep.mubr.bf16.mxu0 0
  %3090 = vmatmul.mubr.bf16.gmra.mrb[0].mxu0 %v2947
  %v3091 = vpop.f32.mrb[0].mxu0
  %v3092 = vadd.f32 0.0, %v3091
  %v3093 = vpop.f32.mrb[0].mxu0
  %v3094 = vadd.f32 0.0, %v3093
  %v3095 = vpop.f32.mrb[0].mxu0
  %v3096 = vadd.f32 0.0, %v3095
  %v3097 = vpop.f32.mrb[0].mxu0
  %v3098 = vadd.f32 0.0, %v3097
  %3099 = vmatprep.mubr.bf16.mxu0 0
  %3100 = vmatmul.mubr.bf16.gmra.mrb[0].mxu0 %v2950
  %v3101 = vpop.f32.mrb[0].mxu0
  %v3102 = vadd.f32 0.0, %v3101
  %v3103 = vpop.f32.mrb[0].mxu0
  %v3104 = vadd.f32 0.0, %v3103
  %v3105 = vpop.f32.mrb[0].mxu0
  %v3106 = vadd.f32 0.0, %v3105
  %v3107 = vpop.f32.mrb[0].mxu0
  %v3108 = vadd.f32 0.0, %v3107
  %3109 = vmatprep.mubr.bf16.mxu0 0
  %3110 = vmatmul.mubr.bf16.gmra.mrb[0].mxu0 %v2953
  %v3111 = vpop.f32.mrb[0].mxu0
  %v3112 = vadd.f32 0.0, %v3111
  %v3113 = vpop.f32.mrb[0].mxu0
  %v3114 = vadd.f32 0.0, %v3113
  %v3115 = vpop.f32.mrb[0].mxu0
  %v3116 = vadd.f32 0.0, %v3115
  %v3117 = vpop.f32.mrb[0].mxu0
  %v3118 = vadd.f32 0.0, %v3117
  %3119 = vmatprep.mubr.bf16.mxu0 0
  %3120 = vmatmul.mubr.bf16.gmra.mrb[0].mxu0 %v2956
  %v3121 = vpop.f32.mrb[0].mxu0
  %v3122 = vadd.f32 0.0, %v3121
  %v3123 = vpop.f32.mrb[0].mxu0
  %v3124 = vadd.f32 0.0, %v3123
  %v3125 = vpop.f32.mrb[0].mxu0
  %v3126 = vadd.f32 0.0, %v3125
  %v3127 = vpop.f32.mrb[0].mxu0
  %v3128 = vadd.f32 0.0, %v3127
  %3129 = vmatprep.mubr.bf16.mxu0 0
  %3130 = vmatmul.mubr.bf16.gmra.mrb[0].mxu0 %v2959
  %v3131 = vpop.f32.mrb[0].mxu0
  %v3132 = vadd.f32 0.0, %v3131
  %v3133 = vpop.f32.mrb[0].mxu0
  %v3134 = vadd.f32 0.0, %v3133
  %v3135 = vpop.f32.mrb[0].mxu0
  %v3136 = vadd.f32 0.0, %v3135
  %v3137 = vpop.f32.mrb[0].mxu0
  %v3138 = vadd.f32 0.0, %v3137
  %3139 = vmatprep.mubr.bf16.mxu0 0
  %3140 = vmatmul.mubr.bf16.gmra.mrb[0].mxu0 %v2962
  %v3141 = vpop.f32.mrb[0].mxu0
  %v3142 = vadd.f32 0.0, %v3141
  %v3143 = vpop.f32.mrb[0].mxu0
  %v3144 = vadd.f32 0.0, %v3143
  %v3145 = vpop.f32.mrb[0].mxu0
  %v3146 = vadd.f32 0.0, %v3145
  %v3147 = vpop.f32.mrb[0].mxu0
  %v3148 = vadd.f32 0.0, %v3147
  %3149 = vmatprep.mubr.bf16.mxu0 0
  %3150 = vmatmul.mubr.bf16.gmra.mrb[0].mxu0 %v2965
  %v3151 = vpop.f32.mrb[0].mxu0
  %v3152 = vadd.f32 0.0, %v3151
  %v3153 = vpop.f32.mrb[0].mxu0
  %v3154 = vadd.f32 0.0, %v3153
  %v3155 = vpop.f32.mrb[0].mxu0
  %v3156 = vadd.f32 0.0, %v3155
  %v3157 = vpop.f32.mrb[0].mxu0
  %v3158 = vadd.f32 0.0, %v3157
  %3159 = vmatprep.mubr.bf16.mxu0 0
  %3160 = vmatmul.mubr.bf16.gmra.mrb[0].mxu0 %v2968
  %v3161 = vpop.f32.mrb[0].mxu0
  %v3162 = vadd.f32 0.0, %v3161
  %v3163 = vpop.f32.mrb[0].mxu0
  %v3164 = vadd.f32 0.0, %v3163
  %v3165 = vpop.f32.mrb[0].mxu0
  %v3166 = vpop.f32.mrb[0].mxu0
  %3167 = vdwg.mxu0
  %v3179 = vunpack.c.l.b16 %v2759
  %v3180 = vunpack.c.h.b16 %v2759
  %v3181 = vunpack.c.l.b16 %v2760
  %v3182 = vunpack.c.h.b16 %v2760
  %v3183 = vunpack.c.l.b16 %v2761
  %v3184 = vunpack.c.h.b16 %v2761
  %v3185 = vunpack.c.l.b16 %v2762
  %v3186 = vunpack.c.h.b16 %v2762
  %v3187 = vunpack.c.l.b16 %v2763
  %v3188 = vunpack.c.h.b16 %v2763
  %v3189 = vunpack.c.l.b16 %v2764
  %v3190 = vunpack.c.h.b16 %v2764
  %v3191 = vunpack.c.l.b16 %v2765
  %v3192 = vunpack.c.h.b16 %v2765
  %v3193 = vunpack.c.l.b16 %v2766
  %v3194 = vunpack.c.h.b16 %v2766
  %v3195 = vunpack.c.l.b16 %v2767
  %v3196 = vunpack.c.h.b16 %v2767
  %v3197 = vunpack.c.l.b16 %v2768
  %v3198 = vunpack.c.h.b16 %v2768
  %v3199 = vunpack.c.l.b16 %v2769
  %v3200 = vunpack.c.h.b16 %v2769
  %v3201 = vpack.c.b16 %v3181, %v3179
  %v3202 = vpack.c.b16 %v3182, %v3180
  %v3203 = vpack.c.b16 %v3185, %v3183
  %v3204 = vpack.c.b16 %v3186, %v3184
  %v3205 = vpack.c.b16 %v3189, %v3187
  %v3206 = vpack.c.b16 %v3190, %v3188
  %v3207 = vpack.c.b16 %v3193, %v3191
  %v3208 = vpack.c.b16 %v3194, %v3192
  %v3209 = vpack.c.b16 %v3197, %v3195
  %v3210 = vpack.c.b16 %v3198, %v3196
  %v3211 = vpack.c.b16 %v3199, %v3199
  %v3212 = vpack.c.b16 %v3200, %v3200
  %v3224 = vsel %vm2921, %v2770, 0
  %v3227 = vsel %vm2921, %v2771, 0
  %v3230 = vsel %vm2921, %v2772, 0
  %v3233 = vsel %vm2921, %v2773, 0
  %v3236 = vsel %vm2921, %v2774, 0
  %v3239 = vsel %vm2921, %v2775, 0
  %v3242 = vsel %vm2921, %v2776, 0
  %v3245 = vsel %vm2921, %v2777, 0
  %v3248 = vsel %vm2921, %v2778, 0
  %v3251 = vsel %vm2921, %v2779, 0
  %v3254 = vsel %vm2921, %v2780, 0
  %v3257 = vsel %vm2921, %v2781, 0
  %v3260 = vsel %vm2921, %v2782, 0
  %v3263 = vsel %vm2921, %v2783, 0
  %v3266 = vsel %vm2921, %v2784, 0
  %v3269 = vsel %vm2921, %v2785, 0
  %v3272 = vsel %vm2970, %v3211, 0
  %v3275 = vsel %vm2970, %v3212, 0
  %3277 = vmatprep.subr.bf16.mxu0 %v3202
  %3278 = vmatpush1.bf16.msra.mxu0 %v3201
  %3279 = vmatprep.subr.bf16.mxu0 %v3204
  %3280 = vmatpush1.bf16.msra.mxu0 %v3203
  %3281 = vmatprep.subr.bf16.mxu0 %v3206
  %3282 = vmatpush1.bf16.msra.mxu0 %v3205
  %3283 = vmatprep.subr.bf16.mxu0 %v3208
  %3284 = vmatpush1.bf16.msra.mxu0 %v3207
  %3285 = vmatprep.subr.bf16.mxu0 %v3210
  %3286 = vmatpush1.bf16.msra.mxu0 %v3209
  %3287 = vmatprep.subr.bf16.mxu0 %v3275
  %3288 = vmatpush1.bf16.msra.mxu0 %v3272
  %3289 = vmatprep.subr.bf16.mxu0 0
  %3290 = vmatpush1.bf16.msra.mxu0 0
  %3291 = vmatprep.subr.bf16.mxu0 0
  %3292 = vmatpush1.bf16.msra.mxu0 0
  %3293 = vmatprep.subr.bf16.mxu0 0
  %3294 = vmatpush1.bf16.msra.mxu0 0
  %3295 = vmatprep.subr.bf16.mxu0 0
  %3296 = vmatpush1.bf16.msra.mxu0 0
  %3297 = vmatprep.subr.bf16.mxu0 0
  %3298 = vmatpush1.bf16.msra.mxu0 0
  %3299 = vmatprep.subr.bf16.mxu0 0
  %3300 = vmatpush1.bf16.msra.mxu0 0
  %3301 = vmatprep.subr.bf16.mxu0 0
  %3302 = vmatpush1.bf16.msra.mxu0 0
  %3303 = vmatprep.subr.bf16.mxu0 0
  %3304 = vmatpush1.bf16.msra.mxu0 0
  %3305 = vmatprep.subr.bf16.mxu0 0
  %3306 = vmatpush1.bf16.msra.mxu0 0
  %3307 = vmatprep.subr.bf16.mxu0 0
  %3308 = vmatpush1.bf16.msra.mxu0 0
  %3309 = vmatprep.mubr.bf16.mxu0 0
  %3310 = vmatmul.mubr.bf16.gmra.mrb[0].mxu0 %v3224
  %v3311 = vpop.f32.mrb[0].mxu0
  %v3312 = vadd.f32 %v3012, %v3311
  %v3313 = vpop.f32.mrb[0].mxu0
  %v3314 = vadd.f32 %v3014, %v3313
  %v3315 = vpop.f32.mrb[0].mxu0
  %v3316 = vadd.f32 %v3016, %v3315
  %v3317 = vpop.f32.mrb[0].mxu0
  %v3318 = vadd.f32 %v3018, %v3317
  %3319 = vmatprep.mubr.bf16.mxu0 0
  %3320 = vmatmul.mubr.bf16.gmra.mrb[0].mxu0 %v3227
  %v3321 = vpop.f32.mrb[0].mxu0
  %v3322 = vadd.f32 %v3022, %v3321
  %v3323 = vpop.f32.mrb[0].mxu0
  %v3324 = vadd.f32 %v3024, %v3323
  %v3325 = vpop.f32.mrb[0].mxu0
  %v3326 = vadd.f32 %v3026, %v3325
  %v3327 = vpop.f32.mrb[0].mxu0
  %v3328 = vadd.f32 %v3028, %v3327
  %3329 = vmatprep.mubr.bf16.mxu0 0
  %3330 = vmatmul.mubr.bf16.gmra.mrb[0].mxu0 %v3230
  %v3331 = vpop.f32.mrb[0].mxu0
  %v3332 = vadd.f32 %v3032, %v3331
  %v3333 = vpop.f32.mrb[0].mxu0
  %v3334 = vadd.f32 %v3034, %v3333
  %v3335 = vpop.f32.mrb[0].mxu0
  %v3336 = vadd.f32 %v3036, %v3335
  %v3337 = vpop.f32.mrb[0].mxu0
  %v3338 = vadd.f32 %v3038, %v3337
  %3339 = vmatprep.mubr.bf16.mxu0 0
  %3340 = vmatmul.mubr.bf16.gmra.mrb[0].mxu0 %v3233
  %v3341 = vpop.f32.mrb[0].mxu0
  %v3342 = vadd.f32 %v3042, %v3341
  %v3343 = vpop.f32.mrb[0].mxu0
  %v3344 = vadd.f32 %v3044, %v3343
  %v3345 = vpop.f32.mrb[0].mxu0
  %v3346 = vadd.f32 %v3046, %v3345
  %v3347 = vpop.f32.mrb[0].mxu0
  %v3348 = vadd.f32 %v3048, %v3347
  %3349 = vmatprep.mubr.bf16.mxu0 0
  %3350 = vmatmul.mubr.bf16.gmra.mrb[0].mxu0 %v3236
  %v3351 = vpop.f32.mrb[0].mxu0
  %v3352 = vadd.f32 %v3052, %v3351
  %v3353 = vpop.f32.mrb[0].mxu0
  %v3354 = vadd.f32 %v3054, %v3353
  %v3355 = vpop.f32.mrb[0].mxu0
  %v3356 = vadd.f32 %v3056, %v3355
  %v3357 = vpop.f32.mrb[0].mxu0
  %v3358 = vadd.f32 %v3058, %v3357
  %3359 = vmatprep.mubr.bf16.mxu0 0
  %3360 = vmatmul.mubr.bf16.gmra.mrb[0].mxu0 %v3239
  %v3361 = vpop.f32.mrb[0].mxu0
  %v3362 = vadd.f32 %v3062, %v3361
  %v3363 = vpop.f32.mrb[0].mxu0
  %v3364 = vadd.f32 %v3064, %v3363
  %v3365 = vpop.f32.mrb[0].mxu0
  %v3366 = vadd.f32 %v3066, %v3365
  %v3367 = vpop.f32.mrb[0].mxu0
  %v3368 = vadd.f32 %v3068, %v3367
  %3369 = vmatprep.mubr.bf16.mxu0 0
  %3370 = vmatmul.mubr.bf16.gmra.mrb[0].mxu0 %v3242
  %v3371 = vpop.f32.mrb[0].mxu0
  %v3372 = vadd.f32 %v3072, %v3371
  %v3373 = vpop.f32.mrb[0].mxu0
  %v3374 = vadd.f32 %v3074, %v3373
  %v3375 = vpop.f32.mrb[0].mxu0
  %v3376 = vadd.f32 %v3076, %v3375
  %v3377 = vpop.f32.mrb[0].mxu0
  %v3378 = vadd.f32 %v3078, %v3377
  %3379 = vmatprep.mubr.bf16.mxu0 0
  %3380 = vmatmul.mubr.bf16.gmra.mrb[0].mxu0 %v3245
  %v3381 = vpop.f32.mrb[0].mxu0
  %v3382 = vadd.f32 %v3082, %v3381
  %v3383 = vpop.f32.mrb[0].mxu0
  %v3384 = vadd.f32 %v3084, %v3383
  %v3385 = vpop.f32.mrb[0].mxu0
  %v3386 = vadd.f32 %v3086, %v3385
  %v3387 = vpop.f32.mrb[0].mxu0
  %v3388 = vadd.f32 %v3088, %v3387
  %3389 = vmatprep.mubr.bf16.mxu0 0
  %3390 = vmatmul.mubr.bf16.gmra.mrb[0].mxu0 %v3248
  %v3391 = vpop.f32.mrb[0].mxu0
  %v3392 = vadd.f32 %v3092, %v3391
  %v3393 = vpop.f32.mrb[0].mxu0
  %v3394 = vadd.f32 %v3094, %v3393
  %v3395 = vpop.f32.mrb[0].mxu0
  %v3396 = vadd.f32 %v3096, %v3395
  %v3397 = vpop.f32.mrb[0].mxu0
  %v3398 = vadd.f32 %v3098, %v3397
  %3399 = vmatprep.mubr.bf16.mxu0 0
  %3400 = vmatmul.mubr.bf16.gmra.mrb[0].mxu0 %v3251
  %v3401 = vpop.f32.mrb[0].mxu0
  %v3402 = vadd.f32 %v3102, %v3401
  %v3403 = vpop.f32.mrb[0].mxu0
  %v3404 = vadd.f32 %v3104, %v3403
  %v3405 = vpop.f32.mrb[0].mxu0
  %v3406 = vadd.f32 %v3106, %v3405
  %v3407 = vpop.f32.mrb[0].mxu0
  %v3408 = vadd.f32 %v3108, %v3407
  %3409 = vmatprep.mubr.bf16.mxu0 0
  %3410 = vmatmul.mubr.bf16.gmra.mrb[0].mxu0 %v3254
  %v3411 = vpop.f32.mrb[0].mxu0
  %v3412 = vadd.f32 %v3112, %v3411
  %v3413 = vpop.f32.mrb[0].mxu0
  %v3414 = vadd.f32 %v3114, %v3413
  %v3415 = vpop.f32.mrb[0].mxu0
  %v3416 = vadd.f32 %v3116, %v3415
  %v3417 = vpop.f32.mrb[0].mxu0
  %v3418 = vadd.f32 %v3118, %v3417
  %3419 = vmatprep.mubr.bf16.mxu0 0
  %3420 = vmatmul.mubr.bf16.gmra.mrb[0].mxu0 %v3257
  %v3421 = vpop.f32.mrb[0].mxu0
  %v3422 = vadd.f32 %v3122, %v3421
  %v3423 = vpop.f32.mrb[0].mxu0
  %v3424 = vadd.f32 %v3124, %v3423
  %v3425 = vpop.f32.mrb[0].mxu0
  %v3426 = vadd.f32 %v3126, %v3425
  %v3427 = vpop.f32.mrb[0].mxu0
  %v3428 = vadd.f32 %v3128, %v3427
  %3429 = vmatprep.mubr.bf16.mxu0 0
  %3430 = vmatmul.mubr.bf16.gmra.mrb[0].mxu0 %v3260
  %v3431 = vpop.f32.mrb[0].mxu0
  %v3432 = vadd.f32 %v3132, %v3431
  %v3433 = vpop.f32.mrb[0].mxu0
  %v3434 = vadd.f32 %v3134, %v3433
  %v3435 = vpop.f32.mrb[0].mxu0
  %v3436 = vadd.f32 %v3136, %v3435
  %v3437 = vpop.f32.mrb[0].mxu0
  %v3438 = vadd.f32 %v3138, %v3437
  %3439 = vmatprep.mubr.bf16.mxu0 0
  %3440 = vmatmul.mubr.bf16.gmra.mrb[0].mxu0 %v3263
  %v3441 = vpop.f32.mrb[0].mxu0
  %v3442 = vadd.f32 %v3142, %v3441
  %v3443 = vpop.f32.mrb[0].mxu0
  %v3444 = vadd.f32 %v3144, %v3443
  %v3445 = vpop.f32.mrb[0].mxu0
  %v3446 = vadd.f32 %v3146, %v3445
  %v3447 = vpop.f32.mrb[0].mxu0
  %v3448 = vadd.f32 %v3148, %v3447
  %3449 = vmatprep.mubr.bf16.mxu0 0
  %3450 = vmatmul.mubr.bf16.gmra.mrb[0].mxu0 %v3266
  %v3451 = vpop.f32.mrb[0].mxu0
  %v3452 = vadd.f32 %v3152, %v3451
  %v3453 = vpop.f32.mrb[0].mxu0
  %v3454 = vadd.f32 %v3154, %v3453
  %v3455 = vpop.f32.mrb[0].mxu0
  %v3456 = vadd.f32 %v3156, %v3455
  %v3457 = vpop.f32.mrb[0].mxu0
  %v3458 = vadd.f32 %v3158, %v3457
  %3459 = vmatprep.mubr.bf16.mxu0 0
  %3460 = vmatmul.mubr.bf16.gmra.mrb[0].mxu0 %v3269
  %v3461 = vpop.f32.mrb[0].mxu0
  %v3462 = vadd.f32 %v3162, %v3461
  %v3463 = vpop.f32.mrb[0].mxu0
  %v3464 = vadd.f32 %v3164, %v3463
  %v3465 = vpop.f32.mrb[0].mxu0
  %v3466 = vpop.f32.mrb[0].mxu0
  %3467 = vdwg.mxu0
  %v3468 = vld [vmem:[%s1 + $0x1e0] sm:$0xff]
  %v3469 = vld [vmem:[%s1 + $0x1e8] sm:$0xff]
  %v3470 = vld [vmem:[%s1 + $0x1f0] sm:$0xff]
  %v3471 = vld [vmem:[%s1 + $0x1f8] sm:$0xff]
  %v3472 = vld [vmem:[%s1 + $0x200] sm:$0xff]
  %v3473 = vld [vmem:[%s1 + $0x208] sm:$0xff]
  %v3474 = vld [vmem:[%s1 + $0x210] sm:$0xff]
  %v3475 = vld [vmem:[%s1 + $0x218] sm:$0xff]
  %v3476 = vld [vmem:[%s1 + $0x220] sm:$0xff]
  %v3477 = vld [vmem:[%s1 + $0x228] sm:$0xff]
  %v3478 = vld [vmem:[%s1 + $0x230] sm:$0x33]
  %v3479 = vrot.slane %v2770, 2
  %v3480 = vrot.slane %v2771, 2
  %v3481 = vsel %vm218, %v3479, %v3480
  %v3482 = vrot.slane %v2772, 2
  %v3483 = vsel %vm218, %v3480, %v3482
  %v3484 = vrot.slane %v2773, 2
  %v3485 = vsel %vm218, %v3482, %v3484
  %v3486 = vrot.slane %v2774, 2
  %v3487 = vsel %vm218, %v3484, %v3486
  %v3488 = vrot.slane %v2775, 2
  %v3489 = vsel %vm218, %v3486, %v3488
  %v3490 = vrot.slane %v2776, 2
  %v3491 = vsel %vm218, %v3488, %v3490
  %v3492 = vrot.slane %v2777, 2
  %v3493 = vsel %vm218, %v3490, %v3492
  %v3494 = vrot.slane %v2778, 2
  %v3495 = vsel %vm218, %v3492, %v3494
  %v3496 = vrot.slane %v2779, 2
  %v3497 = vsel %vm218, %v3494, %v3496
  %v3498 = vrot.slane %v2780, 2
  %v3499 = vsel %vm218, %v3496, %v3498
  %v3500 = vrot.slane %v2781, 2
  %v3501 = vsel %vm218, %v3498, %v3500
  %v3502 = vrot.slane %v2782, 2
  %v3503 = vsel %vm218, %v3500, %v3502
  %v3504 = vrot.slane %v2783, 2
  %v3505 = vsel %vm218, %v3502, %v3504
  %v3506 = vrot.slane %v2784, 2
  %v3507 = vsel %vm218, %v3504, %v3506
  %v3508 = vrot.slane %v2785, 2
  %v3509 = vsel %vm218, %v3506, %v3508
  %v3521 = vunpack.c.l.b16 %v3468
  %v3522 = vunpack.c.h.b16 %v3468
  %v3523 = vunpack.c.l.b16 %v3469
  %v3524 = vunpack.c.h.b16 %v3469
  %v3525 = vunpack.c.l.b16 %v3470
  %v3526 = vunpack.c.h.b16 %v3470
  %v3527 = vunpack.c.l.b16 %v3471
  %v3528 = vunpack.c.h.b16 %v3471
  %v3529 = vunpack.c.l.b16 %v3472
  %v3530 = vunpack.c.h.b16 %v3472
  %v3531 = vunpack.c.l.b16 %v3473
  %v3532 = vunpack.c.h.b16 %v3473
  %v3533 = vunpack.c.l.b16 %v3474
  %v3534 = vunpack.c.h.b16 %v3474
  %v3535 = vunpack.c.l.b16 %v3475
  %v3536 = vunpack.c.h.b16 %v3475
  %v3537 = vunpack.c.l.b16 %v3476
  %v3538 = vunpack.c.h.b16 %v3476
  %v3539 = vunpack.c.l.b16 %v3477
  %v3540 = vunpack.c.h.b16 %v3477
  %v3541 = vunpack.c.l.b16 %v3478
  %v3542 = vunpack.c.h.b16 %v3478
  %v3543 = vpack.c.b16 %v3523, %v3521
  %v3544 = vpack.c.b16 %v3524, %v3522
  %v3545 = vpack.c.b16 %v3527, %v3525
  %v3546 = vpack.c.b16 %v3528, %v3526
  %v3547 = vpack.c.b16 %v3531, %v3529
  %v3548 = vpack.c.b16 %v3532, %v3530
  %v3549 = vpack.c.b16 %v3535, %v3533
  %v3550 = vpack.c.b16 %v3536, %v3534
  %v3551 = vpack.c.b16 %v3539, %v3537
  %v3552 = vpack.c.b16 %v3540, %v3538
  %v3553 = vpack.c.b16 %v3541, %v3541
  %v3554 = vpack.c.b16 %v3542, %v3542
  %v3566 = vsel %vm2921, %v3481, 0
  %v3569 = vsel %vm2921, %v3483, 0
  %v3572 = vsel %vm2921, %v3485, 0
  %v3575 = vsel %vm2921, %v3487, 0
  %v3578 = vsel %vm2921, %v3489, 0
  %v3581 = vsel %vm2921, %v3491, 0
  %v3584 = vsel %vm2921, %v3493, 0
  %v3587 = vsel %vm2921, %v3495, 0
  %v3590 = vsel %vm2921, %v3497, 0
  %v3593 = vsel %vm2921, %v3499, 0
  %v3596 = vsel %vm2921, %v3501, 0
  %v3599 = vsel %vm2921, %v3503, 0
  %v3602 = vsel %vm2921, %v3505, 0
  %v3605 = vsel %vm2921, %v3507, 0
  %v3608 = vsel %vm2921, %v3509, 0
  %v3611 = vsel %vm2921, %v3508, 0
  %v3614 = vsel %vm2970, %v3553, 0
  %v3617 = vsel %vm2970, %v3554, 0
  %3619 = vmatprep.subr.bf16.mxu0 %v3544
  %3620 = vmatpush1.bf16.msra.mxu0 %v3543
  %3621 = vmatprep.subr.bf16.mxu0 %v3546
  %3622 = vmatpush1.bf16.msra.mxu0 %v3545
  %3623 = vmatprep.subr.bf16.mxu0 %v3548
  %3624 = vmatpush1.bf16.msra.mxu0 %v3547
  %3625 = vmatprep.subr.bf16.mxu0 %v3550
  %3626 = vmatpush1.bf16.msra.mxu0 %v3549
  %3627 = vmatprep.subr.bf16.mxu0 %v3552
  %3628 = vmatpush1.bf16.msra.mxu0 %v3551
  %3629 = vmatprep.subr.bf16.mxu0 %v3617
  %3630 = vmatpush1.bf16.msra.mxu0 %v3614
  %3631 = vmatprep.subr.bf16.mxu0 0
  %3632 = vmatpush1.bf16.msra.mxu0 0
  %3633 = vmatprep.subr.bf16.mxu0 0
  %3634 = vmatpush1.bf16.msra.mxu0 0
  %3635 = vmatprep.subr.bf16.mxu0 0
  %3636 = vmatpush1.bf16.msra.mxu0 0
  %3637 = vmatprep.subr.bf16.mxu0 0
  %3638 = vmatpush1.bf16.msra.mxu0 0
  %3639 = vmatprep.subr.bf16.mxu0 0
  %3640 = vmatpush1.bf16.msra.mxu0 0
  %3641 = vmatprep.subr.bf16.mxu0 0
  %3642 = vmatpush1.bf16.msra.mxu0 0
  %3643 = vmatprep.subr.bf16.mxu0 0
  %3644 = vmatpush1.bf16.msra.mxu0 0
  %3645 = vmatprep.subr.bf16.mxu0 0
  %3646 = vmatpush1.bf16.msra.mxu0 0
  %3647 = vmatprep.subr.bf16.mxu0 0
  %3648 = vmatpush1.bf16.msra.mxu0 0
  %3649 = vmatprep.subr.bf16.mxu0 0
  %3650 = vmatpush1.bf16.msra.mxu0 0
  %3651 = vmatprep.mubr.bf16.mxu0 0
  %3652 = vmatmul.mubr.bf16.gmra.mrb[0].mxu0 %v3566
  %v3653 = vpop.f32.mrb[0].mxu0
  %v3654 = vadd.f32 0.0, %v3653
  %v3655 = vpop.f32.mrb[0].mxu0
  %v3656 = vadd.f32 0.0, %v3655
  %v3657 = vpop.f32.mrb[0].mxu0
  %v3658 = vadd.f32 0.0, %v3657
  %v3659 = vpop.f32.mrb[0].mxu0
  %v3660 = vadd.f32 0.0, %v3659
  %3661 = vmatprep.mubr.bf16.mxu0 0
  %3662 = vmatmul.mubr.bf16.gmra.mrb[0].mxu0 %v3569
  %v3663 = vpop.f32.mrb[0].mxu0
  %v3664 = vadd.f32 0.0, %v3663
  %v3665 = vpop.f32.mrb[0].mxu0
  %v3666 = vadd.f32 0.0, %v3665
  %v3667 = vpop.f32.mrb[0].mxu0
  %v3668 = vadd.f32 0.0, %v3667
  %v3669 = vpop.f32.mrb[0].mxu0
  %v3670 = vadd.f32 0.0, %v3669
  %3671 = vmatprep.mubr.bf16.mxu0 0
  %3672 = vmatmul.mubr.bf16.gmra.mrb[0].mxu0 %v3572
  %v3673 = vpop.f32.mrb[0].mxu0
  %v3674 = vadd.f32 0.0, %v3673
  %v3675 = vpop.f32.mrb[0].mxu0
  %v3676 = vadd.f32 0.0, %v3675
  %v3677 = vpop.f32.mrb[0].mxu0
  %v3678 = vadd.f32 0.0, %v3677
  %v3679 = vpop.f32.mrb[0].mxu0
  %v3680 = vadd.f32 0.0, %v3679
  %3681 = vmatprep.mubr.bf16.mxu0 0
  %3682 = vmatmul.mubr.bf16.gmra.mrb[0].mxu0 %v3575
  %v3683 = vpop.f32.mrb[0].mxu0
  %v3684 = vadd.f32 0.0, %v3683
  %v3685 = vpop.f32.mrb[0].mxu0
  %v3686 = vadd.f32 0.0, %v3685
  %v3687 = vpop.f32.mrb[0].mxu0
  %v3688 = vadd.f32 0.0, %v3687
  %v3689 = vpop.f32.mrb[0].mxu0
  %v3690 = vadd.f32 0.0, %v3689
  %3691 = vmatprep.mubr.bf16.mxu0 0
  %3692 = vmatmul.mubr.bf16.gmra.mrb[0].mxu0 %v3578
  %v3693 = vpop.f32.mrb[0].mxu0
  %v3694 = vadd.f32 0.0, %v3693
  %v3695 = vpop.f32.mrb[0].mxu0
  %v3696 = vadd.f32 0.0, %v3695
  %v3697 = vpop.f32.mrb[0].mxu0
  %v3698 = vadd.f32 0.0, %v3697
  %v3699 = vpop.f32.mrb[0].mxu0
  %v3700 = vadd.f32 0.0, %v3699
  %3701 = vmatprep.mubr.bf16.mxu0 0
  %3702 = vmatmul.mubr.bf16.gmra.mrb[0].mxu0 %v3581
  %v3703 = vpop.f32.mrb[0].mxu0
  %v3704 = vadd.f32 0.0, %v3703
  %v3705 = vpop.f32.mrb[0].mxu0
  %v3706 = vadd.f32 0.0, %v3705
  %v3707 = vpop.f32.mrb[0].mxu0
  %v3708 = vadd.f32 0.0, %v3707
  %v3709 = vpop.f32.mrb[0].mxu0
  %v3710 = vadd.f32 0.0, %v3709
  %3711 = vmatprep.mubr.bf16.mxu0 0
  %3712 = vmatmul.mubr.bf16.gmra.mrb[0].mxu0 %v3584
  %v3713 = vpop.f32.mrb[0].mxu0
  %v3714 = vadd.f32 0.0, %v3713
  %v3715 = vpop.f32.mrb[0].mxu0
  %v3716 = vadd.f32 0.0, %v3715
  %v3717 = vpop.f32.mrb[0].mxu0
  %v3718 = vadd.f32 0.0, %v3717
  %v3719 = vpop.f32.mrb[0].mxu0
  %v3720 = vadd.f32 0.0, %v3719
  %3721 = vmatprep.mubr.bf16.mxu0 0
  %3722 = vmatmul.mubr.bf16.gmra.mrb[0].mxu0 %v3587
  %v3723 = vpop.f32.mrb[0].mxu0
  %v3724 = vadd.f32 0.0, %v3723
  %v3725 = vpop.f32.mrb[0].mxu0
  %v3726 = vadd.f32 0.0, %v3725
  %v3727 = vpop.f32.mrb[0].mxu0
  %v3728 = vadd.f32 0.0, %v3727
  %v3729 = vpop.f32.mrb[0].mxu0
  %v3730 = vadd.f32 0.0, %v3729
  %3731 = vmatprep.mubr.bf16.mxu0 0
  %3732 = vmatmul.mubr.bf16.gmra.mrb[0].mxu0 %v3590
  %v3733 = vpop.f32.mrb[0].mxu0
  %v3734 = vadd.f32 0.0, %v3733
  %v3735 = vpop.f32.mrb[0].mxu0
  %v3736 = vadd.f32 0.0, %v3735
  %v3737 = vpop.f32.mrb[0].mxu0
  %v3738 = vadd.f32 0.0, %v3737
  %v3739 = vpop.f32.mrb[0].mxu0
  %v3740 = vadd.f32 0.0, %v3739
  %3741 = vmatprep.mubr.bf16.mxu0 0
  %3742 = vmatmul.mubr.bf16.gmra.mrb[0].mxu0 %v3593
  %v3743 = vpop.f32.mrb[0].mxu0
  %v3744 = vadd.f32 0.0, %v3743
  %v3745 = vpop.f32.mrb[0].mxu0
  %v3746 = vadd.f32 0.0, %v3745
  %v3747 = vpop.f32.mrb[0].mxu0
  %v3748 = vadd.f32 0.0, %v3747
  %v3749 = vpop.f32.mrb[0].mxu0
  %v3750 = vadd.f32 0.0, %v3749
  %3751 = vmatprep.mubr.bf16.mxu0 0
  %3752 = vmatmul.mubr.bf16.gmra.mrb[0].mxu0 %v3596
  %v3753 = vpop.f32.mrb[0].mxu0
  %v3754 = vadd.f32 0.0, %v3753
  %v3755 = vpop.f32.mrb[0].mxu0
  %v3756 = vadd.f32 0.0, %v3755
  %v3757 = vpop.f32.mrb[0].mxu0
  %v3758 = vadd.f32 0.0, %v3757
  %v3759 = vpop.f32.mrb[0].mxu0
  %v3760 = vadd.f32 0.0, %v3759
  %3761 = vmatprep.mubr.bf16.mxu0 0
  %3762 = vmatmul.mubr.bf16.gmra.mrb[0].mxu0 %v3599
  %v3763 = vpop.f32.mrb[0].mxu0
  %v3764 = vadd.f32 0.0, %v3763
  %v3765 = vpop.f32.mrb[0].mxu0
  %v3766 = vadd.f32 0.0, %v3765
  %v3767 = vpop.f32.mrb[0].mxu0
  %v3768 = vadd.f32 0.0, %v3767
  %v3769 = vpop.f32.mrb[0].mxu0
  %v3770 = vadd.f32 0.0, %v3769
  %3771 = vmatprep.mubr.bf16.mxu0 0
  %3772 = vmatmul.mubr.bf16.gmra.mrb[0].mxu0 %v3602
  %v3773 = vpop.f32.mrb[0].mxu0
  %v3774 = vadd.f32 0.0, %v3773
  %v3775 = vpop.f32.mrb[0].mxu0
  %v3776 = vadd.f32 0.0, %v3775
  %v3777 = vpop.f32.mrb[0].mxu0
  %v3778 = vadd.f32 0.0, %v3777
  %v3779 = vpop.f32.mrb[0].mxu0
  %v3780 = vadd.f32 0.0, %v3779
  %3781 = vmatprep.mubr.bf16.mxu0 0
  %3782 = vmatmul.mubr.bf16.gmra.mrb[0].mxu0 %v3605
  %v3783 = vpop.f32.mrb[0].mxu0
  %v3784 = vadd.f32 0.0, %v3783
  %v3785 = vpop.f32.mrb[0].mxu0
  %v3786 = vadd.f32 0.0, %v3785
  %v3787 = vpop.f32.mrb[0].mxu0
  %v3788 = vadd.f32 0.0, %v3787
  %v3789 = vpop.f32.mrb[0].mxu0
  %v3790 = vadd.f32 0.0, %v3789
  %3791 = vmatprep.mubr.bf16.mxu0 0
  %3792 = vmatmul.mubr.bf16.gmra.mrb[0].mxu0 %v3608
  %v3793 = vpop.f32.mrb[0].mxu0
  %v3794 = vadd.f32 0.0, %v3793
  %v3795 = vpop.f32.mrb[0].mxu0
  %v3796 = vadd.f32 0.0, %v3795
  %v3797 = vpop.f32.mrb[0].mxu0
  %v3798 = vadd.f32 0.0, %v3797
  %v3799 = vpop.f32.mrb[0].mxu0
  %v3800 = vadd.f32 0.0, %v3799
  %3801 = vmatprep.mubr.bf16.mxu0 0
  %3802 = vmatmul.mubr.bf16.gmra.mrb[0].mxu0 %v3611
  %v3803 = vpop.f32.mrb[0].mxu0
  %v3804 = vadd.f32 0.0, %v3803
  %v3805 = vpop.f32.mrb[0].mxu0
  %v3806 = vadd.f32 0.0, %v3805
  %v3807 = vpop.f32.mrb[0].mxu0
  %v3808 = vpop.f32.mrb[0].mxu0
  %3809 = vdwg.mxu0
  %v3810 = vadd.f32 %v3312, %v3654
  %v3811 = vadd.f32 %v3314, %v3656
  %v3812 = vadd.f32 %v3316, %v3658
  %v3813 = vadd.f32 %v3318, %v3660
  %v3814 = vadd.f32 %v3322, %v3664
  %v3815 = vadd.f32 %v3324, %v3666
  %v3816 = vadd.f32 %v3326, %v3668
  %v3817 = vadd.f32 %v3328, %v3670
  %v3818 = vadd.f32 %v3332, %v3674
  %v3819 = vadd.f32 %v3334, %v3676
  %v3820 = vadd.f32 %v3336, %v3678
  %v3821 = vadd.f32 %v3338, %v3680
  %v3822 = vadd.f32 %v3342, %v3684
  %v3823 = vadd.f32 %v3344, %v3686
  %v3824 = vadd.f32 %v3346, %v3688
  %v3825 = vadd.f32 %v3348, %v3690
  %v3826 = vadd.f32 %v3352, %v3694
  %v3827 = vadd.f32 %v3354, %v3696
  %v3828 = vadd.f32 %v3356, %v3698
  %v3829 = vadd.f32 %v3358, %v3700
  %v3830 = vadd.f32 %v3362, %v3704
  %v3831 = vadd.f32 %v3364, %v3706
  %v3832 = vadd.f32 %v3366, %v3708
  %v3833 = vadd.f32 %v3368, %v3710
  %v3834 = vadd.f32 %v3372, %v3714
  %v3835 = vadd.f32 %v3374, %v3716
  %v3836 = vadd.f32 %v3376, %v3718
  %v3837 = vadd.f32 %v3378, %v3720
  %v3838 = vadd.f32 %v3382, %v3724
  %v3839 = vadd.f32 %v3384, %v3726
  %v3840 = vadd.f32 %v3386, %v3728
  %v3841 = vadd.f32 %v3388, %v3730
  %v3842 = vadd.f32 %v3392, %v3734
  %v3843 = vadd.f32 %v3394, %v3736
  %v3844 = vadd.f32 %v3396, %v3738
  %v3845 = vadd.f32 %v3398, %v3740
  %v3846 = vadd.f32 %v3402, %v3744
  %v3847 = vadd.f32 %v3404, %v3746
  %v3848 = vadd.f32 %v3406, %v3748
  %v3849 = vadd.f32 %v3408, %v3750
  %v3850 = vadd.f32 %v3412, %v3754
  %v3851 = vadd.f32 %v3414, %v3756
  %v3852 = vadd.f32 %v3416, %v3758
  %v3853 = vadd.f32 %v3418, %v3760
  %v3854 = vadd.f32 %v3422, %v3764
  %v3855 = vadd.f32 %v3424, %v3766
  %v3856 = vadd.f32 %v3426, %v3768
  %v3857 = vadd.f32 %v3428, %v3770
  %v3858 = vadd.f32 %v3432, %v3774
  %v3859 = vadd.f32 %v3434, %v3776
  %v3860 = vadd.f32 %v3436, %v3778
  %v3861 = vadd.f32 %v3438, %v3780
  %v3862 = vadd.f32 %v3442, %v3784
  %v3863 = vadd.f32 %v3444, %v3786
  %v3864 = vadd.f32 %v3446, %v3788
  %v3865 = vadd.f32 %v3448, %v3790
  %v3866 = vadd.f32 %v3452, %v3794
  %v3867 = vadd.f32 %v3454, %v3796
  %v3868 = vadd.f32 %v3456, %v3798
  %v3869 = vadd.f32 %v3458, %v3800
  %v3870 = vadd.f32 %v3462, %v3804
  %v3871 = vadd.f32 %v3464, %v3806
  %v3872 = vld [vmem:[%s1 + $0x230] sm:$0xcc]
  %v3873 = vld [vmem:[%s1 + $0x238] sm:$0xff]
  %v3874 = vld [vmem:[%s1 + $0x240] sm:$0xff]
  %v3875 = vld [vmem:[%s1 + $0x248] sm:$0xff]
  %v3876 = vld [vmem:[%s1 + $0x250] sm:$0xff]
  %v3877 = vld [vmem:[%s1 + $0x258] sm:$0xff]
  %v3878 = vld [vmem:[%s1 + $0x260] sm:$0xff]
  %v3879 = vld [vmem:[%s1 + $0x268] sm:$0xff]
  %v3880 = vld [vmem:[%s1 + $0x270] sm:$0xff]
  %v3881 = vld [vmem:[%s1 + $0x278] sm:$0xff]
  %v3882 = vld [vmem:[%s1 + $0x280] sm:$0xff]
  %v3883 = vpack.c.bf16 %v2758, %v2757
  %vm3885 = vcmask 1044480
  %v3886 = vrot.slane %v2770, 3
  %v3887 = vrot.slane %v2771, 3
  %v3888 = vsel %vm3885, %v3886, %v3887
  %v3889 = vrot.slane %v2772, 3
  %v3890 = vsel %vm3885, %v3887, %v3889
  %v3891 = vrot.slane %v2773, 3
  %v3892 = vsel %vm3885, %v3889, %v3891
  %v3893 = vrot.slane %v2774, 3
  %v3894 = vsel %vm3885, %v3891, %v3893
  %v3895 = vrot.slane %v2775, 3
  %v3896 = vsel %vm3885, %v3893, %v3895
  %v3897 = vrot.slane %v2776, 3
  %v3898 = vsel %vm3885, %v3895, %v3897
  %v3899 = vrot.slane %v2777, 3
  %v3900 = vsel %vm3885, %v3897, %v3899
  %v3901 = vrot.slane %v2778, 3
  %v3902 = vsel %vm3885, %v3899, %v3901
  %v3903 = vrot.slane %v2779, 3
  %v3904 = vsel %vm3885, %v3901, %v3903
  %v3905 = vrot.slane %v2780, 3
  %v3906 = vsel %vm3885, %v3903, %v3905
  %v3907 = vrot.slane %v2781, 3
  %v3908 = vsel %vm3885, %v3905, %v3907
  %v3909 = vrot.slane %v2782, 3
  %v3910 = vsel %vm3885, %v3907, %v3909
  %v3911 = vrot.slane %v2783, 3
  %v3912 = vsel %vm3885, %v3909, %v3911
  %v3913 = vrot.slane %v2784, 3
  %v3914 = vsel %vm3885, %v3911, %v3913
  %v3915 = vrot.slane %v3883, 3
  %v3916 = vsel %vm3885, %v3913, %v3915
  %v3928 = vunpack.c.l.b16 %v3872
  %v3929 = vunpack.c.h.b16 %v3872
  %v3930 = vunpack.c.l.b16 %v3873
  %v3931 = vunpack.c.h.b16 %v3873
  %v3932 = vunpack.c.l.b16 %v3874
  %v3933 = vunpack.c.h.b16 %v3874
  %v3934 = vunpack.c.l.b16 %v3875
  %v3935 = vunpack.c.h.b16 %v3875
  %v3936 = vunpack.c.l.b16 %v3876
  %v3937 = vunpack.c.h.b16 %v3876
  %v3938 = vunpack.c.l.b16 %v3877
  %v3939 = vunpack.c.h.b16 %v3877
  %v3940 = vunpack.c.l.b16 %v3878
  %v3941 = vunpack.c.h.b16 %v3878
  %v3942 = vunpack.c.l.b16 %v3879
  %v3943 = vunpack.c.h.b16 %v3879
  %v3944 = vunpack.c.l.b16 %v3880
  %v3945 = vunpack.c.h.b16 %v3880
  %v3946 = vunpack.c.l.b16 %v3881
  %v3947 = vunpack.c.h.b16 %v3881
  %v3948 = vunpack.c.l.b16 %v3882
  %v3949 = vunpack.c.h.b16 %v3882
  %v3950 = vpack.c.b16 %v3930, %v3928
  %v3951 = vpack.c.b16 %v3931, %v3929
  %v3952 = vpack.c.b16 %v3934, %v3932
  %v3953 = vpack.c.b16 %v3935, %v3933
  %v3954 = vpack.c.b16 %v3938, %v3936
  %v3955 = vpack.c.b16 %v3939, %v3937
  %v3956 = vpack.c.b16 %v3942, %v3940
  %v3957 = vpack.c.b16 %v3943, %v3941
  %v3958 = vpack.c.b16 %v3946, %v3944
  %v3959 = vpack.c.b16 %v3947, %v3945
  %v3960 = vpack.c.b16 %v3948, %v3948
  %v3961 = vpack.c.b16 %v3949, %v3949
  %v3962 = vrot.slane %v3950, 2
  %v3963 = vrot.slane %v3952, 2
  %v3964 = vsel %vm218, %v3962, %v3963
  %v3965 = vrot.slane %v3951, 2
  %v3966 = vrot.slane %v3953, 2
  %v3967 = vsel %vm218, %v3965, %v3966
  %v3968 = vrot.slane %v3954, 2
  %v3969 = vsel %vm218, %v3963, %v3968
  %v3970 = vrot.slane %v3955, 2
  %v3971 = vsel %vm218, %v3966, %v3970
  %v3972 = vrot.slane %v3956, 2
  %v3973 = vsel %vm218, %v3968, %v3972
  %v3974 = vrot.slane %v3957, 2
  %v3975 = vsel %vm218, %v3970, %v3974
  %v3976 = vrot.slane %v3958, 2
  %v3977 = vsel %vm218, %v3972, %v3976
  %v3978 = vrot.slane %v3959, 2
  %v3979 = vsel %vm218, %v3974, %v3978
  %v3980 = vrot.slane %v3960, 2
  %v3981 = vsel %vm218, %v3976, %v3980
  %v3982 = vrot.slane %v3961, 2
  %v3983 = vsel %vm218, %v3978, %v3982
  %v3995 = vsel %vm2921, %v3888, 0
  %v3998 = vsel %vm2921, %v3890, 0
  %v4001 = vsel %vm2921, %v3892, 0
  %v4004 = vsel %vm2921, %v3894, 0
  %v4007 = vsel %vm2921, %v3896, 0
  %v4010 = vsel %vm2921, %v3898, 0
  %v4013 = vsel %vm2921, %v3900, 0
  %v4016 = vsel %vm2921, %v3902, 0
  %v4019 = vsel %vm2921, %v3904, 0
  %v4022 = vsel %vm2921, %v3906, 0
  %v4025 = vsel %vm2921, %v3908, 0
  %v4028 = vsel %vm2921, %v3910, 0
  %v4031 = vsel %vm2921, %v3912, 0
  %v4034 = vsel %vm2921, %v3914, 0
  %v4037 = vsel %vm2921, %v3916, 0
  %v4040 = vsel %vm2921, %v3915, 0
  %v4043 = vsel %vm2970, %v3980, 0
  %v4046 = vsel %vm2970, %v3982, 0
  %4048 = vmatprep.subr.bf16.mxu0 %v3967
  %4049 = vmatpush1.bf16.msra.mxu0 %v3964
  %4050 = vmatprep.subr.bf16.mxu0 %v3971
  %4051 = vmatpush1.bf16.msra.mxu0 %v3969
  %4052 = vmatprep.subr.bf16.mxu0 %v3975
  %4053 = vmatpush1.bf16.msra.mxu0 %v3973
  %4054 = vmatprep.subr.bf16.mxu0 %v3979
  %4055 = vmatpush1.bf16.msra.mxu0 %v3977
  %4056 = vmatprep.subr.bf16.mxu0 %v3983
  %4057 = vmatpush1.bf16.msra.mxu0 %v3981
  %4058 = vmatprep.subr.bf16.mxu0 %v4046
  %4059 = vmatpush1.bf16.msra.mxu0 %v4043
  %4060 = vmatprep.subr.bf16.mxu0 0
  %4061 = vmatpush1.bf16.msra.mxu0 0
  %4062 = vmatprep.subr.bf16.mxu0 0
  %4063 = vmatpush1.bf16.msra.mxu0 0
  %4064 = vmatprep.subr.bf16.mxu0 0
  %4065 = vmatpush1.bf16.msra.mxu0 0
  %4066 = vmatprep.subr.bf16.mxu0 0
  %4067 = vmatpush1.bf16.msra.mxu0 0
  %4068 = vmatprep.subr.bf16.mxu0 0
  %4069 = vmatpush1.bf16.msra.mxu0 0
  %4070 = vmatprep.subr.bf16.mxu0 0
  %4071 = vmatpush1.bf16.msra.mxu0 0
  %4072 = vmatprep.subr.bf16.mxu0 0
  %4073 = vmatpush1.bf16.msra.mxu0 0
  %4074 = vmatprep.subr.bf16.mxu0 0
  %4075 = vmatpush1.bf16.msra.mxu0 0
  %4076 = vmatprep.subr.bf16.mxu0 0
  %4077 = vmatpush1.bf16.msra.mxu0 0
  %4078 = vmatprep.subr.bf16.mxu0 0
  %4079 = vmatpush1.bf16.msra.mxu0 0
  %4080 = vmatprep.mubr.bf16.mxu0 0
  %4081 = vmatmul.mubr.bf16.gmra.mrb[0].mxu0 %v3995
  %v4082 = vpop.f32.mrb[0].mxu0
  %v4083 = vadd.f32 0.0, %v4082
  %v4084 = vpop.f32.mrb[0].mxu0
  %v4085 = vadd.f32 0.0, %v4084
  %v4086 = vpop.f32.mrb[0].mxu0
  %v4087 = vadd.f32 0.0, %v4086
  %v4088 = vpop.f32.mrb[0].mxu0
  %v4089 = vadd.f32 0.0, %v4088
  %4090 = vmatprep.mubr.bf16.mxu0 0
  %4091 = vmatmul.mubr.bf16.gmra.mrb[0].mxu0 %v3998
  %v4092 = vpop.f32.mrb[0].mxu0
  %v4093 = vadd.f32 0.0, %v4092
  %v4094 = vpop.f32.mrb[0].mxu0
  %v4095 = vadd.f32 0.0, %v4094
  %v4096 = vpop.f32.mrb[0].mxu0
  %v4097 = vadd.f32 0.0, %v4096
  %v4098 = vpop.f32.mrb[0].mxu0
  %v4099 = vadd.f32 0.0, %v4098
  %4100 = vmatprep.mubr.bf16.mxu0 0
  %4101 = vmatmul.mubr.bf16.gmra.mrb[0].mxu0 %v4001
  %v4102 = vpop.f32.mrb[0].mxu0
  %v4103 = vadd.f32 0.0, %v4102
  %v4104 = vpop.f32.mrb[0].mxu0
  %v4105 = vadd.f32 0.0, %v4104
  %v4106 = vpop.f32.mrb[0].mxu0
  %v4107 = vadd.f32 0.0, %v4106
  %v4108 = vpop.f32.mrb[0].mxu0
  %v4109 = vadd.f32 0.0, %v4108
  %4110 = vmatprep.mubr.bf16.mxu0 0
  %4111 = vmatmul.mubr.bf16.gmra.mrb[0].mxu0 %v4004
  %v4112 = vpop.f32.mrb[0].mxu0
  %v4113 = vadd.f32 0.0, %v4112
  %v4114 = vpop.f32.mrb[0].mxu0
  %v4115 = vadd.f32 0.0, %v4114
  %v4116 = vpop.f32.mrb[0].mxu0
  %v4117 = vadd.f32 0.0, %v4116
  %v4118 = vpop.f32.mrb[0].mxu0
  %v4119 = vadd.f32 0.0, %v4118
  %4120 = vmatprep.mubr.bf16.mxu0 0
  %4121 = vmatmul.mubr.bf16.gmra.mrb[0].mxu0 %v4007
  %v4122 = vpop.f32.mrb[0].mxu0
  %v4123 = vadd.f32 0.0, %v4122
  %v4124 = vpop.f32.mrb[0].mxu0
  %v4125 = vadd.f32 0.0, %v4124
  %v4126 = vpop.f32.mrb[0].mxu0
  %v4127 = vadd.f32 0.0, %v4126
  %v4128 = vpop.f32.mrb[0].mxu0
  %v4129 = vadd.f32 0.0, %v4128
  %4130 = vmatprep.mubr.bf16.mxu0 0
  %4131 = vmatmul.mubr.bf16.gmra.mrb[0].mxu0 %v4010
  %v4132 = vpop.f32.mrb[0].mxu0
  %v4133 = vadd.f32 0.0, %v4132
  %v4134 = vpop.f32.mrb[0].mxu0
  %v4135 = vadd.f32 0.0, %v4134
  %v4136 = vpop.f32.mrb[0].mxu0
  %v4137 = vadd.f32 0.0, %v4136
  %v4138 = vpop.f32.mrb[0].mxu0
  %v4139 = vadd.f32 0.0, %v4138
  %4140 = vmatprep.mubr.bf16.mxu0 0
  %4141 = vmatmul.mubr.bf16.gmra.mrb[0].mxu0 %v4013
  %v4142 = vpop.f32.mrb[0].mxu0
  %v4143 = vadd.f32 0.0, %v4142
  %v4144 = vpop.f32.mrb[0].mxu0
  %v4145 = vadd.f32 0.0, %v4144
  %v4146 = vpop.f32.mrb[0].mxu0
  %v4147 = vadd.f32 0.0, %v4146
  %v4148 = vpop.f32.mrb[0].mxu0
  %v4149 = vadd.f32 0.0, %v4148
  %4150 = vmatprep.mubr.bf16.mxu0 0
  %4151 = vmatmul.mubr.bf16.gmra.mrb[0].mxu0 %v4016
  %v4152 = vpop.f32.mrb[0].mxu0
  %v4153 = vadd.f32 0.0, %v4152
  %v4154 = vpop.f32.mrb[0].mxu0
  %v4155 = vadd.f32 0.0, %v4154
  %v4156 = vpop.f32.mrb[0].mxu0
  %v4157 = vadd.f32 0.0, %v4156
  %v4158 = vpop.f32.mrb[0].mxu0
  %v4159 = vadd.f32 0.0, %v4158
  %4160 = vmatprep.mubr.bf16.mxu0 0
  %4161 = vmatmul.mubr.bf16.gmra.mrb[0].mxu0 %v4019
  %v4162 = vpop.f32.mrb[0].mxu0
  %v4163 = vadd.f32 0.0, %v4162
  %v4164 = vpop.f32.mrb[0].mxu0
  %v4165 = vadd.f32 0.0, %v4164
  %v4166 = vpop.f32.mrb[0].mxu0
  %v4167 = vadd.f32 0.0, %v4166
  %v4168 = vpop.f32.mrb[0].mxu0
  %v4169 = vadd.f32 0.0, %v4168
  %4170 = vmatprep.mubr.bf16.mxu0 0
  %4171 = vmatmul.mubr.bf16.gmra.mrb[0].mxu0 %v4022
  %v4172 = vpop.f32.mrb[0].mxu0
  %v4173 = vadd.f32 0.0, %v4172
  %v4174 = vpop.f32.mrb[0].mxu0
  %v4175 = vadd.f32 0.0, %v4174
  %v4176 = vpop.f32.mrb[0].mxu0
  %v4177 = vadd.f32 0.0, %v4176
  %v4178 = vpop.f32.mrb[0].mxu0
  %v4179 = vadd.f32 0.0, %v4178
  %4180 = vmatprep.mubr.bf16.mxu0 0
  %4181 = vmatmul.mubr.bf16.gmra.mrb[0].mxu0 %v4025
  %v4182 = vpop.f32.mrb[0].mxu0
  %v4183 = vadd.f32 0.0, %v4182
  %v4184 = vpop.f32.mrb[0].mxu0
  %v4185 = vadd.f32 0.0, %v4184
  %v4186 = vpop.f32.mrb[0].mxu0
  %v4187 = vadd.f32 0.0, %v4186
  %v4188 = vpop.f32.mrb[0].mxu0
  %v4189 = vadd.f32 0.0, %v4188
  %4190 = vmatprep.mubr.bf16.mxu0 0
  %4191 = vmatmul.mubr.bf16.gmra.mrb[0].mxu0 %v4028
  %v4192 = vpop.f32.mrb[0].mxu0
  %v4193 = vadd.f32 0.0, %v4192
  %v4194 = vpop.f32.mrb[0].mxu0
  %v4195 = vadd.f32 0.0, %v4194
  %v4196 = vpop.f32.mrb[0].mxu0
  %v4197 = vadd.f32 0.0, %v4196
  %v4198 = vpop.f32.mrb[0].mxu0
  %v4199 = vadd.f32 0.0, %v4198
  %4200 = vmatprep.mubr.bf16.mxu0 0
  %4201 = vmatmul.mubr.bf16.gmra.mrb[0].mxu0 %v4031
  %v4202 = vpop.f32.mrb[0].mxu0
  %v4203 = vadd.f32 0.0, %v4202
  %v4204 = vpop.f32.mrb[0].mxu0
  %v4205 = vadd.f32 0.0, %v4204
  %v4206 = vpop.f32.mrb[0].mxu0
  %v4207 = vadd.f32 0.0, %v4206
  %v4208 = vpop.f32.mrb[0].mxu0
  %v4209 = vadd.f32 0.0, %v4208
  %4210 = vmatprep.mubr.bf16.mxu0 0
  %4211 = vmatmul.mubr.bf16.gmra.mrb[0].mxu0 %v4034
  %v4212 = vpop.f32.mrb[0].mxu0
  %v4213 = vadd.f32 0.0, %v4212
  %v4214 = vpop.f32.mrb[0].mxu0
  %v4215 = vadd.f32 0.0, %v4214
  %v4216 = vpop.f32.mrb[0].mxu0
  %v4217 = vadd.f32 0.0, %v4216
  %v4218 = vpop.f32.mrb[0].mxu0
  %v4219 = vadd.f32 0.0, %v4218
  %4220 = vmatprep.mubr.bf16.mxu0 0
  %4221 = vmatmul.mubr.bf16.gmra.mrb[0].mxu0 %v4037
  %v4222 = vpop.f32.mrb[0].mxu0
  %v4223 = vadd.f32 0.0, %v4222
  %v4224 = vpop.f32.mrb[0].mxu0
  %v4225 = vadd.f32 0.0, %v4224
  %v4226 = vpop.f32.mrb[0].mxu0
  %v4227 = vadd.f32 0.0, %v4226
  %v4228 = vpop.f32.mrb[0].mxu0
  %v4229 = vadd.f32 0.0, %v4228
  %4230 = vmatprep.mubr.bf16.mxu0 0
  %4231 = vmatmul.mubr.bf16.gmra.mrb[0].mxu0 %v4040
  %v4232 = vpop.f32.mrb[0].mxu0
  %v4233 = vadd.f32 0.0, %v4232
  %v4234 = vpop.f32.mrb[0].mxu0
  %v4235 = vadd.f32 0.0, %v4234
  %v4236 = vpop.f32.mrb[0].mxu0
  %v4237 = vpop.f32.mrb[0].mxu0
  %4238 = vdwg.mxu0
  %v4239 = vadd.f32 %v3810, %v4083
  %v4240 = vadd.f32 %v3811, %v4085
  %v4241 = vadd.f32 %v3812, %v4087
  %v4242 = vadd.f32 %v3813, %v4089
  %v4243 = vadd.f32 %v3814, %v4093
  %v4244 = vadd.f32 %v3815, %v4095
  %v4245 = vadd.f32 %v3816, %v4097
  %v4246 = vadd.f32 %v3817, %v4099
  %v4247 = vadd.f32 %v3818, %v4103
  %v4248 = vadd.f32 %v3819, %v4105
  %v4249 = vadd.f32 %v3820, %v4107
  %v4250 = vadd.f32 %v3821, %v4109
  %v4251 = vadd.f32 %v3822, %v4113
  %v4252 = vadd.f32 %v3823, %v4115
  %v4253 = vadd.f32 %v3824, %v4117
  %v4254 = vadd.f32 %v3825, %v4119
  %v4255 = vadd.f32 %v3826, %v4123
  %v4256 = vadd.f32 %v3827, %v4125
  %v4257 = vadd.f32 %v3828, %v4127
  %v4258 = vadd.f32 %v3829, %v4129
  %v4259 = vadd.f32 %v3830, %v4133
  %v4260 = vadd.f32 %v3831, %v4135
  %v4261 = vadd.f32 %v3832, %v4137
  %v4262 = vadd.f32 %v3833, %v4139
  %v4263 = vadd.f32 %v3834, %v4143
  %v4264 = vadd.f32 %v3835, %v4145
  %v4265 = vadd.f32 %v3836, %v4147
  %v4266 = vadd.f32 %v3837, %v4149
  %v4267 = vadd.f32 %v3838, %v4153
  %v4268 = vadd.f32 %v3839, %v4155
  %v4269 = vadd.f32 %v3840, %v4157
  %v4270 = vadd.f32 %v3841, %v4159
  %v4271 = vadd.f32 %v3842, %v4163
  %v4272 = vadd.f32 %v3843, %v4165
  %v4273 = vadd.f32 %v3844, %v4167
  %v4274 = vadd.f32 %v3845, %v4169
  %v4275 = vadd.f32 %v3846, %v4173
  %v4276 = vadd.f32 %v3847, %v4175
  %v4277 = vadd.f32 %v3848, %v4177
  %v4278 = vadd.f32 %v3849, %v4179
  %v4279 = vadd.f32 %v3850, %v4183
  %v4280 = vadd.f32 %v3851, %v4185
  %v4281 = vadd.f32 %v3852, %v4187
  %v4282 = vadd.f32 %v3853, %v4189
  %v4283 = vadd.f32 %v3854, %v4193
  %v4284 = vadd.f32 %v3855, %v4195
  %v4285 = vadd.f32 %v3856, %v4197
  %v4286 = vadd.f32 %v3857, %v4199
  %v4287 = vadd.f32 %v3858, %v4203
  %v4288 = vadd.f32 %v3859, %v4205
  %v4289 = vadd.f32 %v3860, %v4207
  %v4290 = vadd.f32 %v3861, %v4209
  %v4291 = vadd.f32 %v3862, %v4213
  %v4292 = vadd.f32 %v3863, %v4215
  %v4293 = vadd.f32 %v3864, %v4217
  %v4294 = vadd.f32 %v3865, %v4219
  %v4295 = vadd.f32 %v3866, %v4223
  %v4296 = vadd.f32 %v3867, %v4225
  %v4297 = vadd.f32 %v3868, %v4227
  %v4298 = vadd.f32 %v3869, %v4229
  %v4299 = vadd.f32 %v3870, %v4233
  %v4300 = vadd.f32 %v3871, %v4235
  %v4301 = vld [vmem:[%s1 + $0x288] sm:$0xff]
  %v4302 = vld [vmem:[%s1 + $0x290] sm:$0xff]
  %v4303 = vld [vmem:[%s1 + $0x298] sm:$0xff]
  %v4304 = vld [vmem:[%s1 + $0x2a0] sm:$0xff]
  %v4305 = vld [vmem:[%s1 + $0x2a8] sm:$0xff]
  %v4306 = vld [vmem:[%s1 + $0x2b0] sm:$0xff]
  %v4307 = vld [vmem:[%s1 + $0x2b8] sm:$0xff]
  %v4308 = vld [vmem:[%s1 + $0x2c0] sm:$0xff]
  %v4309 = vld [vmem:[%s1 + $0x2c8] sm:$0xff]
  %v4310 = vld [vmem:[%s1 + $0x2d0] sm:$0xff]
  %v4311 = vld [vmem:[%s1 + $0x2d8] sm:$0x33]
  %v4312 = vpack.c.bf16 %v2729, %v2728
  %v4313 = vpack.c.bf16 %v2731, %v2730
  %v4314 = vpack.c.bf16 %v2733, %v2732
  %v4315 = vpack.c.bf16 %v2735, %v2734
  %v4316 = vpack.c.bf16 %v2737, %v2736
  %v4317 = vpack.c.bf16 %v2739, %v2738
  %v4318 = vpack.c.bf16 %v2741, %v2740
  %v4319 = vpack.c.bf16 %v2743, %v2742
  %v4320 = vpack.c.bf16 %v2745, %v2744
  %v4321 = vpack.c.bf16 %v2747, %v2746
  %v4322 = vpack.c.bf16 %v2749, %v2748
  %v4323 = vpack.c.bf16 %v2751, %v2750
  %v4324 = vpack.c.bf16 %v2753, %v2752
  %v4325 = vpack.c.bf16 %v2755, %v2754
  %v4326 = vpack.c.bf16 %v2757, %v2756
  %v4327 = vpack.c.bf16 %v2758, %v2758
  %v4339 = vunpack.c.l.b16 %v4301
  %v4340 = vunpack.c.h.b16 %v4301
  %v4341 = vunpack.c.l.b16 %v4302
  %v4342 = vunpack.c.h.b16 %v4302
  %v4343 = vunpack.c.l.b16 %v4303
  %v4344 = vunpack.c.h.b16 %v4303
  %v4345 = vunpack.c.l.b16 %v4304
  %v4346 = vunpack.c.h.b16 %v4304
  %v4347 = vunpack.c.l.b16 %v4305
  %v4348 = vunpack.c.h.b16 %v4305
  %v4349 = vunpack.c.l.b16 %v4306
  %v4350 = vunpack.c.h.b16 %v4306
  %v4351 = vunpack.c.l.b16 %v4307
  %v4352 = vunpack.c.h.b16 %v4307
  %v4353 = vunpack.c.l.b16 %v4308
  %v4354 = vunpack.c.h.b16 %v4308
  %v4355 = vunpack.c.l.b16 %v4309
  %v4356 = vunpack.c.h.b16 %v4309
  %v4357 = vunpack.c.l.b16 %v4310
  %v4358 = vunpack.c.h.b16 %v4310
  %v4359 = vunpack.c.l.b16 %v4311
  %v4360 = vunpack.c.h.b16 %v4311
  %v4361 = vpack.c.b16 %v4341, %v4339
  %v4362 = vpack.c.b16 %v4342, %v4340
  %v4363 = vpack.c.b16 %v4345, %v4343
  %v4364 = vpack.c.b16 %v4346, %v4344
  %v4365 = vpack.c.b16 %v4349, %v4347
  %v4366 = vpack.c.b16 %v4350, %v4348
  %v4367 = vpack.c.b16 %v4353, %v4351
  %v4368 = vpack.c.b16 %v4354, %v4352
  %v4369 = vpack.c.b16 %v4357, %v4355
  %v4370 = vpack.c.b16 %v4358, %v4356
  %v4371 = vpack.c.b16 %v4359, %v4359
  %v4372 = vpack.c.b16 %v4360, %v4360
  %v4384 = vsel %vm2921, %v4312, 0
  %v4387 = vsel %vm2921, %v4313, 0
  %v4390 = vsel %vm2921, %v4314, 0
  %v4393 = vsel %vm2921, %v4315, 0
  %v4396 = vsel %vm2921, %v4316, 0
  %v4399 = vsel %vm2921, %v4317, 0
  %v4402 = vsel %vm2921, %v4318, 0
  %v4405 = vsel %vm2921, %v4319, 0
  %v4408 = vsel %vm2921, %v4320, 0
  %v4411 = vsel %vm2921, %v4321, 0
  %v4414 = vsel %vm2921, %v4322, 0
  %v4417 = vsel %vm2921, %v4323, 0
  %v4420 = vsel %vm2921, %v4324, 0
  %v4423 = vsel %vm2921, %v4325, 0
  %v4426 = vsel %vm2921, %v4326, 0
  %v4429 = vsel %vm2921, %v4327, 0
  %v4432 = vsel %vm2970, %v4371, 0
  %v4435 = vsel %vm2970, %v4372, 0
  %4437 = vmatprep.subr.bf16.mxu0 %v4362
  %4438 = vmatpush1.bf16.msra.mxu0 %v4361
  %4439 = vmatprep.subr.bf16.mxu0 %v4364
  %4440 = vmatpush1.bf16.msra.mxu0 %v4363
  %4441 = vmatprep.subr.bf16.mxu0 %v4366
  %4442 = vmatpush1.bf16.msra.mxu0 %v4365
  %4443 = vmatprep.subr.bf16.mxu0 %v4368
  %4444 = vmatpush1.bf16.msra.mxu0 %v4367
  %4445 = vmatprep.subr.bf16.mxu0 %v4370
  %4446 = vmatpush1.bf16.msra.mxu0 %v4369
  %4447 = vmatprep.subr.bf16.mxu0 %v4435
  %4448 = vmatpush1.bf16.msra.mxu0 %v4432
  %4449 = vmatprep.subr.bf16.mxu0 0
  %4450 = vmatpush1.bf16.msra.mxu0 0
  %4451 = vmatprep.subr.bf16.mxu0 0
  %4452 = vmatpush1.bf16.msra.mxu0 0
  %4453 = vmatprep.subr.bf16.mxu0 0
  %4454 = vmatpush1.bf16.msra.mxu0 0
  %4455 = vmatprep.subr.bf16.mxu0 0
  %4456 = vmatpush1.bf16.msra.mxu0 0
  %4457 = vmatprep.subr.bf16.mxu0 0
  %4458 = vmatpush1.bf16.msra.mxu0 0
  %4459 = vmatprep.subr.bf16.mxu0 0
  %4460 = vmatpush1.bf16.msra.mxu0 0
  %4461 = vmatprep.subr.bf16.mxu0 0
  %4462 = vmatpush1.bf16.msra.mxu0 0
  %4463 = vmatprep.subr.bf16.mxu0 0
  %4464 = vmatpush1.bf16.msra.mxu0 0
  %4465 = vmatprep.subr.bf16.mxu0 0
  %4466 = vmatpush1.bf16.msra.mxu0 0
  %4467 = vmatprep.subr.bf16.mxu0 0
  %4468 = vmatpush1.bf16.msra.mxu0 0
  %4469 = vmatprep.mubr.bf16.mxu0 0
  %4470 = vmatmul.mubr.bf16.gmra.mrb[0].mxu0 %v4384
  %v4471 = vpop.f32.mrb[0].mxu0
  %v4472 = vadd.f32 0.0, %v4471
  %v4473 = vpop.f32.mrb[0].mxu0
  %v4474 = vadd.f32 0.0, %v4473
  %v4475 = vpop.f32.mrb[0].mxu0
  %v4476 = vadd.f32 0.0, %v4475
  %v4477 = vpop.f32.mrb[0].mxu0
  %v4478 = vadd.f32 0.0, %v4477
  %4479 = vmatprep.mubr.bf16.mxu0 0
  %4480 = vmatmul.mubr.bf16.gmra.mrb[0].mxu0 %v4387
  %v4481 = vpop.f32.mrb[0].mxu0
  %v4482 = vadd.f32 0.0, %v4481
  %v4483 = vpop.f32.mrb[0].mxu0
  %v4484 = vadd.f32 0.0, %v4483
  %v4485 = vpop.f32.mrb[0].mxu0
  %v4486 = vadd.f32 0.0, %v4485
  %v4487 = vpop.f32.mrb[0].mxu0
  %v4488 = vadd.f32 0.0, %v4487
  %4489 = vmatprep.mubr.bf16.mxu0 0
  %4490 = vmatmul.mubr.bf16.gmra.mrb[0].mxu0 %v4390
  %v4491 = vpop.f32.mrb[0].mxu0
  %v4492 = vadd.f32 0.0, %v4491
  %v4493 = vpop.f32.mrb[0].mxu0
  %v4494 = vadd.f32 0.0, %v4493
  %v4495 = vpop.f32.mrb[0].mxu0
  %v4496 = vadd.f32 0.0, %v4495
  %v4497 = vpop.f32.mrb[0].mxu0
  %v4498 = vadd.f32 0.0, %v4497
  %4499 = vmatprep.mubr.bf16.mxu0 0
  %4500 = vmatmul.mubr.bf16.gmra.mrb[0].mxu0 %v4393
  %v4501 = vpop.f32.mrb[0].mxu0
  %v4502 = vadd.f32 0.0, %v4501
  %v4503 = vpop.f32.mrb[0].mxu0
  %v4504 = vadd.f32 0.0, %v4503
  %v4505 = vpop.f32.mrb[0].mxu0
  %v4506 = vadd.f32 0.0, %v4505
  %v4507 = vpop.f32.mrb[0].mxu0
  %v4508 = vadd.f32 0.0, %v4507
  %4509 = vmatprep.mubr.bf16.mxu0 0
  %4510 = vmatmul.mubr.bf16.gmra.mrb[0].mxu0 %v4396
  %v4511 = vpop.f32.mrb[0].mxu0
  %v4512 = vadd.f32 0.0, %v4511
  %v4513 = vpop.f32.mrb[0].mxu0
  %v4514 = vadd.f32 0.0, %v4513
  %v4515 = vpop.f32.mrb[0].mxu0
  %v4516 = vadd.f32 0.0, %v4515
  %v4517 = vpop.f32.mrb[0].mxu0
  %v4518 = vadd.f32 0.0, %v4517
  %4519 = vmatprep.mubr.bf16.mxu0 0
  %4520 = vmatmul.mubr.bf16.gmra.mrb[0].mxu0 %v4399
  %v4521 = vpop.f32.mrb[0].mxu0
  %v4522 = vadd.f32 0.0, %v4521
  %v4523 = vpop.f32.mrb[0].mxu0
  %v4524 = vadd.f32 0.0, %v4523
  %v4525 = vpop.f32.mrb[0].mxu0
  %v4526 = vadd.f32 0.0, %v4525
  %v4527 = vpop.f32.mrb[0].mxu0
  %v4528 = vadd.f32 0.0, %v4527
  %4529 = vmatprep.mubr.bf16.mxu0 0
  %4530 = vmatmul.mubr.bf16.gmra.mrb[0].mxu0 %v4402
  %v4531 = vpop.f32.mrb[0].mxu0
  %v4532 = vadd.f32 0.0, %v4531
  %v4533 = vpop.f32.mrb[0].mxu0
  %v4534 = vadd.f32 0.0, %v4533
  %v4535 = vpop.f32.mrb[0].mxu0
  %v4536 = vadd.f32 0.0, %v4535
  %v4537 = vpop.f32.mrb[0].mxu0
  %v4538 = vadd.f32 0.0, %v4537
  %4539 = vmatprep.mubr.bf16.mxu0 0
  %4540 = vmatmul.mubr.bf16.gmra.mrb[0].mxu0 %v4405
  %v4541 = vpop.f32.mrb[0].mxu0
  %v4542 = vadd.f32 0.0, %v4541
  %v4543 = vpop.f32.mrb[0].mxu0
  %v4544 = vadd.f32 0.0, %v4543
  %v4545 = vpop.f32.mrb[0].mxu0
  %v4546 = vadd.f32 0.0, %v4545
  %v4547 = vpop.f32.mrb[0].mxu0
  %v4548 = vadd.f32 0.0, %v4547
  %4549 = vmatprep.mubr.bf16.mxu0 0
  %4550 = vmatmul.mubr.bf16.gmra.mrb[0].mxu0 %v4408
  %v4551 = vpop.f32.mrb[0].mxu0
  %v4552 = vadd.f32 0.0, %v4551
  %v4553 = vpop.f32.mrb[0].mxu0
  %v4554 = vadd.f32 0.0, %v4553
  %v4555 = vpop.f32.mrb[0].mxu0
  %v4556 = vadd.f32 0.0, %v4555
  %v4557 = vpop.f32.mrb[0].mxu0
  %v4558 = vadd.f32 0.0, %v4557
  %4559 = vmatprep.mubr.bf16.mxu0 0
  %4560 = vmatmul.mubr.bf16.gmra.mrb[0].mxu0 %v4411
  %v4561 = vpop.f32.mrb[0].mxu0
  %v4562 = vadd.f32 0.0, %v4561
  %v4563 = vpop.f32.mrb[0].mxu0
  %v4564 = vadd.f32 0.0, %v4563
  %v4565 = vpop.f32.mrb[0].mxu0
  %v4566 = vadd.f32 0.0, %v4565
  %v4567 = vpop.f32.mrb[0].mxu0
  %v4568 = vadd.f32 0.0, %v4567
  %4569 = vmatprep.mubr.bf16.mxu0 0
  %4570 = vmatmul.mubr.bf16.gmra.mrb[0].mxu0 %v4414
  %v4571 = vpop.f32.mrb[0].mxu0
  %v4572 = vadd.f32 0.0, %v4571
  %v4573 = vpop.f32.mrb[0].mxu0
  %v4574 = vadd.f32 0.0, %v4573
  %v4575 = vpop.f32.mrb[0].mxu0
  %v4576 = vadd.f32 0.0, %v4575
  %v4577 = vpop.f32.mrb[0].mxu0
  %v4578 = vadd.f32 0.0, %v4577
  %4579 = vmatprep.mubr.bf16.mxu0 0
  %4580 = vmatmul.mubr.bf16.gmra.mrb[0].mxu0 %v4417
  %v4581 = vpop.f32.mrb[0].mxu0
  %v4582 = vadd.f32 0.0, %v4581
  %v4583 = vpop.f32.mrb[0].mxu0
  %v4584 = vadd.f32 0.0, %v4583
  %v4585 = vpop.f32.mrb[0].mxu0
  %v4586 = vadd.f32 0.0, %v4585
  %v4587 = vpop.f32.mrb[0].mxu0
  %v4588 = vadd.f32 0.0, %v4587
  %4589 = vmatprep.mubr.bf16.mxu0 0
  %4590 = vmatmul.mubr.bf16.gmra.mrb[0].mxu0 %v4420
  %v4591 = vpop.f32.mrb[0].mxu0
  %v4592 = vadd.f32 0.0, %v4591
  %v4593 = vpop.f32.mrb[0].mxu0
  %v4594 = vadd.f32 0.0, %v4593
  %v4595 = vpop.f32.mrb[0].mxu0
  %v4596 = vadd.f32 0.0, %v4595
  %v4597 = vpop.f32.mrb[0].mxu0
  %v4598 = vadd.f32 0.0, %v4597
  %4599 = vmatprep.mubr.bf16.mxu0 0
  %4600 = vmatmul.mubr.bf16.gmra.mrb[0].mxu0 %v4423
  %v4601 = vpop.f32.mrb[0].mxu0
  %v4602 = vadd.f32 0.0, %v4601
  %v4603 = vpop.f32.mrb[0].mxu0
  %v4604 = vadd.f32 0.0, %v4603
  %v4605 = vpop.f32.mrb[0].mxu0
  %v4606 = vadd.f32 0.0, %v4605
  %v4607 = vpop.f32.mrb[0].mxu0
  %v4608 = vadd.f32 0.0, %v4607
  %4609 = vmatprep.mubr.bf16.mxu0 0
  %4610 = vmatmul.mubr.bf16.gmra.mrb[0].mxu0 %v4426
  %v4611 = vpop.f32.mrb[0].mxu0
  %v4612 = vadd.f32 0.0, %v4611
  %v4613 = vpop.f32.mrb[0].mxu0
  %v4614 = vadd.f32 0.0, %v4613
  %v4615 = vpop.f32.mrb[0].mxu0
  %v4616 = vadd.f32 0.0, %v4615
  %v4617 = vpop.f32.mrb[0].mxu0
  %v4618 = vadd.f32 0.0, %v4617
  %4619 = vmatprep.mubr.bf16.mxu0 0
  %4620 = vmatmul.mubr.bf16.gmra.mrb[0].mxu0 %v4429
  %v4621 = vpop.f32.mrb[0].mxu0
  %v4622 = vadd.f32 0.0, %v4621
  %v4623 = vpop.f32.mrb[0].mxu0
  %v4624 = vadd.f32 0.0, %v4623
  %v4625 = vpop.f32.mrb[0].mxu0
  %v4626 = vpop.f32.mrb[0].mxu0
  %4627 = vdwg.mxu0
  %v4628 = vadd.f32 %v4239, %v4472
  %v4629 = vadd.f32 %v4240, %v4474
  %v4630 = vadd.f32 %v4241, %v4476
  %v4631 = vadd.f32 %v4242, %v4478
  %v4632 = vadd.f32 %v4243, %v4482
  %v4633 = vadd.f32 %v4244, %v4484
  %v4634 = vadd.f32 %v4245, %v4486
  %v4635 = vadd.f32 %v4246, %v4488
  %v4636 = vadd.f32 %v4247, %v4492
  %v4637 = vadd.f32 %v4248, %v4494
  %v4638 = vadd.f32 %v4249, %v4496
  %v4639 = vadd.f32 %v4250, %v4498
  %v4640 = vadd.f32 %v4251, %v4502
  %v4641 = vadd.f32 %v4252, %v4504
  %v4642 = vadd.f32 %v4253, %v4506
  %v4643 = vadd.f32 %v4254, %v4508
  %v4644 = vadd.f32 %v4255, %v4512
  %v4645 = vadd.f32 %v4256, %v4514
  %v4646 = vadd.f32 %v4257, %v4516
  %v4647 = vadd.f32 %v4258, %v4518
  %v4648 = vadd.f32 %v4259, %v4522
  %v4649 = vadd.f32 %v4260, %v4524
  %v4650 = vadd.f32 %v4261, %v4526
  %v4651 = vadd.f32 %v4262, %v4528
  %v4652 = vadd.f32 %v4263, %v4532
  %v4653 = vadd.f32 %v4264, %v4534
  %v4654 = vadd.f32 %v4265, %v4536
  %v4655 = vadd.f32 %v4266, %v4538
  %v4656 = vadd.f32 %v4267, %v4542
  %v4657 = vadd.f32 %v4268, %v4544
  %v4658 = vadd.f32 %v4269, %v4546
  %v4659 = vadd.f32 %v4270, %v4548
  %v4660 = vadd.f32 %v4271, %v4552
  %v4661 = vadd.f32 %v4272, %v4554
  %v4662 = vadd.f32 %v4273, %v4556
  %v4663 = vadd.f32 %v4274, %v4558
  %v4664 = vadd.f32 %v4275, %v4562
  %v4665 = vadd.f32 %v4276, %v4564
  %v4666 = vadd.f32 %v4277, %v4566
  %v4667 = vadd.f32 %v4278, %v4568
  %v4668 = vadd.f32 %v4279, %v4572
  %v4669 = vadd.f32 %v4280, %v4574
  %v4670 = vadd.f32 %v4281, %v4576
  %v4671 = vadd.f32 %v4282, %v4578
  %v4672 = vadd.f32 %v4283, %v4582
  %v4673 = vadd.f32 %v4284, %v4584
  %v4674 = vadd.f32 %v4285, %v4586
  %v4675 = vadd.f32 %v4286, %v4588
  %v4676 = vadd.f32 %v4287, %v4592
  %v4677 = vadd.f32 %v4288, %v4594
  %v4678 = vadd.f32 %v4289, %v4596
  %v4679 = vadd.f32 %v4290, %v4598
  %v4680 = vadd.f32 %v4291, %v4602
  %v4681 = vadd.f32 %v4292, %v4604
  %v4682 = vadd.f32 %v4293, %v4606
  %v4683 = vadd.f32 %v4294, %v4608
  %v4684 = vadd.f32 %v4295, %v4612
  %v4685 = vadd.f32 %v4296, %v4614
  %v4686 = vadd.f32 %v4297, %v4616
  %v4687 = vadd.f32 %v4298, %v4618
  %v4688 = vadd.f32 %v4299, %v4622
  %v4689 = vadd.f32 %v4300, %v4624
  %s4690 = scalar_lea.vmem %s2, 1
  %v4691 = vld [vmem:[%s4690] ss:$8 sm:$0x3]
  %v4693 = vlaneseq
  %v4694 = vshrl.u32 %v4693, 7
  %v4695 = vsub.s32 0, %v4694
  %v4696 = vrot.slane %v4691, %v4695
  %v4697 = vlaneseq
  %v4698 = vshrl.u32 %v4697, 7
  %v4699 = vsub.s32 1, %v4698
  %v4700 = vrot.slane %v4691, %v4699
  %v4703 = vadd.f32 %v4628, %v4696
  %v4704 = vadd.f32 %v4629, %v4700
  %v4705 = vadd.f32 %v4630, %v4696
  %v4706 = vadd.f32 %v4631, %v4700
  %v4707 = vadd.f32 %v4632, %v4696
  %v4708 = vadd.f32 %v4633, %v4700
  %v4709 = vadd.f32 %v4634, %v4696
  %v4710 = vadd.f32 %v4635, %v4700
  %v4711 = vadd.f32 %v4636, %v4696
  %v4712 = vadd.f32 %v4637, %v4700
  %v4713 = vadd.f32 %v4638, %v4696
  %v4714 = vadd.f32 %v4639, %v4700
  %v4715 = vadd.f32 %v4640, %v4696
  %v4716 = vadd.f32 %v4641, %v4700
  %v4717 = vadd.f32 %v4642, %v4696
  %v4718 = vadd.f32 %v4643, %v4700
  %v4719 = vadd.f32 %v4644, %v4696
  %v4720 = vadd.f32 %v4645, %v4700
  %v4721 = vadd.f32 %v4646, %v4696
  %v4722 = vadd.f32 %v4647, %v4700
  %v4723 = vadd.f32 %v4648, %v4696
  %v4724 = vadd.f32 %v4649, %v4700
  %v4725 = vadd.f32 %v4650, %v4696
  %v4726 = vadd.f32 %v4651, %v4700
  %v4727 = vadd.f32 %v4652, %v4696
  %v4728 = vadd.f32 %v4653, %v4700
  %v4729 = vadd.f32 %v4654, %v4696
  %v4730 = vadd.f32 %v4655, %v4700
  %v4731 = vadd.f32 %v4656, %v4696
  %v4732 = vadd.f32 %v4657, %v4700
  %v4733 = vadd.f32 %v4658, %v4696
  %v4734 = vadd.f32 %v4659, %v4700
  %v4735 = vadd.f32 %v4660, %v4696
  %v4736 = vadd.f32 %v4661, %v4700
  %v4737 = vadd.f32 %v4662, %v4696
  %v4738 = vadd.f32 %v4663, %v4700
  %v4739 = vadd.f32 %v4664, %v4696
  %v4740 = vadd.f32 %v4665, %v4700
  %v4741 = vadd.f32 %v4666, %v4696
  %v4742 = vadd.f32 %v4667, %v4700
  %v4743 = vadd.f32 %v4668, %v4696
  %v4744 = vadd.f32 %v4669, %v4700
  %v4745 = vadd.f32 %v4670, %v4696
  %v4746 = vadd.f32 %v4671, %v4700
  %v4747 = vadd.f32 %v4672, %v4696
  %v4748 = vadd.f32 %v4673, %v4700
  %v4749 = vadd.f32 %v4674, %v4696
  %v4750 = vadd.f32 %v4675, %v4700
  %v4751 = vadd.f32 %v4676, %v4696
  %v4752 = vadd.f32 %v4677, %v4700
  %v4753 = vadd.f32 %v4678, %v4696
  %v4754 = vadd.f32 %v4679, %v4700
  %v4755 = vadd.f32 %v4680, %v4696
  %v4756 = vadd.f32 %v4681, %v4700
  %v4757 = vadd.f32 %v4682, %v4696
  %v4758 = vadd.f32 %v4683, %v4700
  %v4759 = vadd.f32 %v4684, %v4696
  %v4760 = vadd.f32 %v4685, %v4700
  %v4761 = vadd.f32 %v4686, %v4696
  %v4762 = vadd.f32 %v4687, %v4700
  %v4763 = vadd.f32 %v4688, %v4696
  %v4764 = vadd.f32 %v4689, %v4700
  %v4765 = vsub.f32 0.0, %v4703
  %v4766 = vsub.f32 0.0, %v4704
  %v4767 = vsub.f32 0.0, %v4705
  %v4768 = vsub.f32 0.0, %v4706
  %v4769 = vsub.f32 0.0, %v4707
  %v4770 = vsub.f32 0.0, %v4708
  %v4771 = vsub.f32 0.0, %v4709
  %v4772 = vsub.f32 0.0, %v4710
  %v4773 = vsub.f32 0.0, %v4711
  %v4774 = vsub.f32 0.0, %v4712
  %v4775 = vsub.f32 0.0, %v4713
  %v4776 = vsub.f32 0.0, %v4714
  %v4777 = vsub.f32 0.0, %v4715
  %v4778 = vsub.f32 0.0, %v4716
  %v4779 = vsub.f32 0.0, %v4717
  %v4780 = vsub.f32 0.0, %v4718
  %v4781 = vsub.f32 0.0, %v4719
  %v4782 = vsub.f32 0.0, %v4720
  %v4783 = vsub.f32 0.0, %v4721
  %v4784 = vsub.f32 0.0, %v4722
  %v4785 = vsub.f32 0.0, %v4723
  %v4786 = vsub.f32 0.0, %v4724
  %v4787 = vsub.f32 0.0, %v4725
  %v4788 = vsub.f32 0.0, %v4726
  %v4789 = vsub.f32 0.0, %v4727
  %v4790 = vsub.f32 0.0, %v4728
  %v4791 = vsub.f32 0.0, %v4729
  %v4792 = vsub.f32 0.0, %v4730
  %v4793 = vsub.f32 0.0, %v4731
  %v4794 = vsub.f32 0.0, %v4732
  %v4795 = vsub.f32 0.0, %v4733
  %v4796 = vsub.f32 0.0, %v4734
  %v4797 = vsub.f32 0.0, %v4735
  %v4798 = vsub.f32 0.0, %v4736
  %v4799 = vsub.f32 0.0, %v4737
  %v4800 = vsub.f32 0.0, %v4738
  %v4801 = vsub.f32 0.0, %v4739
  %v4802 = vsub.f32 0.0, %v4740
  %v4803 = vsub.f32 0.0, %v4741
  %v4804 = vsub.f32 0.0, %v4742
  %v4805 = vsub.f32 0.0, %v4743
  %v4806 = vsub.f32 0.0, %v4744
  %v4807 = vsub.f32 0.0, %v4745
  %v4808 = vsub.f32 0.0, %v4746
  %v4809 = vsub.f32 0.0, %v4747
  %v4810 = vsub.f32 0.0, %v4748
  %v4811 = vsub.f32 0.0, %v4749
  %v4812 = vsub.f32 0.0, %v4750
  %v4813 = vsub.f32 0.0, %v4751
  %v4814 = vsub.f32 0.0, %v4752
  %v4815 = vsub.f32 0.0, %v4753
  %v4816 = vsub.f32 0.0, %v4754
  %v4817 = vsub.f32 0.0, %v4755
  %v4818 = vsub.f32 0.0, %v4756
  %v4819 = vsub.f32 0.0, %v4757
  %v4820 = vsub.f32 0.0, %v4758
  %v4821 = vsub.f32 0.0, %v4759
  %v4822 = vsub.f32 0.0, %v4760
  %v4823 = vsub.f32 0.0, %v4761
  %v4824 = vsub.f32 0.0, %v4762
  %v4825 = vsub.f32 0.0, %v4763
  %v4826 = vsub.f32 0.0, %v4764
  %v4827 = vmul.f32 %v4765, 1.442695
  %v4828 = vpow.pop %v4827
  %v4829 = vmul.f32 %v4766, 1.442695
  %v4830 = vpow.pop %v4829
  %v4831 = vmul.f32 %v4767, 1.442695
  %v4832 = vpow.pop %v4831
  %v4833 = vmul.f32 %v4768, 1.442695
  %v4834 = vpow.pop %v4833
  %v4835 = vmul.f32 %v4769, 1.442695
  %v4836 = vpow.pop %v4835
  %v4837 = vmul.f32 %v4770, 1.442695
  %v4838 = vpow.pop %v4837
  %v4839 = vmul.f32 %v4771, 1.442695
  %v4840 = vpow.pop %v4839
  %v4841 = vmul.f32 %v4772, 1.442695
  %v4842 = vpow.pop %v4841
  %v4843 = vmul.f32 %v4773, 1.442695
  %v4844 = vpow.pop %v4843
  %v4845 = vmul.f32 %v4774, 1.442695
  %v4846 = vpow.pop %v4845
  %v4847 = vmul.f32 %v4775, 1.442695
  %v4848 = vpow.pop %v4847
  %v4849 = vmul.f32 %v4776, 1.442695
  %v4850 = vpow.pop %v4849
  %v4851 = vmul.f32 %v4777, 1.442695
  %v4852 = vpow.pop %v4851
  %v4853 = vmul.f32 %v4778, 1.442695
  %v4854 = vpow.pop %v4853
  %v4855 = vmul.f32 %v4779, 1.442695
  %v4856 = vpow.pop %v4855
  %v4857 = vmul.f32 %v4780, 1.442695
  %v4858 = vpow.pop %v4857
  %v4859 = vmul.f32 %v4781, 1.442695
  %v4860 = vpow.pop %v4859
  %v4861 = vmul.f32 %v4782, 1.442695
  %v4862 = vpow.pop %v4861
  %v4863 = vmul.f32 %v4783, 1.442695
  %v4864 = vpow.pop %v4863
  %v4865 = vmul.f32 %v4784, 1.442695
  %v4866 = vpow.pop %v4865
  %v4867 = vmul.f32 %v4785, 1.442695
  %v4868 = vpow.pop %v4867
  %v4869 = vmul.f32 %v4786, 1.442695
  %v4870 = vpow.pop %v4869
  %v4871 = vmul.f32 %v4787, 1.442695
  %v4872 = vpow.pop %v4871
  %v4873 = vmul.f32 %v4788, 1.442695
  %v4874 = vpow.pop %v4873
  %v4875 = vmul.f32 %v4789, 1.442695
  %v4876 = vpow.pop %v4875
  %v4877 = vmul.f32 %v4790, 1.442695
  %v4878 = vpow.pop %v4877
  %v4879 = vmul.f32 %v4791, 1.442695
  %v4880 = vpow.pop %v4879
  %v4881 = vmul.f32 %v4792, 1.442695
  %v4882 = vpow.pop %v4881
  %v4883 = vmul.f32 %v4793, 1.442695
  %v4884 = vpow.pop %v4883
  %v4885 = vmul.f32 %v4794, 1.442695
  %v4886 = vpow.pop %v4885
  %v4887 = vmul.f32 %v4795, 1.442695
  %v4888 = vpow.pop %v4887
  %v4889 = vmul.f32 %v4796, 1.442695
  %v4890 = vpow.pop %v4889
  %v4891 = vmul.f32 %v4797, 1.442695
  %v4892 = vpow.pop %v4891
  %v4893 = vmul.f32 %v4798, 1.442695
  %v4894 = vpow.pop %v4893
  %v4895 = vmul.f32 %v4799, 1.442695
  %v4896 = vpow.pop %v4895
  %v4897 = vmul.f32 %v4800, 1.442695
  %v4898 = vpow.pop %v4897
  %v4899 = vmul.f32 %v4801, 1.442695
  %v4900 = vpow.pop %v4899
  %v4901 = vmul.f32 %v4802, 1.442695
  %v4902 = vpow.pop %v4901
  %v4903 = vmul.f32 %v4803, 1.442695
  %v4904 = vpow.pop %v4903
  %v4905 = vmul.f32 %v4804, 1.442695
  %v4906 = vpow.pop %v4905
  %v4907 = vmul.f32 %v4805, 1.442695
  %v4908 = vpow.pop %v4907
  %v4909 = vmul.f32 %v4806, 1.442695
  %v4910 = vpow.pop %v4909
  %v4911 = vmul.f32 %v4807, 1.442695
  %v4912 = vpow.pop %v4911
  %v4913 = vmul.f32 %v4808, 1.442695
  %v4914 = vpow.pop %v4913
  %v4915 = vmul.f32 %v4809, 1.442695
  %v4916 = vpow.pop %v4915
  %v4917 = vmul.f32 %v4810, 1.442695
  %v4918 = vpow.pop %v4917
  %v4919 = vmul.f32 %v4811, 1.442695
  %v4920 = vpow.pop %v4919
  %v4921 = vmul.f32 %v4812, 1.442695
  %v4922 = vpow.pop %v4921
  %v4923 = vmul.f32 %v4813, 1.442695
  %v4924 = vpow.pop %v4923
  %v4925 = vmul.f32 %v4814, 1.442695
  %v4926 = vpow.pop %v4925
  %v4927 = vmul.f32 %v4815, 1.442695
  %v4928 = vpow.pop %v4927
  %v4929 = vmul.f32 %v4816, 1.442695
  %v4930 = vpow.pop %v4929
  %v4931 = vmul.f32 %v4817, 1.442695
  %v4932 = vpow.pop %v4931
  %v4933 = vmul.f32 %v4818, 1.442695
  %v4934 = vpow.pop %v4933
  %v4935 = vmul.f32 %v4819, 1.442695
  %v4936 = vpow.pop %v4935
  %v4937 = vmul.f32 %v4820, 1.442695
  %v4938 = vpow.pop %v4937
  %v4939 = vmul.f32 %v4821, 1.442695
  %v4940 = vpow.pop %v4939
  %v4941 = vmul.f32 %v4822, 1.442695
  %v4942 = vpow.pop %v4941
  %v4943 = vmul.f32 %v4823, 1.442695
  %v4944 = vpow.pop %v4943
  %v4945 = vmul.f32 %v4824, 1.442695
  %v4946 = vpow.pop %v4945
  %v4947 = vmul.f32 %v4825, 1.442695
  %v4948 = vpow.pop %v4947
  %v4949 = vmul.f32 %v4826, 1.442695
  %v4950 = vpow.pop %v4949
  %v4951 = vadd.f32 %v4828, 1.0
  %v4952 = vadd.f32 %v4830, 1.0
  %v4953 = vadd.f32 %v4832, 1.0
  %v4954 = vadd.f32 %v4834, 1.0
  %v4955 = vadd.f32 %v4836, 1.0
  %v4956 = vadd.f32 %v4838, 1.0
  %v4957 = vadd.f32 %v4840, 1.0
  %v4958 = vadd.f32 %v4842, 1.0
  %v4959 = vadd.f32 %v4844, 1.0
  %v4960 = vadd.f32 %v4846, 1.0
  %v4961 = vadd.f32 %v4848, 1.0
  %v4962 = vadd.f32 %v4850, 1.0
  %v4963 = vadd.f32 %v4852, 1.0
  %v4964 = vadd.f32 %v4854, 1.0
  %v4965 = vadd.f32 %v4856, 1.0
  %v4966 = vadd.f32 %v4858, 1.0
  %v4967 = vadd.f32 %v4860, 1.0
  %v4968 = vadd.f32 %v4862, 1.0
  %v4969 = vadd.f32 %v4864, 1.0
  %v4970 = vadd.f32 %v4866, 1.0
  %v4971 = vadd.f32 %v4868, 1.0
  %v4972 = vadd.f32 %v4870, 1.0
  %v4973 = vadd.f32 %v4872, 1.0
  %v4974 = vadd.f32 %v4874, 1.0
  %v4975 = vadd.f32 %v4876, 1.0
  %v4976 = vadd.f32 %v4878, 1.0
  %v4977 = vadd.f32 %v4880, 1.0
  %v4978 = vadd.f32 %v4882, 1.0
  %v4979 = vadd.f32 %v4884, 1.0
  %v4980 = vadd.f32 %v4886, 1.0
  %v4981 = vadd.f32 %v4888, 1.0
  %v4982 = vadd.f32 %v4890, 1.0
  %v4983 = vadd.f32 %v4892, 1.0
  %v4984 = vadd.f32 %v4894, 1.0
  %v4985 = vadd.f32 %v4896, 1.0
  %v4986 = vadd.f32 %v4898, 1.0
  %v4987 = vadd.f32 %v4900, 1.0
  %v4988 = vadd.f32 %v4902, 1.0
  %v4989 = vadd.f32 %v4904, 1.0
  %v4990 = vadd.f32 %v4906, 1.0
  %v4991 = vadd.f32 %v4908, 1.0
  %v4992 = vadd.f32 %v4910, 1.0
  %v4993 = vadd.f32 %v4912, 1.0
  %v4994 = vadd.f32 %v4914, 1.0
  %v4995 = vadd.f32 %v4916, 1.0
  %v4996 = vadd.f32 %v4918, 1.0
  %v4997 = vadd.f32 %v4920, 1.0
  %v4998 = vadd.f32 %v4922, 1.0
  %v4999 = vadd.f32 %v4924, 1.0
  %v5000 = vadd.f32 %v4926, 1.0
  %v5001 = vadd.f32 %v4928, 1.0
  %v5002 = vadd.f32 %v4930, 1.0
  %v5003 = vadd.f32 %v4932, 1.0
  %v5004 = vadd.f32 %v4934, 1.0
  %v5005 = vadd.f32 %v4936, 1.0
  %v5006 = vadd.f32 %v4938, 1.0
  %v5007 = vadd.f32 %v4940, 1.0
  %v5008 = vadd.f32 %v4942, 1.0
  %v5009 = vadd.f32 %v4944, 1.0
  %v5010 = vadd.f32 %v4946, 1.0
  %v5011 = vadd.f32 %v4948, 1.0
  %v5012 = vadd.f32 %v4950, 1.0
  %v5013 = vrcp.pop %v4951
  %v5014 = vrcp.pop %v4952
  %v5015 = vrcp.pop %v4953
  %v5016 = vrcp.pop %v4954
  %v5017 = vrcp.pop %v4955
  %v5018 = vrcp.pop %v4956
  %v5019 = vrcp.pop %v4957
  %v5020 = vrcp.pop %v4958
  %v5021 = vrcp.pop %v4959
  %v5022 = vrcp.pop %v4960
  %v5023 = vrcp.pop %v4961
  %v5024 = vrcp.pop %v4962
  %v5025 = vrcp.pop %v4963
  %v5026 = vrcp.pop %v4964
  %v5027 = vrcp.pop %v4965
  %v5028 = vrcp.pop %v4966
  %v5029 = vrcp.pop %v4967
  %v5030 = vrcp.pop %v4968
  %v5031 = vrcp.pop %v4969
  %v5032 = vrcp.pop %v4970
  %v5033 = vrcp.pop %v4971
  %v5034 = vrcp.pop %v4972
  %v5035 = vrcp.pop %v4973
  %v5036 = vrcp.pop %v4974
  %v5037 = vrcp.pop %v4975
  %v5038 = vrcp.pop %v4976
  %v5039 = vrcp.pop %v4977
  %v5040 = vrcp.pop %v4978
  %v5041 = vrcp.pop %v4979
  %v5042 = vrcp.pop %v4980
  %v5043 = vrcp.pop %v4981
  %v5044 = vrcp.pop %v4982
  %v5045 = vrcp.pop %v4983
  %v5046 = vrcp.pop %v4984
  %v5047 = vrcp.pop %v4985
  %v5048 = vrcp.pop %v4986
  %v5049 = vrcp.pop %v4987
  %v5050 = vrcp.pop %v4988
  %v5051 = vrcp.pop %v4989
  %v5052 = vrcp.pop %v4990
  %v5053 = vrcp.pop %v4991
  %v5054 = vrcp.pop %v4992
  %v5055 = vrcp.pop %v4993
  %v5056 = vrcp.pop %v4994
  %v5057 = vrcp.pop %v4995
  %v5058 = vrcp.pop %v4996
  %v5059 = vrcp.pop %v4997
  %v5060 = vrcp.pop %v4998
  %v5061 = vrcp.pop %v4999
  %v5062 = vrcp.pop %v5000
  %v5063 = vrcp.pop %v5001
  %v5064 = vrcp.pop %v5002
  %v5065 = vrcp.pop %v5003
  %v5066 = vrcp.pop %v5004
  %v5067 = vrcp.pop %v5005
  %v5068 = vrcp.pop %v5006
  %v5069 = vrcp.pop %v5007
  %v5070 = vrcp.pop %v5008
  %v5071 = vrcp.pop %v5009
  %v5072 = vrcp.pop %v5010
  %v5073 = vrcp.pop %v5011
  %v5074 = vrcp.pop %v5012
  %v5075 = vld [vmem:[%s1 + $0x2e0] sm:$0xf]
  %v5076 = vld [vmem:[%s1 + $0x2e8] sm:$0xf]
  %v5077 = vld [vmem:[%s1 + $0x2f0] sm:$0xf]
  %v5078 = vld [vmem:[%s1 + $0x2f8] sm:$0xf]
  %v5079 = vld [vmem:[%s1 + $0x300] sm:$0xf]
  %v5080 = vld [vmem:[%s1 + $0x308] sm:$0xf]
  %v5081 = vld [vmem:[%s1 + $0x310] sm:$0xf]
  %v5082 = vld [vmem:[%s1 + $0x318] sm:$0xf]
  %v5083 = vld [vmem:[%s1 + $0x320] sm:$0xf]
  %v5084 = vld [vmem:[%s1 + $0x328] sm:$0xf]
  %v5085 = vld [vmem:[%s1 + $0x330] sm:$0xf]
  %v5086 = vld [vmem:[%s1 + $0x338] sm:$0xf]
  %v5087 = vld [vmem:[%s1 + $0x340] sm:$0xf]
  %v5088 = vld [vmem:[%s1 + $0x348] sm:$0xf]
  %v5089 = vld [vmem:[%s1 + $0x350] sm:$0xf]
  %v5090 = vld [vmem:[%s1 + $0x358] sm:$0xf]
  %v5091 = vld [vmem:[%s1 + $0x360] sm:$0xf]
  %v5092 = vld [vmem:[%s1 + $0x368] sm:$0xf]
  %v5093 = vld [vmem:[%s1 + $0x370] sm:$0xf]
  %v5094 = vld [vmem:[%s1 + $0x378] sm:$0xf]
  %v5095 = vpack.c.bf16 %v5015, %v5013
  %v5096 = vpack.c.bf16 %v5016, %v5014
  %v5097 = vpack.c.bf16 %v5019, %v5017
  %v5098 = vpack.c.bf16 %v5020, %v5018
  %v5099 = vpack.c.bf16 %v5023, %v5021
  %v5100 = vpack.c.bf16 %v5024, %v5022
  %v5101 = vpack.c.bf16 %v5027, %v5025
  %v5102 = vpack.c.bf16 %v5028, %v5026
  %v5103 = vpack.c.bf16 %v5031, %v5029
  %v5104 = vpack.c.bf16 %v5032, %v5030
  %v5105 = vpack.c.bf16 %v5035, %v5033
  %v5106 = vpack.c.bf16 %v5036, %v5034
  %v5107 = vpack.c.bf16 %v5039, %v5037
  %v5108 = vpack.c.bf16 %v5040, %v5038
  %v5109 = vpack.c.bf16 %v5043, %v5041
  %v5110 = vpack.c.bf16 %v5044, %v5042
  %v5111 = vpack.c.bf16 %v5047, %v5045
  %v5112 = vpack.c.bf16 %v5048, %v5046
  %v5113 = vpack.c.bf16 %v5051, %v5049
  %v5114 = vpack.c.bf16 %v5052, %v5050
  %v5115 = vpack.c.bf16 %v5055, %v5053
  %v5116 = vpack.c.bf16 %v5056, %v5054
  %v5117 = vpack.c.bf16 %v5059, %v5057
  %v5118 = vpack.c.bf16 %v5060, %v5058
  %v5119 = vpack.c.bf16 %v5063, %v5061
  %v5120 = vpack.c.bf16 %v5064, %v5062
  %v5121 = vpack.c.bf16 %v5067, %v5065
  %v5122 = vpack.c.bf16 %v5068, %v5066
  %v5123 = vpack.c.bf16 %v5071, %v5069
  %v5124 = vpack.c.bf16 %v5072, %v5070
  %v5125 = vpack.c.bf16 %v5073, %v5073
  %v5126 = vpack.c.bf16 %v5074, %v5074
  %v5147 = vunpack.c.l.b16 %v5075
  %v5148 = vunpack.c.l.b16 %v5076
  %v5149 = vunpack.c.l.b16 %v5077
  %v5150 = vunpack.c.l.b16 %v5078
  %v5151 = vunpack.c.l.b16 %v5079
  %v5152 = vunpack.c.l.b16 %v5080
  %v5153 = vunpack.c.l.b16 %v5081
  %v5154 = vunpack.c.l.b16 %v5082
  %v5155 = vunpack.c.l.b16 %v5083
  %v5156 = vunpack.c.l.b16 %v5084
  %v5157 = vunpack.c.l.b16 %v5085
  %v5158 = vunpack.c.l.b16 %v5086
  %v5159 = vunpack.c.l.b16 %v5087
  %v5160 = vunpack.c.l.b16 %v5088
  %v5161 = vunpack.c.l.b16 %v5089
  %v5162 = vunpack.c.l.b16 %v5090
  %v5163 = vunpack.c.l.b16 %v5091
  %v5164 = vunpack.c.l.b16 %v5092
  %v5165 = vunpack.c.l.b16 %v5093
  %v5166 = vunpack.c.l.b16 %v5094
  %v5167 = vpack.c.b16 %v5148, %v5147
  %v5168 = vpack.c.b16 %v5150, %v5149
  %v5169 = vpack.c.b16 %v5152, %v5151
  %v5170 = vpack.c.b16 %v5154, %v5153
  %v5171 = vpack.c.b16 %v5156, %v5155
  %v5172 = vpack.c.b16 %v5158, %v5157
  %v5173 = vpack.c.b16 %v5160, %v5159
  %v5174 = vpack.c.b16 %v5162, %v5161
  %v5175 = vpack.c.b16 %v5164, %v5163
  %v5176 = vpack.c.b16 %v5166, %v5165
  %vm5187 = vcmask 261120
  %v5189 = vsel %vm5187, %v5096, 0
  %v5192 = vsel %vm5187, %v5098, 0
  %v5195 = vsel %vm5187, %v5100, 0
  %v5198 = vsel %vm5187, %v5102, 0
  %v5201 = vsel %vm5187, %v5104, 0
  %v5204 = vsel %vm5187, %v5106, 0
  %v5207 = vsel %vm5187, %v5108, 0
  %v5210 = vsel %vm5187, %v5110, 0
  %v5213 = vsel %vm5187, %v5112, 0
  %v5216 = vsel %vm5187, %v5114, 0
  %v5219 = vsel %vm5187, %v5116, 0
  %v5222 = vsel %vm5187, %v5118, 0
  %v5225 = vsel %vm5187, %v5120, 0
  %v5228 = vsel %vm5187, %v5122, 0
  %v5231 = vsel %vm5187, %v5124, 0
  %v5234 = vsel %vm5187, %v5126, 0
  %5236 = vmatprep.subr.bf16.mxu0 0
  %5237 = vmatpush1.bf16.msra.mxu0 %v5167
  %5238 = vmatprep.subr.bf16.mxu0 0
  %5239 = vmatpush1.bf16.msra.mxu0 %v5168
  %5240 = vmatprep.subr.bf16.mxu0 0
  %5241 = vmatpush1.bf16.msra.mxu0 %v5169
  %5242 = vmatprep.subr.bf16.mxu0 0
  %5243 = vmatpush1.bf16.msra.mxu0 %v5170
  %5244 = vmatprep.subr.bf16.mxu0 0
  %5245 = vmatpush1.bf16.msra.mxu0 %v5171
  %5246 = vmatprep.subr.bf16.mxu0 0
  %5247 = vmatpush1.bf16.msra.mxu0 %v5172
  %5248 = vmatprep.subr.bf16.mxu0 0
  %5249 = vmatpush1.bf16.msra.mxu0 %v5173
  %5250 = vmatprep.subr.bf16.mxu0 0
  %5251 = vmatpush1.bf16.msra.mxu0 %v5174
  %5252 = vmatprep.subr.bf16.mxu0 0
  %5253 = vmatpush1.bf16.msra.mxu0 %v5175
  %5254 = vmatprep.subr.bf16.mxu0 0
  %5255 = vmatpush1.bf16.msra.mxu0 %v5176
  %5256 = vmatprep.subr.bf16.mxu0 0
  %5257 = vmatpush1.bf16.msra.mxu0 0
  %5258 = vmatprep.subr.bf16.mxu0 0
  %5259 = vmatpush1.bf16.msra.mxu0 0
  %5260 = vmatprep.subr.bf16.mxu0 0
  %5261 = vmatpush1.bf16.msra.mxu0 0
  %5262 = vmatprep.subr.bf16.mxu0 0
  %5263 = vmatpush1.bf16.msra.mxu0 0
  %5264 = vmatprep.subr.bf16.mxu0 0
  %5265 = vmatpush1.bf16.msra.mxu0 0
  %5266 = vmatprep.subr.bf16.mxu0 0
  %5267 = vmatpush1.bf16.msra.mxu0 0
  %5268 = vmatprep.mubr.bf16.mxu0 %v5189
  %5269 = vmatmul.mubr.bf16.gmra.mrb[0].mxu0 %v5095
  %v5270 = vpop.f32.mrb[0].mxu0
  %v5271 = vadd.f32 0.0, %v5270
  %v5272 = vpop.f32.mrb[0].mxu0
  %v5273 = vpop.f32.mrb[0].mxu0
  %v5274 = vadd.f32 0.0, %v5273
  %v5275 = vpop.f32.mrb[0].mxu0
  %5276 = vmatprep.mubr.bf16.mxu0 %v5192
  %5277 = vmatmul.mubr.bf16.gmra.mrb[0].mxu0 %v5097
  %v5278 = vpop.f32.mrb[0].mxu0
  %v5279 = vadd.f32 0.0, %v5278
  %v5280 = vpop.f32.mrb[0].mxu0
  %v5281 = vpop.f32.mrb[0].mxu0
  %v5282 = vadd.f32 0.0, %v5281
  %v5283 = vpop.f32.mrb[0].mxu0
  %5284 = vmatprep.mubr.bf16.mxu0 %v5195
  %5285 = vmatmul.mubr.bf16.gmra.mrb[0].mxu0 %v5099
  %v5286 = vpop.f32.mrb[0].mxu0
  %v5287 = vadd.f32 0.0, %v5286
  %v5288 = vpop.f32.mrb[0].mxu0
  %v5289 = vpop.f32.mrb[0].mxu0
  %v5290 = vadd.f32 0.0, %v5289
  %v5291 = vpop.f32.mrb[0].mxu0
  %5292 = vmatprep.mubr.bf16.mxu0 %v5198
  %5293 = vmatmul.mubr.bf16.gmra.mrb[0].mxu0 %v5101
  %v5294 = vpop.f32.mrb[0].mxu0
  %v5295 = vadd.f32 0.0, %v5294
  %v5296 = vpop.f32.mrb[0].mxu0
  %v5297 = vpop.f32.mrb[0].mxu0
  %v5298 = vadd.f32 0.0, %v5297
  %v5299 = vpop.f32.mrb[0].mxu0
  %5300 = vmatprep.mubr.bf16.mxu0 %v5201
  %5301 = vmatmul.mubr.bf16.gmra.mrb[0].mxu0 %v5103
  %v5302 = vpop.f32.mrb[0].mxu0
  %v5303 = vadd.f32 0.0, %v5302
  %v5304 = vpop.f32.mrb[0].mxu0
  %v5305 = vpop.f32.mrb[0].mxu0
  %v5306 = vadd.f32 0.0, %v5305
  %v5307 = vpop.f32.mrb[0].mxu0
  %5308 = vmatprep.mubr.bf16.mxu0 %v5204
  %5309 = vmatmul.mubr.bf16.gmra.mrb[0].mxu0 %v5105
  %v5310 = vpop.f32.mrb[0].mxu0
  %v5311 = vadd.f32 0.0, %v5310
  %v5312 = vpop.f32.mrb[0].mxu0
  %v5313 = vpop.f32.mrb[0].mxu0
  %v5314 = vadd.f32 0.0, %v5313
  %v5315 = vpop.f32.mrb[0].mxu0
  %5316 = vmatprep.mubr.bf16.mxu0 %v5207
  %5317 = vmatmul.mubr.bf16.gmra.mrb[0].mxu0 %v5107
  %v5318 = vpop.f32.mrb[0].mxu0
  %v5319 = vadd.f32 0.0, %v5318
  %v5320 = vpop.f32.mrb[0].mxu0
  %v5321 = vpop.f32.mrb[0].mxu0
  %v5322 = vadd.f32 0.0, %v5321
  %v5323 = vpop.f32.mrb[0].mxu0
  %5324 = vmatprep.mubr.bf16.mxu0 %v5210
  %5325 = vmatmul.mubr.bf16.gmra.mrb[0].mxu0 %v5109
  %v5326 = vpop.f32.mrb[0].mxu0
  %v5327 = vadd.f32 0.0, %v5326
  %v5328 = vpop.f32.mrb[0].mxu0
  %v5329 = vpop.f32.mrb[0].mxu0
  %v5330 = vadd.f32 0.0, %v5329
  %v5331 = vpop.f32.mrb[0].mxu0
  %5332 = vmatprep.mubr.bf16.mxu0 %v5213
  %5333 = vmatmul.mubr.bf16.gmra.mrb[0].mxu0 %v5111
  %v5334 = vpop.f32.mrb[0].mxu0
  %v5335 = vadd.f32 0.0, %v5334
  %v5336 = vpop.f32.mrb[0].mxu0
  %v5337 = vpop.f32.mrb[0].mxu0
  %v5338 = vadd.f32 0.0, %v5337
  %v5339 = vpop.f32.mrb[0].mxu0
  %5340 = vmatprep.mubr.bf16.mxu0 %v5216
  %5341 = vmatmul.mubr.bf16.gmra.mrb[0].mxu0 %v5113
  %v5342 = vpop.f32.mrb[0].mxu0
  %v5343 = vadd.f32 0.0, %v5342
  %v5344 = vpop.f32.mrb[0].mxu0
  %v5345 = vpop.f32.mrb[0].mxu0
  %v5346 = vadd.f32 0.0, %v5345
  %v5347 = vpop.f32.mrb[0].mxu0
  %5348 = vmatprep.mubr.bf16.mxu0 %v5219
  %5349 = vmatmul.mubr.bf16.gmra.mrb[0].mxu0 %v5115
  %v5350 = vpop.f32.mrb[0].mxu0
  %v5351 = vadd.f32 0.0, %v5350
  %v5352 = vpop.f32.mrb[0].mxu0
  %v5353 = vpop.f32.mrb[0].mxu0
  %v5354 = vadd.f32 0.0, %v5353
  %v5355 = vpop.f32.mrb[0].mxu0
  %5356 = vmatprep.mubr.bf16.mxu0 %v5222
  %5357 = vmatmul.mubr.bf16.gmra.mrb[0].mxu0 %v5117
  %v5358 = vpop.f32.mrb[0].mxu0
  %v5359 = vadd.f32 0.0, %v5358
  %v5360 = vpop.f32.mrb[0].mxu0
  %v5361 = vpop.f32.mrb[0].mxu0
  %v5362 = vadd.f32 0.0, %v5361
  %v5363 = vpop.f32.mrb[0].mxu0
  %5364 = vmatprep.mubr.bf16.mxu0 %v5225
  %5365 = vmatmul.mubr.bf16.gmra.mrb[0].mxu0 %v5119
  %v5366 = vpop.f32.mrb[0].mxu0
  %v5367 = vadd.f32 0.0, %v5366
  %v5368 = vpop.f32.mrb[0].mxu0
  %v5369 = vpop.f32.mrb[0].mxu0
  %v5370 = vadd.f32 0.0, %v5369
  %v5371 = vpop.f32.mrb[0].mxu0
  %5372 = vmatprep.mubr.bf16.mxu0 %v5228
  %5373 = vmatmul.mubr.bf16.gmra.mrb[0].mxu0 %v5121
  %v5374 = vpop.f32.mrb[0].mxu0
  %v5375 = vadd.f32 0.0, %v5374
  %v5376 = vpop.f32.mrb[0].mxu0
  %v5377 = vpop.f32.mrb[0].mxu0
  %v5378 = vadd.f32 0.0, %v5377
  %v5379 = vpop.f32.mrb[0].mxu0
  %5380 = vmatprep.mubr.bf16.mxu0 %v5231
  %5381 = vmatmul.mubr.bf16.gmra.mrb[0].mxu0 %v5123
  %v5382 = vpop.f32.mrb[0].mxu0
  %v5383 = vadd.f32 0.0, %v5382
  %v5384 = vpop.f32.mrb[0].mxu0
  %v5385 = vpop.f32.mrb[0].mxu0
  %v5386 = vadd.f32 0.0, %v5385
  %v5387 = vpop.f32.mrb[0].mxu0
  %5388 = vmatprep.mubr.bf16.mxu0 %v5234
  %5389 = vmatmul.mubr.bf16.gmra.mrb[0].mxu0 %v5125
  %v5390 = vpop.f32.mrb[0].mxu0
  %v5391 = vadd.f32 0.0, %v5390
  %v5392 = vpop.f32.mrb[0].mxu0
  %v5393 = vpop.f32.mrb[0].mxu0
  %v5394 = vpop.f32.mrb[0].mxu0
  %5395 = vdwg.mxu0
  %v5396 = vld [vmem:[%s3] sm:$0xff]
  %v5397 = vld [vmem:[%s3 + $0x8] sm:$0xff]
  %v5398 = vld [vmem:[%s3 + $0x10] sm:$0xff]
  %v5399 = vld [vmem:[%s3 + $0x18] sm:$0xff]
  %v5400 = vld [vmem:[%s3 + $0x20] sm:$0xff]
  %v5401 = vpack.c.bf16 %v5274, %v5271
  %v5402 = vpack.c.bf16 %v5282, %v5279
  %v5403 = vpack.c.bf16 %v5290, %v5287
  %v5404 = vpack.c.bf16 %v5298, %v5295
  %v5405 = vpack.c.bf16 %v5306, %v5303
  %v5406 = vpack.c.bf16 %v5314, %v5311
  %v5407 = vpack.c.bf16 %v5322, %v5319
  %v5408 = vpack.c.bf16 %v5330, %v5327
  %v5409 = vpack.c.bf16 %v5338, %v5335
  %v5410 = vpack.c.bf16 %v5346, %v5343
  %v5411 = vpack.c.bf16 %v5354, %v5351
  %v5412 = vpack.c.bf16 %v5362, %v5359
  %v5413 = vpack.c.bf16 %v5370, %v5367
  %v5414 = vpack.c.bf16 %v5378, %v5375
  %v5415 = vpack.c.bf16 %v5386, %v5383
  %v5416 = vpack.c.bf16 %v5391, %v5391
  %v5422 = vunpack.c.l.b16 %v5396
  %v5423 = vunpack.c.h.b16 %v5396
  %v5424 = vunpack.c.l.b16 %v5397
  %v5425 = vunpack.c.h.b16 %v5397
  %v5426 = vunpack.c.l.b16 %v5398
  %v5427 = vunpack.c.h.b16 %v5398
  %v5428 = vunpack.c.l.b16 %v5399
  %v5429 = vunpack.c.h.b16 %v5399
  %v5430 = vunpack.c.l.b16 %v5400
  %v5431 = vunpack.c.h.b16 %v5400
  %v5432 = vpack.c.b16 %v5424, %v5422
  %v5433 = vpack.c.b16 %v5425, %v5423
  %v5434 = vpack.c.b16 %v5428, %v5426
  %v5435 = vpack.c.b16 %v5429, %v5427
  %v5436 = vpack.c.b16 %v5430, %v5430
  %v5437 = vpack.c.b16 %v5431, %v5431
  %vm5441 = vcmask 941056
  %v5443 = vsel %vm5441, %v5433, 0
  %v5446 = vsel %vm5441, %v5435, 0
  %v5449 = vsel %vm5441, %v5437, 0
  %vm5451 = vcmask 1040384
  %v5452 = vsel %vm5451, 4294967295, 65535
  %v5453 = vsel %vm2970, %v5452, 0
  %v5455 = vand.u32 %v5416, %v5453
  %5457 = vmatprep.subr.bf16.mxu0 0
  %5458 = vmatpush1.bf16.msra.mxu0 %v5401
  %5459 = vmatprep.subr.bf16.mxu0 0
  %5460 = vmatpush1.bf16.msra.mxu0 %v5402
  %5461 = vmatprep.subr.bf16.mxu0 0
  %5462 = vmatpush1.bf16.msra.mxu0 %v5403
  %5463 = vmatprep.subr.bf16.mxu0 0
  %5464 = vmatpush1.bf16.msra.mxu0 %v5404
  %5465 = vmatprep.subr.bf16.mxu0 0
  %5466 = vmatpush1.bf16.msra.mxu0 %v5405
  %5467 = vmatprep.subr.bf16.mxu0 0
  %5468 = vmatpush1.bf16.msra.mxu0 %v5406
  %5469 = vmatprep.subr.bf16.mxu0 0
  %5470 = vmatpush1.bf16.msra.mxu0 %v5407
  %5471 = vmatprep.subr.bf16.mxu0 0
  %5472 = vmatpush1.bf16.msra.mxu0 %v5408
  %5473 = vmatprep.subr.bf16.mxu0 0
  %5474 = vmatpush1.bf16.msra.mxu0 %v5409
  %5475 = vmatprep.subr.bf16.mxu0 0
  %5476 = vmatpush1.bf16.msra.mxu0 %v5410
  %5477 = vmatprep.subr.bf16.mxu0 0
  %5478 = vmatpush1.bf16.msra.mxu0 %v5411
  %5479 = vmatprep.subr.bf16.mxu0 0
  %5480 = vmatpush1.bf16.msra.mxu0 %v5412
  %5481 = vmatprep.subr.bf16.mxu0 0
  %5482 = vmatpush1.bf16.msra.mxu0 %v5413
  %5483 = vmatprep.subr.bf16.mxu0 0
  %5484 = vmatpush1.bf16.msra.mxu0 %v5414
  %5485 = vmatprep.subr.bf16.mxu0 0
  %5486 = vmatpush1.bf16.msra.mxu0 %v5415
  %5487 = vmatprep.subr.bf16.mxu0 0
  %5488 = vmatpush1.bf16.msra.mxu0 %v5455
  %5489 = vmatprep.mubr.bf16.mxu0 %v5443
  %5490 = vmatmul.mubr.bf16.gmra.mrb[0].mxu0 %v5432
  %v5491 = vpop.f32.mrb[0].mxu0
  %v5492 = vadd.f32 0.0, %v5491
  %v5493 = vpop.f32.mrb[0].mxu0
  %v5494 = vpop.f32.mrb[0].mxu0
  %v5495 = vadd.f32 0.0, %v5494
  %v5496 = vpop.f32.mrb[0].mxu0
  %5497 = vmatprep.mubr.bf16.mxu0 %v5446
  %5498 = vmatmul.mubr.bf16.gmra.mrb[0].mxu0 %v5434
  %v5499 = vpop.f32.mrb[0].mxu0
  %v5500 = vadd.f32 0.0, %v5499
  %v5501 = vpop.f32.mrb[0].mxu0
  %v5502 = vpop.f32.mrb[0].mxu0
  %v5503 = vadd.f32 0.0, %v5502
  %v5504 = vpop.f32.mrb[0].mxu0
  %5505 = vmatprep.mubr.bf16.mxu0 %v5449
  %5506 = vmatmul.mubr.bf16.gmra.mrb[0].mxu0 %v5436
  %v5507 = vpop.f32.mrb[0].mxu0
  %v5508 = vadd.f32 0.0, %v5507
  %v5509 = vpop.f32.mrb[0].mxu0
  %v5510 = vpop.f32.mrb[0].mxu0
  %v5511 = vpop.f32.mrb[0].mxu0
  %5512 = vdwg.mxu0
  %v5513 = vld [vmem:[%s1 + $0x380] sm:$0xf]
  %v5514 = vld [vmem:[%s1 + $0x388] sm:$0xf]
  %v5515 = vld [vmem:[%s1 + $0x390] sm:$0xf]
  %v5516 = vld [vmem:[%s1 + $0x398] sm:$0xf]
  %v5517 = vld [vmem:[%s1 + $0x3a0] sm:$0xf]
  %v5518 = vld [vmem:[%s1 + $0x3a8] sm:$0xf]
  %v5519 = vld [vmem:[%s1 + $0x3b0] sm:$0xf]
  %v5520 = vld [vmem:[%s1 + $0x3b8] sm:$0xf]
  %v5521 = vld [vmem:[%s1 + $0x3c0] sm:$0xf]
  %v5522 = vld [vmem:[%s1 + $0x3c8] sm:$0xf]
  %v5523 = vpack.c.bf16 %v5492, %v5492
  %v5524 = vld [vmem:[%s1 + $0x3d0] sm:$0xf]
  %v5525 = vld [vmem:[%s1 + $0x3d8] sm:$0xf]
  %v5526 = vld [vmem:[%s1 + $0x3e0] sm:$0xf]
  %v5527 = vld [vmem:[%s1 + $0x3e8] sm:$0xf]
  %v5528 = vld [vmem:[%s1 + $0x3f0] sm:$0xf]
  %v5529 = vld [vmem:[%s1 + $0x3f8] sm:$0xf]
  %v5530 = vld [vmem:[%s1 + $0x400] sm:$0xf]
  %v5531 = vld [vmem:[%s1 + $0x408] sm:$0xf]
  %v5532 = vld [vmem:[%s1 + $0x410] sm:$0xf]
  %v5533 = vld [vmem:[%s1 + $0x418] sm:$0xf]
  %v5534 = vpack.c.bf16 %v5495, %v5495
  %v5545 = vunpack.c.l.b16 %v5524
  %v5546 = vunpack.c.l.b16 %v5525
  %v5547 = vunpack.c.l.b16 %v5526
  %v5548 = vunpack.c.l.b16 %v5527
  %v5549 = vunpack.c.l.b16 %v5528
  %v5550 = vunpack.c.l.b16 %v5529
  %v5551 = vunpack.c.l.b16 %v5530
  %v5552 = vunpack.c.l.b16 %v5531
  %v5553 = vunpack.c.l.b16 %v5532
  %v5554 = vunpack.c.l.b16 %v5533
  %v5555 = vpack.c.b16 %v5546, %v5545
  %v5556 = vpack.c.b16 %v5548, %v5547
  %v5557 = vpack.c.b16 %v5550, %v5549
  %v5558 = vpack.c.b16 %v5552, %v5551
  %v5559 = vpack.c.b16 %v5554, %v5553
  %vm5565 = vcmask 654336
  %v5567 = vsel %vm5565, %v5534, 0
  %5569 = vmatprep.subr.bf16.mxu0 0
  %5570 = vmatpush1.bf16.msra.mxu0 %v5555
  %5571 = vmatprep.subr.bf16.mxu0 0
  %5572 = vmatpush1.bf16.msra.mxu0 %v5556
  %5573 = vmatprep.subr.bf16.mxu0 0
  %5574 = vmatpush1.bf16.msra.mxu0 %v5557
  %5575 = vmatprep.subr.bf16.mxu0 0
  %5576 = vmatpush1.bf16.msra.mxu0 %v5558
  %5577 = vmatprep.subr.bf16.mxu0 0
  %5578 = vmatpush1.bf16.msra.mxu0 %v5559
  %5579 = vmatprep.subr.bf16.mxu0 0
  %5580 = vmatpush1.bf16.msra.mxu0 0
  %5581 = vmatprep.subr.bf16.mxu0 0
  %5582 = vmatpush1.bf16.msra.mxu0 0
  %5583 = vmatprep.subr.bf16.mxu0 0
  %5584 = vmatpush1.bf16.msra.mxu0 0
  %5585 = vmatprep.subr.bf16.mxu0 0
  %5586 = vmatpush1.bf16.msra.mxu0 0
  %5587 = vmatprep.subr.bf16.mxu0 0
  %5588 = vmatpush1.bf16.msra.mxu0 0
  %5589 = vmatprep.subr.bf16.mxu0 0
  %5590 = vmatpush1.bf16.msra.mxu0 0
  %5591 = vmatprep.subr.bf16.mxu0 0
  %5592 = vmatpush1.bf16.msra.mxu0 0
  %5593 = vmatprep.subr.bf16.mxu0 0
  %5594 = vmatpush1.bf16.msra.mxu0 0
  %5595 = vmatprep.subr.bf16.mxu0 0
  %5596 = vmatpush1.bf16.msra.mxu0 0
  %5597 = vmatprep.subr.bf16.mxu0 0
  %5598 = vmatpush1.bf16.msra.mxu0 0
  %5599 = vmatprep.subr.bf16.mxu0 0
  %5600 = vmatpush1.bf16.msra.mxu0 0
  %5601 = vmatprep.mubr.bf16.mxu0 0
  %5602 = vmatmul.mubr.bf16.gmra.mrb[0].mxu0 %v5567
  %v5603 = vpop.f32.mrb[0].mxu0
  %v5604 = vadd.f32 0.0, %v5603
  %v5605 = vpop.f32.mrb[0].mxu0
  %v5606 = vpop.f32.mrb[0].mxu0
  %v5607 = vpop.f32.mrb[0].mxu0
  %5608 = vdwg.mxu0
  %v5619 = vunpack.c.l.b16 %v5513
  %v5620 = vunpack.c.l.b16 %v5514
  %v5621 = vunpack.c.l.b16 %v5515
  %v5622 = vunpack.c.l.b16 %v5516
  %v5623 = vunpack.c.l.b16 %v5517
  %v5624 = vunpack.c.l.b16 %v5518
  %v5625 = vunpack.c.l.b16 %v5519
  %v5626 = vunpack.c.l.b16 %v5520
  %v5627 = vunpack.c.l.b16 %v5521
  %v5628 = vunpack.c.l.b16 %v5522
  %v5629 = vpack.c.b16 %v5620, %v5619
  %v5630 = vpack.c.b16 %v5622, %v5621
  %v5631 = vpack.c.b16 %v5624, %v5623
  %v5632 = vpack.c.b16 %v5626, %v5625
  %v5633 = vpack.c.b16 %v5628, %v5627
  %v5640 = vsel %vm5565, %v5523, 0
  %5642 = vmatprep.subr.bf16.mxu0 0
  %5643 = vmatpush1.bf16.msra.mxu0 %v5629
  %5644 = vmatprep.subr.bf16.mxu0 0
  %5645 = vmatpush1.bf16.msra.mxu0 %v5630
  %5646 = vmatprep.subr.bf16.mxu0 0
  %5647 = vmatpush1.bf16.msra.mxu0 %v5631
  %5648 = vmatprep.subr.bf16.mxu0 0
  %5649 = vmatpush1.bf16.msra.mxu0 %v5632
  %5650 = vmatprep.subr.bf16.mxu0 0
  %5651 = vmatpush1.bf16.msra.mxu0 %v5633
  %5652 = vmatprep.subr.bf16.mxu0 0
  %5653 = vmatpush1.bf16.msra.mxu0 0
  %5654 = vmatprep.subr.bf16.mxu0 0
  %5655 = vmatpush1.bf16.msra.mxu0 0
  %5656 = vmatprep.subr.bf16.mxu0 0
  %5657 = vmatpush1.bf16.msra.mxu0 0
  %5658 = vmatprep.subr.bf16.mxu0 0
  %5659 = vmatpush1.bf16.msra.mxu0 0
  %5660 = vmatprep.subr.bf16.mxu0 0
  %5661 = vmatpush1.bf16.msra.mxu0 0
  %5662 = vmatprep.subr.bf16.mxu0 0
  %5663 = vmatpush1.bf16.msra.mxu0 0
  %5664 = vmatprep.subr.bf16.mxu0 0
  %5665 = vmatpush1.bf16.msra.mxu0 0
  %5666 = vmatprep.subr.bf16.mxu0 0
  %5667 = vmatpush1.bf16.msra.mxu0 0
  %5668 = vmatprep.subr.bf16.mxu0 0
  %5669 = vmatpush1.bf16.msra.mxu0 0
  %5670 = vmatprep.subr.bf16.mxu0 0
  %5671 = vmatpush1.bf16.msra.mxu0 0
  %5672 = vmatprep.subr.bf16.mxu0 0
  %5673 = vmatpush1.bf16.msra.mxu0 0
  %5674 = vmatprep.mubr.bf16.mxu0 0
  %5675 = vmatmul.mubr.bf16.gmra.mrb[0].mxu0 %v5640
  %v5676 = vpop.f32.mrb[0].mxu0
  %v5677 = vadd.f32 %v5604, %v5676
  %v5678 = vpop.f32.mrb[0].mxu0
  %v5679 = vpop.f32.mrb[0].mxu0
  %v5680 = vpop.f32.mrb[0].mxu0
  %5681 = vdwg.mxu0
  %v5682 = vld [vmem:[%s1 + $0x420] sm:$0xf]
  %v5683 = vld [vmem:[%s1 + $0x428] sm:$0xf]
  %v5684 = vld [vmem:[%s1 + $0x430] sm:$0xf]
  %v5685 = vld [vmem:[%s1 + $0x438] sm:$0xf]
  %v5686 = vld [vmem:[%s1 + $0x440] sm:$0xf]
  %v5687 = vld [vmem:[%s1 + $0x448] sm:$0xf]
  %v5688 = vld [vmem:[%s1 + $0x450] sm:$0xf]
  %v5689 = vld [vmem:[%s1 + $0x458] sm:$0xf]
  %v5690 = vld [vmem:[%s1 + $0x460] sm:$0xf]
  %v5691 = vld [vmem:[%s1 + $0x468] sm:$0xf]
  %v5692 = vpack.c.bf16 %v5500, %v5500
  %v5703 = vunpack.c.l.b16 %v5682
  %v5704 = vunpack.c.l.b16 %v5683
  %v5705 = vunpack.c.l.b16 %v5684
  %v5706 = vunpack.c.l.b16 %v5685
  %v5707 = vunpack.c.l.b16 %v5686
  %v5708 = vunpack.c.l.b16 %v5687
  %v5709 = vunpack.c.l.b16 %v5688
  %v5710 = vunpack.c.l.b16 %v5689
  %v5711 = vunpack.c.l.b16 %v5690
  %v5712 = vunpack.c.l.b16 %v5691
  %v5713 = vpack.c.b16 %v5704, %v5703
  %v5714 = vpack.c.b16 %v5706, %v5705
  %v5715 = vpack.c.b16 %v5708, %v5707
  %v5716 = vpack.c.b16 %v5710, %v5709
  %v5717 = vpack.c.b16 %v5712, %v5711
  %v5724 = vsel %vm5565, %v5692, 0
  %5726 = vmatprep.subr.bf16.mxu0 0
  %5727 = vmatpush1.bf16.msra.mxu0 %v5713
  %5728 = vmatprep.subr.bf16.mxu0 0
  %5729 = vmatpush1.bf16.msra.mxu0 %v5714
  %5730 = vmatprep.subr.bf16.mxu0 0
  %5731 = vmatpush1.bf16.msra.mxu0 %v5715
  %5732 = vmatprep.subr.bf16.mxu0 0
  %5733 = vmatpush1.bf16.msra.mxu0 %v5716
  %5734 = vmatprep.subr.bf16.mxu0 0
  %5735 = vmatpush1.bf16.msra.mxu0 %v5717
  %5736 = vmatprep.subr.bf16.mxu0 0
  %5737 = vmatpush1.bf16.msra.mxu0 0
  %5738 = vmatprep.subr.bf16.mxu0 0
  %5739 = vmatpush1.bf16.msra.mxu0 0
  %5740 = vmatprep.subr.bf16.mxu0 0
  %5741 = vmatpush1.bf16.msra.mxu0 0
  %5742 = vmatprep.subr.bf16.mxu0 0
  %5743 = vmatpush1.bf16.msra.mxu0 0
  %5744 = vmatprep.subr.bf16.mxu0 0
  %5745 = vmatpush1.bf16.msra.mxu0 0
  %5746 = vmatprep.subr.bf16.mxu0 0
  %5747 = vmatpush1.bf16.msra.mxu0 0
  %5748 = vmatprep.subr.bf16.mxu0 0
  %5749 = vmatpush1.bf16.msra.mxu0 0
  %5750 = vmatprep.subr.bf16.mxu0 0
  %5751 = vmatpush1.bf16.msra.mxu0 0
  %5752 = vmatprep.subr.bf16.mxu0 0
  %5753 = vmatpush1.bf16.msra.mxu0 0
  %5754 = vmatprep.subr.bf16.mxu0 0
  %5755 = vmatpush1.bf16.msra.mxu0 0
  %5756 = vmatprep.subr.bf16.mxu0 0
  %5757 = vmatpush1.bf16.msra.mxu0 0
  %5758 = vmatprep.mubr.bf16.mxu0 0
  %5759 = vmatmul.mubr.bf16.gmra.mrb[0].mxu0 %v5724
  %v5760 = vpop.f32.mrb[0].mxu0
  %v5761 = vadd.f32 0.0, %v5760
  %v5762 = vpop.f32.mrb[0].mxu0
  %v5763 = vpop.f32.mrb[0].mxu0
  %v5764 = vpop.f32.mrb[0].mxu0
  %5765 = vdwg.mxu0
  %v5766 = vadd.f32 %v5677, %v5761
  %v5767 = vld [vmem:[%s1 + $0x470] sm:$0xf]
  %v5768 = vld [vmem:[%s1 + $0x478] sm:$0xf]
  %v5769 = vld [vmem:[%s1 + $0x480] sm:$0xf]
  %v5770 = vld [vmem:[%s1 + $0x488] sm:$0xf]
  %v5771 = vld [vmem:[%s1 + $0x490] sm:$0xf]
  %v5772 = vld [vmem:[%s1 + $0x498] sm:$0xf]
  %v5773 = vld [vmem:[%s1 + $0x4a0] sm:$0xf]
  %v5774 = vld [vmem:[%s1 + $0x4a8] sm:$0xf]
  %v5775 = vld [vmem:[%s1 + $0x4b0] sm:$0xf]
  %v5776 = vld [vmem:[%s1 + $0x4b8] sm:$0xf]
  %v5777 = vpack.c.bf16 %v5503, %v5503
  %v5788 = vunpack.c.l.b16 %v5767
  %v5789 = vunpack.c.l.b16 %v5768
  %v5790 = vunpack.c.l.b16 %v5769
  %v5791 = vunpack.c.l.b16 %v5770
  %v5792 = vunpack.c.l.b16 %v5771
  %v5793 = vunpack.c.l.b16 %v5772
  %v5794 = vunpack.c.l.b16 %v5773
  %v5795 = vunpack.c.l.b16 %v5774
  %v5796 = vunpack.c.l.b16 %v5775
  %v5797 = vunpack.c.l.b16 %v5776
  %v5798 = vpack.c.b16 %v5789, %v5788
  %v5799 = vpack.c.b16 %v5791, %v5790
  %v5800 = vpack.c.b16 %v5793, %v5792
  %v5801 = vpack.c.b16 %v5795, %v5794
  %v5802 = vpack.c.b16 %v5797, %v5796
  %v5809 = vsel %vm5565, %v5777, 0
  %5811 = vmatprep.subr.bf16.mxu0 0
  %5812 = vmatpush1.bf16.msra.mxu0 %v5798
  %5813 = vmatprep.subr.bf16.mxu0 0
  %5814 = vmatpush1.bf16.msra.mxu0 %v5799
  %5815 = vmatprep.subr.bf16.mxu0 0
  %5816 = vmatpush1.bf16.msra.mxu0 %v5800
  %5817 = vmatprep.subr.bf16.mxu0 0
  %5818 = vmatpush1.bf16.msra.mxu0 %v5801
  %5819 = vmatprep.subr.bf16.mxu0 0
  %5820 = vmatpush1.bf16.msra.mxu0 %v5802
  %5821 = vmatprep.subr.bf16.mxu0 0
  %5822 = vmatpush1.bf16.msra.mxu0 0
  %5823 = vmatprep.subr.bf16.mxu0 0
  %5824 = vmatpush1.bf16.msra.mxu0 0
  %5825 = vmatprep.subr.bf16.mxu0 0
  %5826 = vmatpush1.bf16.msra.mxu0 0
  %5827 = vmatprep.subr.bf16.mxu0 0
  %5828 = vmatpush1.bf16.msra.mxu0 0
  %5829 = vmatprep.subr.bf16.mxu0 0
  %5830 = vmatpush1.bf16.msra.mxu0 0
  %5831 = vmatprep.subr.bf16.mxu0 0
  %5832 = vmatpush1.bf16.msra.mxu0 0
  %5833 = vmatprep.subr.bf16.mxu0 0
  %5834 = vmatpush1.bf16.msra.mxu0 0
  %5835 = vmatprep.subr.bf16.mxu0 0
  %5836 = vmatpush1.bf16.msra.mxu0 0
  %5837 = vmatprep.subr.bf16.mxu0 0
  %5838 = vmatpush1.bf16.msra.mxu0 0
  %5839 = vmatprep.subr.bf16.mxu0 0
  %5840 = vmatpush1.bf16.msra.mxu0 0
  %5841 = vmatprep.subr.bf16.mxu0 0
  %5842 = vmatpush1.bf16.msra.mxu0 0
  %5843 = vmatprep.mubr.bf16.mxu0 0
  %5844 = vmatmul.mubr.bf16.gmra.mrb[0].mxu0 %v5809
  %v5845 = vpop.f32.mrb[0].mxu0
  %v5846 = vadd.f32 0.0, %v5845
  %v5847 = vpop.f32.mrb[0].mxu0
  %v5848 = vpop.f32.mrb[0].mxu0
  %v5849 = vpop.f32.mrb[0].mxu0
  %5850 = vdwg.mxu0
  %v5851 = vadd.f32 %v5766, %v5846
  %v5852 = vld [vmem:[%s1 + $0x4c0] sm:$0xf]
  %v5853 = vld [vmem:[%s1 + $0x4c8] sm:$0xf]
  %v5854 = vld [vmem:[%s1 + $0x4d0] sm:$0xf]
  %v5855 = vld [vmem:[%s1 + $0x4d8] sm:$0xf]
  %v5856 = vld [vmem:[%s1 + $0x4e0] sm:$0xf]
  %v5857 = vld [vmem:[%s1 + $0x4e8] sm:$0xf]
  %v5858 = vld [vmem:[%s1 + $0x4f0] sm:$0xf]
  %v5859 = vld [vmem:[%s1 + $0x4f8] sm:$0xf]
  %v5860 = vld [vmem:[%s1 + $0x500] sm:$0xf]
  %v5861 = vld [vmem:[%s1 + $0x508] sm:$0xf]
  %v5862 = vpack.c.bf16 %v5508, %v5508
  %v5873 = vunpack.c.l.b16 %v5852
  %v5874 = vunpack.c.l.b16 %v5853
  %v5875 = vunpack.c.l.b16 %v5854
  %v5876 = vunpack.c.l.b16 %v5855
  %v5877 = vunpack.c.l.b16 %v5856
  %v5878 = vunpack.c.l.b16 %v5857
  %v5879 = vunpack.c.l.b16 %v5858
  %v5880 = vunpack.c.l.b16 %v5859
  %v5881 = vunpack.c.l.b16 %v5860
  %v5882 = vunpack.c.l.b16 %v5861
  %v5883 = vpack.c.b16 %v5874, %v5873
  %v5884 = vpack.c.b16 %v5876, %v5875
  %v5885 = vpack.c.b16 %v5878, %v5877
  %v5886 = vpack.c.b16 %v5880, %v5879
  %v5887 = vpack.c.b16 %v5882, %v5881
  %v5894 = vsel %vm5565, %v5862, 0
  %5896 = vmatprep.subr.bf16.mxu0 0
  %5897 = vmatpush1.bf16.msra.mxu0 %v5883
  %5898 = vmatprep.subr.bf16.mxu0 0
  %5899 = vmatpush1.bf16.msra.mxu0 %v5884
  %5900 = vmatprep.subr.bf16.mxu0 0
  %5901 = vmatpush1.bf16.msra.mxu0 %v5885
  %5902 = vmatprep.subr.bf16.mxu0 0
  %5903 = vmatpush1.bf16.msra.mxu0 %v5886
  %5904 = vmatprep.subr.bf16.mxu0 0
  %5905 = vmatpush1.bf16.msra.mxu0 %v5887
  %5906 = vmatprep.subr.bf16.mxu0 0
  %5907 = vmatpush1.bf16.msra.mxu0 0
  %5908 = vmatprep.subr.bf16.mxu0 0
  %5909 = vmatpush1.bf16.msra.mxu0 0
  %5910 = vmatprep.subr.bf16.mxu0 0
  %5911 = vmatpush1.bf16.msra.mxu0 0
  %5912 = vmatprep.subr.bf16.mxu0 0
  %5913 = vmatpush1.bf16.msra.mxu0 0
  %5914 = vmatprep.subr.bf16.mxu0 0
  %5915 = vmatpush1.bf16.msra.mxu0 0
  %5916 = vmatprep.subr.bf16.mxu0 0
  %5917 = vmatpush1.bf16.msra.mxu0 0
  %5918 = vmatprep.subr.bf16.mxu0 0
  %5919 = vmatpush1.bf16.msra.mxu0 0
  %5920 = vmatprep.subr.bf16.mxu0 0
  %5921 = vmatpush1.bf16.msra.mxu0 0
  %5922 = vmatprep.subr.bf16.mxu0 0
  %5923 = vmatpush1.bf16.msra.mxu0 0
  %5924 = vmatprep.subr.bf16.mxu0 0
  %5925 = vmatpush1.bf16.msra.mxu0 0
  %5926 = vmatprep.subr.bf16.mxu0 0
  %5927 = vmatpush1.bf16.msra.mxu0 0
  %5928 = vmatprep.mubr.bf16.mxu0 0
  %5929 = vmatmul.mubr.bf16.gmra.mrb[0].mxu0 %v5894
  %v5930 = vpop.f32.mrb[0].mxu0
  %v5931 = vadd.f32 0.0, %v5930
  %v5932 = vpop.f32.mrb[0].mxu0
  %v5933 = vpop.f32.mrb[0].mxu0
  %v5934 = vpop.f32.mrb[0].mxu0
  %5935 = vdwg.mxu0
  %v5936 = vadd.f32 %v5851, %v5931
  %v5937 = vld [vmem:[%s2 + $0x2] ss:$0 sm:$0xff]
  %v5938 = vadd.f32 %v5936, %v5937
  %v5939 = vsub.f32 0.0, %v5938
  %v5940 = vmul.f32 %v5939, 1.442695
  %v5941 = vpow.pop %v5940
  %v5942 = vadd.f32 %v5941, 1.0
  %v5943 = vrcp.pop %v5942
  %v5944 = vld [vmem:[%s1 + $0x510] sm:$0xf]
  %v5945 = vld [vmem:[%s1 + $0x518] sm:$0xf]
  %v5946 = vld [vmem:[%s1 + $0x520] sm:$0xf]
  %v5947 = vld [vmem:[%s1 + $0x528] sm:$0xf]
  %v5948 = vld [vmem:[%s1 + $0x530] sm:$0xf]
  %v5949 = vld [vmem:[%s1 + $0x538] sm:$0xf]
  %v5950 = vld [vmem:[%s1 + $0x540] sm:$0xf]
  %v5951 = vld [vmem:[%s1 + $0x548] sm:$0xf]
  %v5952 = vld [vmem:[%s1 + $0x550] sm:$0xf]
  %v5953 = vld [vmem:[%s1 + $0x558] sm:$0xf]
  %v5954 = vld [vmem:[%s1 + $0x560] sm:$0xf]
  %v5955 = vld [vmem:[%s1 + $0x568] sm:$0xf]
  %v5956 = vld [vmem:[%s1 + $0x570] sm:$0xf]
  %v5957 = vld [vmem:[%s1 + $0x578] sm:$0xf]
  %v5958 = vld [vmem:[%s1 + $0x580] sm:$0xf]
  %v5959 = vld [vmem:[%s1 + $0x588] sm:$0xf]
  %v5960 = vpack.c.bf16 %v5943, %v5943
  %v5961 = vld [vmem:[%s2 + $0x3] ss:$0 sm:$0xff]
  %v5978 = vunpack.c.l.b16 %v5944
  %v5979 = vunpack.c.l.b16 %v5945
  %v5980 = vunpack.c.l.b16 %v5946
  %v5981 = vunpack.c.l.b16 %v5947
  %v5982 = vunpack.c.l.b16 %v5948
  %v5983 = vunpack.c.l.b16 %v5949
  %v5984 = vunpack.c.l.b16 %v5950
  %v5985 = vunpack.c.l.b16 %v5951
  %v5986 = vunpack.c.l.b16 %v5952
  %v5987 = vunpack.c.l.b16 %v5953
  %v5988 = vunpack.c.l.b16 %v5954
  %v5989 = vunpack.c.l.b16 %v5955
  %v5990 = vunpack.c.l.b16 %v5956
  %v5991 = vunpack.c.l.b16 %v5957
  %v5992 = vunpack.c.l.b16 %v5958
  %v5993 = vunpack.c.l.b16 %v5959
  %v5994 = vpack.c.b16 %v5979, %v5978
  %v5995 = vpack.c.b16 %v5981, %v5980
  %v5996 = vpack.c.b16 %v5983, %v5982
  %v5997 = vpack.c.b16 %v5985, %v5984
  %v5998 = vpack.c.b16 %v5987, %v5986
  %v5999 = vpack.c.b16 %v5989, %v5988
  %v6000 = vpack.c.b16 %v5991, %v5990
  %v6001 = vpack.c.b16 %v5993, %v5992
  %6010 = vmatprep.subr.bf16.mxu0 0
  %6011 = vmatpush1.bf16.msra.mxu0 %v5994
  %6012 = vmatprep.subr.bf16.mxu0 0
  %6013 = vmatpush1.bf16.msra.mxu0 %v5995
  %6014 = vmatprep.subr.bf16.mxu0 0
  %6015 = vmatpush1.bf16.msra.mxu0 %v5996
  %6016 = vmatprep.subr.bf16.mxu0 0
  %6017 = vmatpush1.bf16.msra.mxu0 %v5997
  %6018 = vmatprep.subr.bf16.mxu0 0
  %6019 = vmatpush1.bf16.msra.mxu0 %v5998
  %6020 = vmatprep.subr.bf16.mxu0 0
  %6021 = vmatpush1.bf16.msra.mxu0 %v5999
  %6022 = vmatprep.subr.bf16.mxu0 0
  %6023 = vmatpush1.bf16.msra.mxu0 %v6000
  %6024 = vmatprep.subr.bf16.mxu0 0
  %6025 = vmatpush1.bf16.msra.mxu0 %v6001
  %6026 = vmatprep.subr.bf16.mxu0 0
  %6027 = vmatpush1.bf16.msra.mxu0 0
  %6028 = vmatprep.subr.bf16.mxu0 0
  %6029 = vmatpush1.bf16.msra.mxu0 0
  %6030 = vmatprep.subr.bf16.mxu0 0
  %6031 = vmatpush1.bf16.msra.mxu0 0
  %6032 = vmatprep.subr.bf16.mxu0 0
  %6033 = vmatpush1.bf16.msra.mxu0 0
  %6034 = vmatprep.subr.bf16.mxu0 0
  %6035 = vmatpush1.bf16.msra.mxu0 0
  %6036 = vmatprep.subr.bf16.mxu0 0
  %6037 = vmatpush1.bf16.msra.mxu0 0
  %6038 = vmatprep.subr.bf16.mxu0 0
  %6039 = vmatpush1.bf16.msra.mxu0 0
  %6040 = vmatprep.subr.bf16.mxu0 0
  %6041 = vmatpush1.bf16.msra.mxu0 0
  %6042 = vmatprep.mubr.bf16.mxu0 0
  %6043 = vmatmul.mubr.bf16.gmra.mrb[0].mxu0 %v5960
  %v6044 = vpop.f32.mrb[0].mxu0
  %v6045 = vadd.f32 %v5961, %v6044
  %v6046 = vpop.f32.mrb[0].mxu0
  %v6047 = vpop.f32.mrb[0].mxu0
  %v6048 = vpop.f32.mrb[0].mxu0
  %6049 = vdwg.mxu0
  %v6050 = vsub.f32 0.0, %v6045
  %v6051 = vmul.f32 %v6050, 1.442695
  %v6052 = vpow.pop %v6051
  %v6053 = vadd.f32 %v6052, 1.0
  %v6054 = vrcp.pop %v6053
  %v6055 = vld [vmem:[%s1 + $0x590] sm:$0xf]
  %v6056 = vld [vmem:[%s1 + $0x598] sm:$0xf]
  %v6057 = vld [vmem:[%s1 + $0x5a0] sm:$0xf]
  %v6058 = vld [vmem:[%s1 + $0x5a8] sm:$0xf]
  %v6059 = vld [vmem:[%s1 + $0x5b0] sm:$0xf]
  %v6060 = vld [vmem:[%s1 + $0x5b8] sm:$0xf]
  %v6061 = vld [vmem:[%s1 + $0x5c0] sm:$0xf]
  %v6062 = vld [vmem:[%s1 + $0x5c8] sm:$0xf]
  %v6063 = vld [vmem:[%s1 + $0x5d0] sm:$0xf]
  %v6064 = vld [vmem:[%s1 + $0x5d8] sm:$0xf]
  %v6065 = vld [vmem:[%s1 + $0x5e0] sm:$0xf]
  %v6066 = vld [vmem:[%s1 + $0x5e8] sm:$0xf]
  %v6067 = vld [vmem:[%s1 + $0x5f0] sm:$0xf]
  %v6068 = vld [vmem:[%s1 + $0x5f8] sm:$0xf]
  %v6069 = vld [vmem:[%s1 + $0x600] sm:$0xf]
  %v6070 = vld [vmem:[%s1 + $0x608] sm:$0xf]
  %v6071 = vpack.c.bf16 %v6054, %v6054
  %v6072 = vld [vmem:[%s2 + $0x4] ss:$0 sm:$0xff]
  %v6089 = vunpack.c.l.b16 %v6055
  %v6090 = vunpack.c.l.b16 %v6056
  %v6091 = vunpack.c.l.b16 %v6057
  %v6092 = vunpack.c.l.b16 %v6058
  %v6093 = vunpack.c.l.b16 %v6059
  %v6094 = vunpack.c.l.b16 %v6060
  %v6095 = vunpack.c.l.b16 %v6061
  %v6096 = vunpack.c.l.b16 %v6062
  %v6097 = vunpack.c.l.b16 %v6063
  %v6098 = vunpack.c.l.b16 %v6064
  %v6099 = vunpack.c.l.b16 %v6065
  %v6100 = vunpack.c.l.b16 %v6066
  %v6101 = vunpack.c.l.b16 %v6067
  %v6102 = vunpack.c.l.b16 %v6068
  %v6103 = vunpack.c.l.b16 %v6069
  %v6104 = vunpack.c.l.b16 %v6070
  %v6105 = vpack.c.b16 %v6090, %v6089
  %v6106 = vpack.c.b16 %v6092, %v6091
  %v6107 = vpack.c.b16 %v6094, %v6093
  %v6108 = vpack.c.b16 %v6096, %v6095
  %v6109 = vpack.c.b16 %v6098, %v6097
  %v6110 = vpack.c.b16 %v6100, %v6099
  %v6111 = vpack.c.b16 %v6102, %v6101
  %v6112 = vpack.c.b16 %v6104, %v6103
  %6121 = vmatprep.subr.bf16.mxu0 0
  %6122 = vmatpush1.bf16.msra.mxu0 %v6105
  %6123 = vmatprep.subr.bf16.mxu0 0
  %6124 = vmatpush1.bf16.msra.mxu0 %v6106
  %6125 = vmatprep.subr.bf16.mxu0 0
  %6126 = vmatpush1.bf16.msra.mxu0 %v6107
  %6127 = vmatprep.subr.bf16.mxu0 0
  %6128 = vmatpush1.bf16.msra.mxu0 %v6108
  %6129 = vmatprep.subr.bf16.mxu0 0
  %6130 = vmatpush1.bf16.msra.mxu0 %v6109
  %6131 = vmatprep.subr.bf16.mxu0 0
  %6132 = vmatpush1.bf16.msra.mxu0 %v6110
  %6133 = vmatprep.subr.bf16.mxu0 0
  %6134 = vmatpush1.bf16.msra.mxu0 %v6111
  %6135 = vmatprep.subr.bf16.mxu0 0
  %6136 = vmatpush1.bf16.msra.mxu0 %v6112
  %6137 = vmatprep.subr.bf16.mxu0 0
  %6138 = vmatpush1.bf16.msra.mxu0 0
  %6139 = vmatprep.subr.bf16.mxu0 0
  %6140 = vmatpush1.bf16.msra.mxu0 0
  %6141 = vmatprep.subr.bf16.mxu0 0
  %6142 = vmatpush1.bf16.msra.mxu0 0
  %6143 = vmatprep.subr.bf16.mxu0 0
  %6144 = vmatpush1.bf16.msra.mxu0 0
  %6145 = vmatprep.subr.bf16.mxu0 0
  %6146 = vmatpush1.bf16.msra.mxu0 0
  %6147 = vmatprep.subr.bf16.mxu0 0
  %6148 = vmatpush1.bf16.msra.mxu0 0
  %6149 = vmatprep.subr.bf16.mxu0 0
  %6150 = vmatpush1.bf16.msra.mxu0 0
  %6151 = vmatprep.subr.bf16.mxu0 0
  %6152 = vmatpush1.bf16.msra.mxu0 0
  %6153 = vmatprep.mubr.bf16.mxu0 0
  %6154 = vmatmul.mubr.bf16.gmra.mrb[0].mxu0 %v6071
  %v6155 = vpop.f32.mrb[0].mxu0
  %v6156 = vadd.f32 %v6072, %v6155
  %v6157 = vpop.f32.mrb[0].mxu0
  %v6158 = vpop.f32.mrb[0].mxu0
  %v6159 = vpop.f32.mrb[0].mxu0
  %6160 = vdwg.mxu0
  %6161 = vst [vmem:[%s4] sm:$0xff] %v6156
  // Predicated region
  $region18: #{lenet_forward.1} parent=0 // pred_check
    _
  $region19: #{lenet_forward.1} parent=0 // pred_check_branch
    %6163 = sbr.rel (0) target = $region21
  $region20: #{lenet_forward.1} parent=0 // pred_region
    _
  $region21: #{lenet_forward.1} parent=0 // pred_fallthru
    _
  // Predicated region
  $region22: #{lenet_forward.1} parent=0 // pred_check
    _
  $region23: #{lenet_forward.1} parent=0 // pred_check_branch
    %6165 = sbr.rel (0) target = $region25
  $region24: #{lenet_forward.1} parent=0 // pred_region
    _
  $region25: #{lenet_forward.1} parent=0 // pred_fallthru
    _

</llo_original>
